<compile_context>
chip_gen: v6e
topology: v6e:2x2x1
jax: 0.10.0
libtpu: 0.0.40
codegen_flags: <defaults>
</compile_context>

<pallas_src>
import functools
import math

import jax
import jax.numpy as jnp
from jax.experimental import pallas as pl
from jax.experimental.pallas import tpu as pltpu


def _round_up(x, m):
    return ((x + m - 1) // m) * m


# ----------------------------------------------------------------------------- kernel
def _chebnet_fused_kernel(l2_ref, h_ref, w_ref, b_ref, o_ref, t_scr, *, k, n_layers):
    """Whole ChebNet forward pass in one gridless kernel (operands resident in VMEM).

    l2_ref : (Np, Np)     bf16  pre-scaled 2*L_hat (the recurrence factor 2 folded in)
    h_ref  : (Np, F)      bf16  zero-padded input features
    w_ref  : (L, k*F, F)  bf16  per-layer weights, Chebyshev orders stacked along rows
    b_ref  : (L, 1, F)    f32   per-layer bias (zero-padded)
    o_ref  : (Np, F)      f32   lane-dense padded output (sliced outside the kernel)
    t_scr  : (Np, k*F)    bf16  scratch staging T_0..T_{k-1} for the wide combine matmul
    """
    fpad = h_ref.shape[1]
    h_bf = h_ref[...]                              # bf16 activations of the current layer

    acc = None
    for layer in range(n_layers):                  # statically unrolled (small L, k)
        # ---- Chebyshev basis T_0..T_{k-1}, staged lane-dense into t_scr ------------
        t_scr[:, 0:fpad] = h_bf                    # T_0 = H
        if k > 1:
            # Recurrence carried in f32 (dot outputs); bf16 copies feed the MXU only.
            t_prev_f = h_bf.astype(jnp.float32)
            # T_1 = L_hat @ H = 0.5 * (2*L_hat) @ H
            t_cur_f = 0.5 * jnp.dot(l2_ref[...], h_bf,
                                    preferred_element_type=jnp.float32)
            t_cur_bf = t_cur_f.astype(jnp.bfloat16)
            t_scr[:, fpad:2 * fpad] = t_cur_bf
            for i in range(2, k):
                # T_i = 2*L_hat @ T_{i-1} - T_{i-2}   (the factor 2 lives inside l2_ref)
                t_next_f = (jnp.dot(l2_ref[...], t_cur_bf,
                                    preferred_element_type=jnp.float32) - t_prev_f)
                t_next_bf = t_next_f.astype(jnp.bfloat16)
                t_scr[:, i * fpad:(i + 1) * fpad] = t_next_bf
                t_prev_f, t_cur_f, t_cur_bf = t_cur_f, t_next_f, t_next_bf

        # ---- single wide-contraction combine: (Np, k*F) @ (k*F, F) -----------------
        acc = jnp.dot(t_scr[...], w_ref[layer], preferred_element_type=jnp.float32)
        acc = acc + b_ref[layer]                   # (1, F) broadcast over rows
        acc = jnp.maximum(acc, 0.0)                # ReLU on every layer (matches spec)
        h_bf = acc.astype(jnp.bfloat16)            # feed the next layer in bf16

    o_ref[...] = acc                               # f32, lane-dense -> unmasked vst


# ----------------------------------------------------------------------------- wrapper
def _vmem_limit_bytes(n_pad, fpad, k, n_layers):
    """Exact residency budget + headroom, capped per TPU generation."""
    resident = (
        n_pad * n_pad * 2                      # 2*L_hat (bf16)
        + n_pad * fpad * 2                     # input activations (bf16)
        + n_layers * k * fpad * fpad * 2       # stacked weights (bf16)
        + n_layers * fpad * 4                  # biases (f32)
        + n_pad * fpad * 4                     # output (f32)
        + n_pad * k * fpad * 2                 # T staging scratch (bf16)
        + 4 * n_pad * fpad * 4                 # f32 recurrence carries + accumulator
    )
    need = int(resident * 1.25) + (2 << 20)    # compiler/internal scratch headroom
    try:
        cap = int(pltpu.get_tpu_info().vmem_capacity_bytes)
    except Exception:                          # interpret mode / unknown chip
        cap = 64 * 1024 * 1024
    cap = int(cap * 0.85)                      # leave physical headroom (esp. v7x 64 MiB)
    return max(4 * 1024 * 1024, min(need, cap))


def prepare_chebnet_operands(l_hat, w_list, b_list, fpad):
    """Pad the STATIC operands once, directly into the kernel dtypes (hoisted per review).

    Returns:
      l2_pad : (Np, Np)        bf16   pre-scaled 2*L_hat, zero-padded
      w_all  : (L, k*Fpad, F)  bf16   per-layer weights with orders stacked along rows
      b_all  : (L, 1, Fpad)    f32    per-layer biases
    Zero padding is exact: padded rows/cols contribute nothing to the real outputs.
    """
    n = l_hat.shape[0]
    n_pad = _round_up(n, 128)
    l2_pad = jnp.zeros((n_pad, n_pad), jnp.bfloat16)
    l2_pad = l2_pad.at[:n, :n].set((2.0 * l_hat).astype(jnp.bfloat16))

    ws, bs = [], []
    for w, b in zip(w_list, b_list):           # w: (k, fin, fout), b: (1, fout)
        kk, fin, fout = w.shape
        wp = jnp.zeros((kk, fpad, fpad), jnp.bfloat16)
        wp = wp.at[:, :fin, :fout].set(w.astype(jnp.bfloat16))
        ws.append(wp.reshape(kk * fpad, fpad))
        bs.append(jnp.zeros((1, fpad), jnp.float32).at[:, :fout].set(b))
    return l2_pad, jnp.stack(ws), jnp.stack(bs)


@functools.partial(jax.jit, static_argnames=("k", "n_classes"))
def chebnet_forward(l2_pad, features, w_all, b_all, *, k, n_classes):
    """Pad the (small) feature matrix, run the fused kernel, slice the real output."""
    n, fin = features.shape
    n_pad = l2_pad.shape[0]
    n_layers = w_all.shape[0]
    fpad = w_all.shape[-1]

    # Only the feature matrix is padded per call, directly into bf16.
    h0 = jnp.zeros((n_pad, fpad), jnp.bfloat16).at[:n, :fin].set(
        features.astype(jnp.bfloat16))

    # Advisory cost estimate using the REAL node count (no padded-zero bias on N).
    flops = n_layers * (2 * (k - 1) * n * n * fpad + 2 * n * (k * fpad) * fpad)
    bytes_accessed = (l2_pad.size * 2 + h0.size * 2 + w_all.size * 2
                      + b_all.size * 4 + n_pad * fpad * 4)

    kernel = functools.partial(_chebnet_fused_kernel, k=k, n_layers=n_layers)
    vmem = pltpu.MemorySpace.VMEM
    out_pad = pl.pallas_call(
        kernel,
        out_shape=jax.ShapeDtypeStruct((n_pad, fpad), jnp.float32),
        in_specs=[
            pl.BlockSpec(memory_space=vmem),   # 2*L_hat
            pl.BlockSpec(memory_space=vmem),   # features
            pl.BlockSpec(memory_space=vmem),   # stacked weights (L, k*F, F)
            pl.BlockSpec(memory_space=vmem),   # stacked biases  (L, 1, F)
        ],
        out_specs=pl.BlockSpec(memory_space=vmem),
        scratch_shapes=[pltpu.VMEM((n_pad, k * fpad), jnp.bfloat16)],
        compiler_params=pltpu.CompilerParams(
            vmem_limit_bytes=_vmem_limit_bytes(n_pad, fpad, k, n_layers)),
        cost_estimate=pl.CostEstimate(flops=flops, transcendentals=0,
                                      bytes_accessed=bytes_accessed),
    )(l2_pad, h0, w_all, b_all)

    # TODO(synk): graphs whose padded 2*L_hat does not fit VMEM (Np >~ 4.8k bf16 on v7x,
    # ~7.5k on v5e/v6e) need the row-tiled streamed variant: grid over T row tiles
    # ("parallel", also feeds both v7x TensorCores) x L2 column blocks ("arbitrary"),
    # with L2 left in HBM (memory_space=pl.ANY / pltpu.emit_pipeline) and only
    # T_{i-1}, T_i, acc resident in VMEM.
    return out_pad[:n, :n_classes]


# ----------------------------------------------------------------------------- params / data
def init_chebnet_params(key, in_feats, n_classes, size_hidden, n_layers, k):
    """Same layer structure as the PyTorch ChebNet; returns unpadded f32 parameter lists."""
    dims = [(in_feats, size_hidden)]
    for _ in range(n_layers - 1):
        dims.append((size_hidden, size_hidden))
    dims.append((size_hidden, n_classes))

    w_list, b_list = [], []
    for fin, fout in dims:
        key, kw, kb = jax.random.split(key, 3)
        # nn.Linear(k*fin, fout) init: uniform(-1/sqrt(k*fin), 1/sqrt(k*fin)).
        bound = 1.0 / math.sqrt(k * fin)
        w_list.append(jax.random.uniform(kw, (k, fin, fout), jnp.float32, -bound, bound))
        b_list.append(jax.random.uniform(kb, (1, fout), jnp.float32, -bound, bound))
    return w_list, b_list


def build_rescaled_laplacian(key, n_nodes):
    """Random symmetric graph -> rescaled Laplacian L_hat = -D^{-1/2} A D^{-1/2}."""
    a = (jax.random.uniform(key, (n_nodes, n_nodes)) > 0.6).astype(jnp.float32)
    a = jnp.maximum(a, a.T)                       # symmetrize
    a = a * (1.0 - jnp.eye(n_nodes))              # no self loops
    deg = jnp.clip(a.sum(axis=1), 1.0, None)
    d_inv_sqrt = 1.0 / jnp.sqrt(deg)
    a_norm = a * d_inv_sqrt[:, None] * d_inv_sqrt[None, :]
    return -a_norm                                # lambda_max = 2  ->  L_hat = -A_norm


def chebnet_reference(l_hat, features, w_list, b_list, k):
    """Pure-JAX f32 reference for tolerance validation (mirrors the PyTorch module)."""
    h = features
    for w, b in zip(w_list, b_list):
        t_prev = h
        out = t_prev @ w[0]
        if k > 1:
            t_cur = l_hat @ h
            out = out + t_cur @ w[1]
            for i in range(2, k):
                t_next = 2.0 * (l_hat @ t_cur) - t_prev
                out = out + t_next @ w[i]
                t_prev, t_cur = t_cur, t_next
        h = jnp.maximum(out + b, 0.0)
    return h


if __name__ == "__main__":
    # Small config: in_feats=8, hidden=32, classes=4, k=3, n_layers=2 (-> 3 ChebConv layers)
    N_NODES, IN_FEATS, HIDDEN, N_CLASSES, K, N_LAYERS = 16, 8, 32, 4, 3, 2

    root = jax.random.PRNGKey(0)
    k_graph, k_feat, k_param = jax.random.split(root, 3)

    l_hat = build_rescaled_laplacian(k_graph, N_NODES)                      # (16, 16)
    features = jax.random.normal(k_feat, (N_NODES, IN_FEATS), jnp.float32)  # (16, 8)

    FPAD = _round_up(max(IN_FEATS, HIDDEN, N_CLASSES), 128)                 # lane-dense feature dim
    w_list, b_list = init_chebnet_params(k_param, IN_FEATS, N_CLASSES, HIDDEN, N_LAYERS, K)

    # Static operands padded + cast exactly once (hoisted out of the per-call path).
    l2_pad, w_all, b_all = prepare_chebnet_operands(l_hat, w_list, b_list, FPAD)

    out = chebnet_forward(l2_pad, features, w_all, b_all, k=K, n_classes=N_CLASSES)
    out = jax.block_until_ready(out)
    assert out.shape == (N_NODES, N_CLASSES)
    assert bool(jnp.all(jnp.isfinite(out)))

    # Validate against an f32 reference with an explicit tolerance (bf16 MXU inputs).
    ref = chebnet_reference(l_hat, features, w_list, b_list, K)
    assert bool(jnp.allclose(out, ref, rtol=8e-2, atol=8e-2)), \
        f"max abs err {float(jnp.max(jnp.abs(out - ref)))}"
    print("KERNEL_OK")
</pallas_src>

<mosaic_0001>
module attributes {stable_mosaic.version = 11 : i64} {
  func.func @_chebnet_fused_kernel(%arg0: memref<128x128xbf16, #tpu.memory_space<vmem>>, %arg1: memref<128x128xbf16, #tpu.memory_space<vmem>>, %arg2: memref<3x384x128xbf16, #tpu.memory_space<vmem>>, %arg3: memref<3x1x128xf32, #tpu.memory_space<vmem>>, %arg4: memref<128x128xf32, #tpu.memory_space<vmem>>, %arg5: memref<128x384xbf16, #tpu.memory_space<vmem>>) attributes {dimension_semantics = [], scalar_prefetch = 0 : i64, scratch_operands = 1 : i64, tpu.core_type = #tpu.core_type<tc>} {
    %c0 = arith.constant 0 : index
    %c0_0 = arith.constant 0 : index
    %0 = vector.load %arg1[%c0, %c0_0] : memref<128x128xbf16, #tpu.memory_space<vmem>>, vector<128x128xbf16>
    %c0_1 = arith.constant 0 : index
    %c0_2 = arith.constant 0 : index
    %1 = vector.load %arg5[%c0_1, %c0_2] : memref<128x384xbf16, #tpu.memory_space<vmem>>, vector<128x128xbf16>
    tpu.vector_store %arg5[%c0_1, %c0_2], %0 {strides = array<i32>} : memref<128x384xbf16, #tpu.memory_space<vmem>>, vector<128x128xbf16>,
    %2 = arith.extf %0 : vector<128x128xbf16> to vector<128x128xf32>
    %c0_3 = arith.constant 0 : index
    %c0_4 = arith.constant 0 : index
    %3 = vector.load %arg0[%c0_3, %c0_4] : memref<128x128xbf16, #tpu.memory_space<vmem>>, vector<128x128xbf16>
    %cst = arith.constant dense<0.000000e+00> : vector<128x128xf32>
    %4 = tpu.matmul %3, %0, %cst {dimension_numbers = #tpu.dot_dimension_numbers<[1], [0], [0], [1], [0, 0, 1, 1], [], []>} : vector<128x128xbf16>, vector<128x128xbf16>, vector<128x128xf32> -> vector<128x128xf32>
    %cst_5 = arith.constant 5.000000e-01 : f32
    %5 = vector.broadcast %cst_5 : f32 to vector<128x128xf32>
    %6 = arith.mulf %5, %4 : vector<128x128xf32>
    %7 = arith.truncf %6 : vector<128x128xf32> to vector<128x128xbf16>
    %c0_6 = arith.constant 0 : index
    %c128 = arith.constant 128 : index
    %8 = vector.load %arg5[%c0_6, %c128] : memref<128x384xbf16, #tpu.memory_space<vmem>>, vector<128x128xbf16>
    tpu.vector_store %arg5[%c0_6, %c128], %7 {strides = array<i32>} : memref<128x384xbf16, #tpu.memory_space<vmem>>, vector<128x128xbf16>,
    %c0_7 = arith.constant 0 : index
    %c0_8 = arith.constant 0 : index
    %9 = vector.load %arg0[%c0_7, %c0_8] : memref<128x128xbf16, #tpu.memory_space<vmem>>, vector<128x128xbf16>
    %cst_9 = arith.constant dense<0.000000e+00> : vector<128x128xf32>
    %10 = tpu.matmul %9, %7, %cst_9 {dimension_numbers = #tpu.dot_dimension_numbers<[1], [0], [0], [1], [0, 0, 1, 1], [], []>} : vector<128x128xbf16>, vector<128x128xbf16>, vector<128x128xf32> -> vector<128x128xf32>
    %11 = arith.subf %10, %2 : vector<128x128xf32>
    %12 = arith.truncf %11 : vector<128x128xf32> to vector<128x128xbf16>
    %c0_10 = arith.constant 0 : index
    %c256 = arith.constant 256 : index
    %13 = vector.load %arg5[%c0_10, %c256] : memref<128x384xbf16, #tpu.memory_space<vmem>>, vector<128x128xbf16>
    tpu.vector_store %arg5[%c0_10, %c256], %12 {strides = array<i32>} : memref<128x384xbf16, #tpu.memory_space<vmem>>, vector<128x128xbf16>,
    %c0_11 = arith.constant 0 : index
    %c0_12 = arith.constant 0 : index
    %14 = vector.load %arg5[%c0_11, %c0_12] : memref<128x384xbf16, #tpu.memory_space<vmem>>, vector<128x384xbf16>
    %c0_13 = arith.constant 0 : index
    %c0_14 = arith.constant 0 : index
    %c0_15 = arith.constant 0 : index
    %15 = vector.load %arg2[%c0_13, %c0_14, %c0_15] : memref<3x384x128xbf16, #tpu.memory_space<vmem>>, vector<1x384x128xbf16>
    %16 = vector.shape_cast %15 : vector<1x384x128xbf16> to vector<384x128xbf16>
    %cst_16 = arith.constant dense<0.000000e+00> : vector<128x128xf32>
    %17 = tpu.matmul %14, %16, %cst_16 {dimension_numbers = #tpu.dot_dimension_numbers<[1], [0], [0], [1], [0, 0, 1, 1], [], []>} : vector<128x384xbf16>, vector<384x128xbf16>, vector<128x128xf32> -> vector<128x128xf32>
    %c0_17 = arith.constant 0 : index
    %c0_18 = arith.constant 0 : index
    %c0_19 = arith.constant 0 : index
    %18 = vector.load %arg3[%c0_17, %c0_18, %c0_19] : memref<3x1x128xf32, #tpu.memory_space<vmem>>, vector<1x1x128xf32>
    %19 = vector.shape_cast %18 : vector<1x1x128xf32> to vector<1x128xf32>
    %20 = vector.broadcast %19 : vector<1x128xf32> to vector<128x128xf32>
    %21 = arith.addf %17, %20 : vector<128x128xf32>
    %cst_20 = arith.constant 0.000000e+00 : f32
    %22 = vector.broadcast %cst_20 : f32 to vector<128x128xf32>
    %23 = arith.maximumf %21, %22 : vector<128x128xf32>
    %24 = arith.truncf %23 : vector<128x128xf32> to vector<128x128xbf16>
    %c0_21 = arith.constant 0 : index
    %c0_22 = arith.constant 0 : index
    %25 = vector.load %arg5[%c0_21, %c0_22] : memref<128x384xbf16, #tpu.memory_space<vmem>>, vector<128x128xbf16>
    tpu.vector_store %arg5[%c0_21, %c0_22], %24 {strides = array<i32>} : memref<128x384xbf16, #tpu.memory_space<vmem>>, vector<128x128xbf16>,
    %26 = arith.extf %24 : vector<128x128xbf16> to vector<128x128xf32>
    %c0_23 = arith.constant 0 : index
    %c0_24 = arith.constant 0 : index
    %27 = vector.load %arg0[%c0_23, %c0_24] : memref<128x128xbf16, #tpu.memory_space<vmem>>, vector<128x128xbf16>
    %cst_25 = arith.constant dense<0.000000e+00> : vector<128x128xf32>
    %28 = tpu.matmul %27, %24, %cst_25 {dimension_numbers = #tpu.dot_dimension_numbers<[1], [0], [0], [1], [0, 0, 1, 1], [], []>} : vector<128x128xbf16>, vector<128x128xbf16>, vector<128x128xf32> -> vector<128x128xf32>
    %cst_26 = arith.constant 5.000000e-01 : f32
    %29 = vector.broadcast %cst_26 : f32 to vector<128x128xf32>
    %30 = arith.mulf %29, %28 : vector<128x128xf32>
    %31 = arith.truncf %30 : vector<128x128xf32> to vector<128x128xbf16>
    %c0_27 = arith.constant 0 : index
    %c128_28 = arith.constant 128 : index
    %32 = vector.load %arg5[%c0_27, %c128_28] : memref<128x384xbf16, #tpu.memory_space<vmem>>, vector<128x128xbf16>
    tpu.vector_store %arg5[%c0_27, %c128_28], %31 {strides = array<i32>} : memref<128x384xbf16, #tpu.memory_space<vmem>>, vector<128x128xbf16>,
    %c0_29 = arith.constant 0 : index
    %c0_30 = arith.constant 0 : index
    %33 = vector.load %arg0[%c0_29, %c0_30] : memref<128x128xbf16, #tpu.memory_space<vmem>>, vector<128x128xbf16>
    %cst_31 = arith.constant dense<0.000000e+00> : vector<128x128xf32>
    %34 = tpu.matmul %33, %31, %cst_31 {dimension_numbers = #tpu.dot_dimension_numbers<[1], [0], [0], [1], [0, 0, 1, 1], [], []>} : vector<128x128xbf16>, vector<128x128xbf16>, vector<128x128xf32> -> vector<128x128xf32>
    %35 = arith.subf %34, %26 : vector<128x128xf32>
    %36 = arith.truncf %35 : vector<128x128xf32> to vector<128x128xbf16>
    %c0_32 = arith.constant 0 : index
    %c256_33 = arith.constant 256 : index
    %37 = vector.load %arg5[%c0_32, %c256_33] : memref<128x384xbf16, #tpu.memory_space<vmem>>, vector<128x128xbf16>
    tpu.vector_store %arg5[%c0_32, %c256_33], %36 {strides = array<i32>} : memref<128x384xbf16, #tpu.memory_space<vmem>>, vector<128x128xbf16>,
    %c0_34 = arith.constant 0 : index
    %c0_35 = arith.constant 0 : index
    %38 = vector.load %arg5[%c0_34, %c0_35] : memref<128x384xbf16, #tpu.memory_space<vmem>>, vector<128x384xbf16>
    %c1 = arith.constant 1 : index
    %c0_36 = arith.constant 0 : index
    %c0_37 = arith.constant 0 : index
    %39 = vector.load %arg2[%c1, %c0_36, %c0_37] : memref<3x384x128xbf16, #tpu.memory_space<vmem>>, vector<1x384x128xbf16>
    %40 = vector.shape_cast %39 : vector<1x384x128xbf16> to vector<384x128xbf16>
    %cst_38 = arith.constant dense<0.000000e+00> : vector<128x128xf32>
    %41 = tpu.matmul %38, %40, %cst_38 {dimension_numbers = #tpu.dot_dimension_numbers<[1], [0], [0], [1], [0, 0, 1, 1], [], []>} : vector<128x384xbf16>, vector<384x128xbf16>, vector<128x128xf32> -> vector<128x128xf32>
    %c1_39 = arith.constant 1 : index
    %c0_40 = arith.constant 0 : index
    %c0_41 = arith.constant 0 : index
    %42 = vector.load %arg3[%c1_39, %c0_40, %c0_41] : memref<3x1x128xf32, #tpu.memory_space<vmem>>, vector<1x1x128xf32>
    %43 = vector.shape_cast %42 : vector<1x1x128xf32> to vector<1x128xf32>
    %44 = vector.broadcast %43 : vector<1x128xf32> to vector<128x128xf32>
    %45 = arith.addf %41, %44 : vector<128x128xf32>
    %cst_42 = arith.constant 0.000000e+00 : f32
    %46 = vector.broadcast %cst_42 : f32 to vector<128x128xf32>
    %47 = arith.maximumf %45, %46 : vector<128x128xf32>
    %48 = arith.truncf %47 : vector<128x128xf32> to vector<128x128xbf16>
    %c0_43 = arith.constant 0 : index
    %c0_44 = arith.constant 0 : index
    %49 = vector.load %arg5[%c0_43, %c0_44] : memref<128x384xbf16, #tpu.memory_space<vmem>>, vector<128x128xbf16>
    tpu.vector_store %arg5[%c0_43, %c0_44], %48 {strides = array<i32>} : memref<128x384xbf16, #tpu.memory_space<vmem>>, vector<128x128xbf16>,
    %50 = arith.extf %48 : vector<128x128xbf16> to vector<128x128xf32>
    %c0_45 = arith.constant 0 : index
    %c0_46 = arith.constant 0 : index
    %51 = vector.load %arg0[%c0_45, %c0_46] : memref<128x128xbf16, #tpu.memory_space<vmem>>, vector<128x128xbf16>
    %cst_47 = arith.constant dense<0.000000e+00> : vector<128x128xf32>
    %52 = tpu.matmul %51, %48, %cst_47 {dimension_numbers = #tpu.dot_dimension_numbers<[1], [0], [0], [1], [0, 0, 1, 1], [], []>} : vector<128x128xbf16>, vector<128x128xbf16>, vector<128x128xf32> -> vector<128x128xf32>
    %cst_48 = arith.constant 5.000000e-01 : f32
    %53 = vector.broadcast %cst_48 : f32 to vector<128x128xf32>
    %54 = arith.mulf %53, %52 : vector<128x128xf32>
    %55 = arith.truncf %54 : vector<128x128xf32> to vector<128x128xbf16>
    %c0_49 = arith.constant 0 : index
    %c128_50 = arith.constant 128 : index
    %56 = vector.load %arg5[%c0_49, %c128_50] : memref<128x384xbf16, #tpu.memory_space<vmem>>, vector<128x128xbf16>
    tpu.vector_store %arg5[%c0_49, %c128_50], %55 {strides = array<i32>} : memref<128x384xbf16, #tpu.memory_space<vmem>>, vector<128x128xbf16>,
    %c0_51 = arith.constant 0 : index
    %c0_52 = arith.constant 0 : index
    %57 = vector.load %arg0[%c0_51, %c0_52] : memref<128x128xbf16, #tpu.memory_space<vmem>>, vector<128x128xbf16>
    %cst_53 = arith.constant dense<0.000000e+00> : vector<128x128xf32>
    %58 = tpu.matmul %57, %55, %cst_53 {dimension_numbers = #tpu.dot_dimension_numbers<[1], [0], [0], [1], [0, 0, 1, 1], [], []>} : vector<128x128xbf16>, vector<128x128xbf16>, vector<128x128xf32> -> vector<128x128xf32>
    %59 = arith.subf %58, %50 : vector<128x128xf32>
    %60 = arith.truncf %59 : vector<128x128xf32> to vector<128x128xbf16>
    %c0_54 = arith.constant 0 : index
    %c256_55 = arith.constant 256 : index
    %61 = vector.load %arg5[%c0_54, %c256_55] : memref<128x384xbf16, #tpu.memory_space<vmem>>, vector<128x128xbf16>
    tpu.vector_store %arg5[%c0_54, %c256_55], %60 {strides = array<i32>} : memref<128x384xbf16, #tpu.memory_space<vmem>>, vector<128x128xbf16>,
    %c0_56 = arith.constant 0 : index
    %c0_57 = arith.constant 0 : index
    %62 = vector.load %arg5[%c0_56, %c0_57] : memref<128x384xbf16, #tpu.memory_space<vmem>>, vector<128x384xbf16>
    %c2 = arith.constant 2 : index
    %c0_58 = arith.constant 0 : index
    %c0_59 = arith.constant 0 : index
    %63 = vector.load %arg2[%c2, %c0_58, %c0_59] : memref<3x384x128xbf16, #tpu.memory_space<vmem>>, vector<1x384x128xbf16>
    %64 = vector.shape_cast %63 : vector<1x384x128xbf16> to vector<384x128xbf16>
    %cst_60 = arith.constant dense<0.000000e+00> : vector<128x128xf32>
    %65 = tpu.matmul %62, %64, %cst_60 {dimension_numbers = #tpu.dot_dimension_numbers<[1], [0], [0], [1], [0, 0, 1, 1], [], []>} : vector<128x384xbf16>, vector<384x128xbf16>, vector<128x128xf32> -> vector<128x128xf32>
    %c2_61 = arith.constant 2 : index
    %c0_62 = arith.constant 0 : index
    %c0_63 = arith.constant 0 : index
    %66 = vector.load %arg3[%c2_61, %c0_62, %c0_63] : memref<3x1x128xf32, #tpu.memory_space<vmem>>, vector<1x1x128xf32>
    %67 = vector.shape_cast %66 : vector<1x1x128xf32> to vector<1x128xf32>
    %68 = vector.broadcast %67 : vector<1x128xf32> to vector<128x128xf32>
    %69 = arith.addf %65, %68 : vector<128x128xf32>
    %cst_64 = arith.constant 0.000000e+00 : f32
    %70 = vector.broadcast %cst_64 : f32 to vector<128x128xf32>
    %71 = arith.maximumf %69, %70 : vector<128x128xf32>
    %c0_65 = arith.constant 0 : index
    %c0_66 = arith.constant 0 : index
    %72 = vector.load %arg4[%c0_65, %c0_66] : memref<128x128xf32, #tpu.memory_space<vmem>>, vector<128x128xf32>
    tpu.vector_store %arg4[%c0_65, %c0_66], %71 {strides = array<i32>} : memref<128x128xf32, #tpu.memory_space<vmem>>, vector<128x128xf32>,
    return
  }
}

</mosaic_0001>

<llo_original>
// kernel: chebnet_forward.1
$region0: #{chebnet_forward.1}
  #allocation0 [shape = 'u32[]', space=smem, size = 0x4, offset = 0x4, fixed_abs, tag = 'smem constant byte address 0x4 - core index']
  #allocation1 [shape = 'u32[144,128]{1,0:T(1,128)}', space=vmem, size = 0x12000, scoped, tag = 'internal scratch']
  #allocation2 [shape = 'bf16[128,384]{1,0:T(8,128)(2,1)}', space=vmem, size = 0x18000, scoped, tag = 'scratch operand']
  %s0 = inlined_call_operand.vmem [shape: bf16[128,128], index: 0, kind: input, shape index: {}]
  %s1 = inlined_call_operand.vmem [shape: bf16[128,128], index: 1, kind: input, shape index: {}]
  %s2 = inlined_call_operand.hbm [shape: bf16[3,384,128], index: 2, kind: input, shape index: {}]
  %s3 = inlined_call_operand.vmem [shape: f32[3,1,128], index: 3, kind: input, shape index: {}]
  %s4 = inlined_call_operand.vmem [shape: f32[128,128], index: 4, kind: output, shape index: {}]
  %s5 = sld [smem:[#allocation0]]
  $region30: #{chebnet_forward.1} parent=0
    _
  %s7 = ssub.s32 1, %s5
  %s8 = scalar_select 0, %s7, %s5
  $region1: #{chebnet_forward.1} parent=0
    #allocation3 [shape = 'u8[294912]{0}', space=vmem, size = 0x48000, scoped, tag = 'input window, operand 2, single buffered']
    #allocation4 [shape = 's32[1]{0}', space=sflag, size = 0x4, scoped, tag = 'scoped memory for chebnet_forward.1']
    %9 = vsyncpa [#allocation4], 0
    // Predicated region
    $region2: #{chebnet_forward.1} parent=1 // pred_check
      _
    $region3: #{chebnet_forward.1} parent=1 // pred_check_branch
      %11 = sbr.rel (0) target = $region5
    $region4: #{chebnet_forward.1} parent=1 // pred_region
      _
    $region5: #{chebnet_forward.1} parent=1 // pred_fallthru
      _
    // Predicated region
    $region6: #{chebnet_forward.1} parent=1 // pred_check
      _
    $region7: #{chebnet_forward.1} parent=1 // pred_check_branch
      %13 = sbr.rel (0) target = $region9
    $region8: #{chebnet_forward.1} parent=1 // pred_region
      _
    $region9: #{chebnet_forward.1} parent=1 // pred_fallthru
      _
    // Predicated region
    $region10: #{chebnet_forward.1} parent=1 // pred_check
      _
    $region11: #{chebnet_forward.1} parent=1 // pred_check_branch
      %15 = sbr.rel (0) target = $region13
    $region12: #{chebnet_forward.1} parent=1 // pred_region
      %s17 = ssub.s32 9216, 9216
      %18 = vsyncadd [#allocation4], %s17
      %s19 = sshll.u32 [#allocation3], 4
      %s20 = int_to_ptr.vmem [resolvable:$true] %s19
      %25 = dma.hbm_to_vmem [thread:$0]  %s2, 9216, %s20, [#allocation4], 64, 64, 4
    $region13: #{chebnet_forward.1} parent=1 // pred_fallthru
      _
    // Predicated region
    $region14: #{chebnet_forward.1} parent=1 // pred_check
      _
    $region15: #{chebnet_forward.1} parent=1 // pred_check_branch
      %27 = sbr.rel (0) target = $region17
    $region16: #{chebnet_forward.1} parent=1 // pred_region
      _
    $region17: #{chebnet_forward.1} parent=1 // pred_fallthru
      _
    // Predicated region
    $region18: #{chebnet_forward.1} parent=1 // pred_check
      _
    $region19: #{chebnet_forward.1} parent=1 // pred_check_branch
      %29 = sbr.rel (0) target = $region21
    $region20: #{chebnet_forward.1} parent=1 // pred_region
      %30 = dma.done [#allocation4], 9216
    $region21: #{chebnet_forward.1} parent=1 // pred_fallthru
      _
    %v32 = vld [vmem:[%s1] sm:$0xf]
    %v33 = vld [vmem:[%s1 + $0x4] sm:$0xf]
    %v34 = vld [vmem:[%s1 + $0x8] sm:$0xf]
    %v35 = vld [vmem:[%s1 + $0xc] sm:$0xf]
    %v36 = vld [vmem:[%s1 + $0x10] sm:$0xf]
    %v37 = vld [vmem:[%s1 + $0x14] sm:$0xf]
    %v38 = vld [vmem:[%s1 + $0x18] sm:$0xf]
    %v39 = vld [vmem:[%s1 + $0x1c] sm:$0xf]
    %v40 = vld [vmem:[%s1 + $0x20] sm:$0xf]
    %v41 = vld [vmem:[%s1 + $0x24] sm:$0xf]
    %v42 = vld [vmem:[%s1 + $0x28] sm:$0xf]
    %v43 = vld [vmem:[%s1 + $0x2c] sm:$0xf]
    %v44 = vld [vmem:[%s1 + $0x30] sm:$0xf]
    %v45 = vld [vmem:[%s1 + $0x34] sm:$0xf]
    %v46 = vld [vmem:[%s1 + $0x38] sm:$0xf]
    %v47 = vld [vmem:[%s1 + $0x3c] sm:$0xf]
    %48 = vst [vmem:[#allocation2] sm:$0xf] %v32
    %49 = vst [vmem:[#allocation2 + $0xc] sm:$0xf] %v33
    %50 = vst [vmem:[#allocation2 + $0x18] sm:$0xf] %v34
    %51 = vst [vmem:[#allocation2 + $0x24] sm:$0xf] %v35
    %52 = vst [vmem:[#allocation2 + $0x30] sm:$0xf] %v36
    %53 = vst [vmem:[#allocation2 + $0x3c] sm:$0xf] %v37
    %54 = vst [vmem:[#allocation2 + $0x48] sm:$0xf] %v38
    %55 = vst [vmem:[#allocation2 + $0x54] sm:$0xf] %v39
    %56 = vst [vmem:[#allocation2 + $0x60] sm:$0xf] %v40
    %57 = vst [vmem:[#allocation2 + $0x6c] sm:$0xf] %v41
    %58 = vst [vmem:[#allocation2 + $0x78] sm:$0xf] %v42
    %59 = vst [vmem:[#allocation2 + $0x84] sm:$0xf] %v43
    %60 = vst [vmem:[#allocation2 + $0x90] sm:$0xf] %v44
    %61 = vst [vmem:[#allocation2 + $0x9c] sm:$0xf] %v45
    %62 = vst [vmem:[#allocation2 + $0xa8] sm:$0xf] %v46
    %63 = vst [vmem:[#allocation2 + $0xb4] sm:$0xf] %v47
    %v64 = vunpack.c.l.bf16 %v32
    %v65 = vunpack.c.l.bf16 %v33
    %v66 = vunpack.c.l.bf16 %v34
    %v67 = vunpack.c.l.bf16 %v35
    %v68 = vunpack.c.l.bf16 %v36
    %v69 = vunpack.c.l.bf16 %v37
    %v70 = vunpack.c.l.bf16 %v38
    %v71 = vunpack.c.l.bf16 %v39
    %v72 = vunpack.c.l.bf16 %v40
    %v73 = vunpack.c.l.bf16 %v41
    %v74 = vunpack.c.l.bf16 %v42
    %v75 = vunpack.c.l.bf16 %v43
    %v76 = vunpack.c.l.bf16 %v44
    %v77 = vunpack.c.l.bf16 %v45
    %v78 = vunpack.c.l.bf16 %v46
    %v79 = vunpack.c.l.bf16 %v47
    %v80 = vld [vmem:[%s0] sm:$0xf]
    %v81 = vld [vmem:[%s0 + $0x4] sm:$0xf]
    %v82 = vld [vmem:[%s0 + $0x8] sm:$0xf]
    %v83 = vld [vmem:[%s0 + $0xc] sm:$0xf]
    %v84 = vld [vmem:[%s0 + $0x10] sm:$0xf]
    %v85 = vld [vmem:[%s0 + $0x14] sm:$0xf]
    %v86 = vld [vmem:[%s0 + $0x18] sm:$0xf]
    %v87 = vld [vmem:[%s0 + $0x1c] sm:$0xf]
    %v88 = vld [vmem:[%s0 + $0x20] sm:$0xf]
    %v89 = vld [vmem:[%s0 + $0x24] sm:$0xf]
    %v90 = vld [vmem:[%s0 + $0x28] sm:$0xf]
    %v91 = vld [vmem:[%s0 + $0x2c] sm:$0xf]
    %v92 = vld [vmem:[%s0 + $0x30] sm:$0xf]
    %v93 = vld [vmem:[%s0 + $0x34] sm:$0xf]
    %v94 = vld [vmem:[%s0 + $0x38] sm:$0xf]
    %v95 = vld [vmem:[%s0 + $0x3c] sm:$0xf]
    %v112 = vunpack.c.l.b16 %v80
    %v113 = vunpack.c.l.b16 %v81
    %v114 = vunpack.c.l.b16 %v82
    %v115 = vunpack.c.l.b16 %v83
    %v116 = vunpack.c.l.b16 %v84
    %v117 = vunpack.c.l.b16 %v85
    %v118 = vunpack.c.l.b16 %v86
    %v119 = vunpack.c.l.b16 %v87
    %v120 = vunpack.c.l.b16 %v88
    %v121 = vunpack.c.l.b16 %v89
    %v122 = vunpack.c.l.b16 %v90
    %v123 = vunpack.c.l.b16 %v91
    %v124 = vunpack.c.l.b16 %v92
    %v125 = vunpack.c.l.b16 %v93
    %v126 = vunpack.c.l.b16 %v94
    %v127 = vunpack.c.l.b16 %v95
    %v128 = vpack.c.b16 %v113, %v112
    %v129 = vpack.c.b16 %v115, %v114
    %v130 = vpack.c.b16 %v117, %v116
    %v131 = vpack.c.b16 %v119, %v118
    %v132 = vpack.c.b16 %v121, %v120
    %v133 = vpack.c.b16 %v123, %v122
    %v134 = vpack.c.b16 %v125, %v124
    %v135 = vpack.c.b16 %v127, %v126
    %v160 = vunpack.c.l.b16 %v32
    %v161 = vunpack.c.l.b16 %v33
    %v162 = vunpack.c.l.b16 %v34
    %v163 = vunpack.c.l.b16 %v35
    %v164 = vunpack.c.l.b16 %v36
    %v165 = vunpack.c.l.b16 %v37
    %v166 = vunpack.c.l.b16 %v38
    %v167 = vunpack.c.l.b16 %v39
    %v168 = vunpack.c.l.b16 %v40
    %v169 = vunpack.c.l.b16 %v41
    %v170 = vunpack.c.l.b16 %v42
    %v171 = vunpack.c.l.b16 %v43
    %v172 = vunpack.c.l.b16 %v44
    %v173 = vunpack.c.l.b16 %v45
    %v174 = vunpack.c.l.b16 %v46
    %v175 = vunpack.c.l.b16 %v47
    %v176 = vpack.c.b16 %v161, %v160
    %v177 = vpack.c.b16 %v163, %v162
    %v178 = vpack.c.b16 %v165, %v164
    %v179 = vpack.c.b16 %v167, %v166
    %v180 = vpack.c.b16 %v169, %v168
    %v181 = vpack.c.b16 %v171, %v170
    %v182 = vpack.c.b16 %v173, %v172
    %v183 = vpack.c.b16 %v175, %v174
    %192 = vmatprep.subr.bf16.mxu0 0
    %193 = vmatpush1.bf16.msra.mxu0 %v183
    %194 = vmatprep.subr.bf16.mxu0 0
    %195 = vmatpush1.bf16.msra.mxu0 %v182
    %196 = vmatprep.subr.bf16.mxu0 0
    %197 = vmatpush1.bf16.msra.mxu0 %v181
    %198 = vmatprep.subr.bf16.mxu0 0
    %199 = vmatpush1.bf16.msra.mxu0 %v180
    %200 = vmatprep.subr.bf16.mxu0 0
    %201 = vmatpush1.bf16.msra.mxu0 %v179
    %202 = vmatprep.subr.bf16.mxu0 0
    %203 = vmatpush1.bf16.msra.mxu0 %v178
    %204 = vmatprep.subr.bf16.mxu0 0
    %205 = vmatpush1.bf16.msra.mxu0 %v177
    %206 = vmatprep.subr.bf16.mxu0 0
    %207 = vmatpush1.bf16.msra.mxu0 %v176
    %208 = vmatprep.subr.bf16.mxu0 0
    %209 = vmatpush2.bf16.msra.mxu0 0
    %210 = vmatprep.subr.bf16.mxu0 0
    %211 = vmatpush2.bf16.msra.mxu0 0
    %212 = vmatprep.subr.bf16.mxu0 0
    %213 = vmatpush2.bf16.msra.mxu0 0
    %214 = vmatprep.subr.bf16.mxu0 0
    %215 = vmatpush2.bf16.msra.mxu0 0
    %216 = vmatprep.subr.bf16.mxu0 0
    %217 = vmatpush2.bf16.msra.mxu0 0
    %218 = vmatprep.subr.bf16.mxu0 0
    %219 = vmatpush2.bf16.msra.mxu0 0
    %220 = vmatprep.subr.bf16.mxu0 0
    %221 = vmatpush2.bf16.msra.mxu0 0
    %222 = vmatprep.subr.bf16.mxu0 0
    %223 = vmatpush2.bf16.msra.mxu0 0
    %224 = vmatprep.mubr.bf16.mxu0 0
    %225 = vmatmul.mubr.bf16.gmra.mxu0 %v128
    %v226 = vpop.f32.mrf.mxu0
    %v227 = vadd.f32 0.0, %v226
    %v228 = vpop.f32.mrf.mxu0
    %v229 = vpop.f32.mrf.mxu0
    %v230 = vadd.f32 0.0, %v229
    %v231 = vpop.f32.mrf.mxu0
    %232 = vmatprep.mubr.bf16.mxu0 0
    %233 = vmatmul.mubr.bf16.gmra.mxu0 %v129
    %v234 = vpop.f32.mrf.mxu0
    %v235 = vadd.f32 0.0, %v234
    %v236 = vpop.f32.mrf.mxu0
    %v237 = vpop.f32.mrf.mxu0
    %v238 = vadd.f32 0.0, %v237
    %v239 = vpop.f32.mrf.mxu0
    %240 = vmatprep.mubr.bf16.mxu0 0
    %241 = vmatmul.mubr.bf16.gmra.mxu0 %v130
    %v242 = vpop.f32.mrf.mxu0
    %v243 = vadd.f32 0.0, %v242
    %v244 = vpop.f32.mrf.mxu0
    %v245 = vpop.f32.mrf.mxu0
    %v246 = vadd.f32 0.0, %v245
    %v247 = vpop.f32.mrf.mxu0
    %248 = vmatprep.mubr.bf16.mxu0 0
    %249 = vmatmul.mubr.bf16.gmra.mxu0 %v131
    %v250 = vpop.f32.mrf.mxu0
    %v251 = vadd.f32 0.0, %v250
    %v252 = vpop.f32.mrf.mxu0
    %v253 = vpop.f32.mrf.mxu0
    %v254 = vadd.f32 0.0, %v253
    %v255 = vpop.f32.mrf.mxu0
    %256 = vmatprep.mubr.bf16.mxu0 0
    %257 = vmatmul.mubr.bf16.gmra.mxu0 %v132
    %v258 = vpop.f32.mrf.mxu0
    %v259 = vadd.f32 0.0, %v258
    %v260 = vpop.f32.mrf.mxu0
    %v261 = vpop.f32.mrf.mxu0
    %v262 = vadd.f32 0.0, %v261
    %v263 = vpop.f32.mrf.mxu0
    %264 = vmatprep.mubr.bf16.mxu0 0
    %265 = vmatmul.mubr.bf16.gmra.mxu0 %v133
    %v266 = vpop.f32.mrf.mxu0
    %v267 = vadd.f32 0.0, %v266
    %v268 = vpop.f32.mrf.mxu0
    %v269 = vpop.f32.mrf.mxu0
    %v270 = vadd.f32 0.0, %v269
    %v271 = vpop.f32.mrf.mxu0
    %272 = vmatprep.mubr.bf16.mxu0 0
    %273 = vmatmul.mubr.bf16.gmra.mxu0 %v134
    %v274 = vpop.f32.mrf.mxu0
    %v275 = vadd.f32 0.0, %v274
    %v276 = vpop.f32.mrf.mxu0
    %v277 = vpop.f32.mrf.mxu0
    %v278 = vadd.f32 0.0, %v277
    %v279 = vpop.f32.mrf.mxu0
    %280 = vmatprep.mubr.bf16.mxu0 0
    %281 = vmatmul.mubr.bf16.gmra.mxu0 %v135
    %v282 = vpop.f32.mrf.mxu0
    %v283 = vadd.f32 0.0, %v282
    %v284 = vpop.f32.mrf.mxu0
    %v285 = vpop.f32.mrf.mxu0
    %v286 = vadd.f32 0.0, %v285
    %v287 = vpop.f32.mrf.mxu0
    %288 = vdwg.mxu0
    %v289 = vmul.f32 %v227, 0.5
    %v290 = vmul.f32 %v230, 0.5
    %v291 = vmul.f32 %v235, 0.5
    %v292 = vmul.f32 %v238, 0.5
    %v293 = vmul.f32 %v243, 0.5
    %v294 = vmul.f32 %v246, 0.5
    %v295 = vmul.f32 %v251, 0.5
    %v296 = vmul.f32 %v254, 0.5
    %v297 = vmul.f32 %v259, 0.5
    %v298 = vmul.f32 %v262, 0.5
    %v299 = vmul.f32 %v267, 0.5
    %v300 = vmul.f32 %v270, 0.5
    %v301 = vmul.f32 %v275, 0.5
    %v302 = vmul.f32 %v278, 0.5
    %v303 = vmul.f32 %v283, 0.5
    %v304 = vmul.f32 %v286, 0.5
    %v305 = vpack.c.bf16 %v290, %v289
    %v306 = vpack.c.bf16 %v292, %v291
    %v307 = vpack.c.bf16 %v294, %v293
    %v308 = vpack.c.bf16 %v296, %v295
    %v309 = vpack.c.bf16 %v298, %v297
    %v310 = vpack.c.bf16 %v300, %v299
    %v311 = vpack.c.bf16 %v302, %v301
    %v312 = vpack.c.bf16 %v304, %v303
    %v321 = vunpack.c.l.b16 %v305
    %v322 = vunpack.c.h.b16 %v305
    %v323 = vunpack.c.l.b16 %v306
    %v324 = vunpack.c.h.b16 %v306
    %v325 = vunpack.c.l.b16 %v307
    %v326 = vunpack.c.h.b16 %v307
    %v327 = vunpack.c.l.b16 %v308
    %v328 = vunpack.c.h.b16 %v308
    %v329 = vunpack.c.l.b16 %v309
    %v330 = vunpack.c.h.b16 %v309
    %v331 = vunpack.c.l.b16 %v310
    %v332 = vunpack.c.h.b16 %v310
    %v333 = vunpack.c.l.b16 %v311
    %v334 = vunpack.c.h.b16 %v311
    %v335 = vunpack.c.l.b16 %v312
    %v336 = vunpack.c.h.b16 %v312
    %v337 = vpack.c.b16 %v321, %v321
    %v338 = vpack.c.b16 %v322, %v322
    %v339 = vpack.c.b16 %v323, %v323
    %v340 = vpack.c.b16 %v324, %v324
    %v341 = vpack.c.b16 %v325, %v325
    %v342 = vpack.c.b16 %v326, %v326
    %v343 = vpack.c.b16 %v327, %v327
    %v344 = vpack.c.b16 %v328, %v328
    %v345 = vpack.c.b16 %v329, %v329
    %v346 = vpack.c.b16 %v330, %v330
    %v347 = vpack.c.b16 %v331, %v331
    %v348 = vpack.c.b16 %v332, %v332
    %v349 = vpack.c.b16 %v333, %v333
    %v350 = vpack.c.b16 %v334, %v334
    %v351 = vpack.c.b16 %v335, %v335
    %v352 = vpack.c.b16 %v336, %v336
    %369 = vst [vmem:[#allocation2 + $0x4] sm:$0xf] %v337
    %370 = vst [vmem:[#allocation2 + $0x10] sm:$0xf] %v338
    %371 = vst [vmem:[#allocation2 + $0x1c] sm:$0xf] %v339
    %372 = vst [vmem:[#allocation2 + $0x28] sm:$0xf] %v340
    %373 = vst [vmem:[#allocation2 + $0x34] sm:$0xf] %v341
    %374 = vst [vmem:[#allocation2 + $0x40] sm:$0xf] %v342
    %375 = vst [vmem:[#allocation2 + $0x4c] sm:$0xf] %v343
    %376 = vst [vmem:[#allocation2 + $0x58] sm:$0xf] %v344
    %377 = vst [vmem:[#allocation2 + $0x64] sm:$0xf] %v345
    %378 = vst [vmem:[#allocation2 + $0x70] sm:$0xf] %v346
    %379 = vst [vmem:[#allocation2 + $0x7c] sm:$0xf] %v347
    %380 = vst [vmem:[#allocation2 + $0x88] sm:$0xf] %v348
    %381 = vst [vmem:[#allocation2 + $0x94] sm:$0xf] %v349
    %382 = vst [vmem:[#allocation2 + $0xa0] sm:$0xf] %v350
    %383 = vst [vmem:[#allocation2 + $0xac] sm:$0xf] %v351
    %384 = vst [vmem:[#allocation2 + $0xb8] sm:$0xf] %v352
    %v385 = vld [vmem:[%s0] sm:$0xf]
    %v386 = vld [vmem:[%s0 + $0x4] sm:$0xf]
    %v387 = vld [vmem:[%s0 + $0x8] sm:$0xf]
    %v388 = vld [vmem:[%s0 + $0xc] sm:$0xf]
    %v389 = vld [vmem:[%s0 + $0x10] sm:$0xf]
    %v390 = vld [vmem:[%s0 + $0x14] sm:$0xf]
    %v391 = vld [vmem:[%s0 + $0x18] sm:$0xf]
    %v392 = vld [vmem:[%s0 + $0x1c] sm:$0xf]
    %v393 = vld [vmem:[%s0 + $0x20] sm:$0xf]
    %v394 = vld [vmem:[%s0 + $0x24] sm:$0xf]
    %v395 = vld [vmem:[%s0 + $0x28] sm:$0xf]
    %v396 = vld [vmem:[%s0 + $0x2c] sm:$0xf]
    %v397 = vld [vmem:[%s0 + $0x30] sm:$0xf]
    %v398 = vld [vmem:[%s0 + $0x34] sm:$0xf]
    %v399 = vld [vmem:[%s0 + $0x38] sm:$0xf]
    %v400 = vld [vmem:[%s0 + $0x3c] sm:$0xf]
    %v417 = vunpack.c.l.b16 %v385
    %v418 = vunpack.c.l.b16 %v386
    %v419 = vunpack.c.l.b16 %v387
    %v420 = vunpack.c.l.b16 %v388
    %v421 = vunpack.c.l.b16 %v389
    %v422 = vunpack.c.l.b16 %v390
    %v423 = vunpack.c.l.b16 %v391
    %v424 = vunpack.c.l.b16 %v392
    %v425 = vunpack.c.l.b16 %v393
    %v426 = vunpack.c.l.b16 %v394
    %v427 = vunpack.c.l.b16 %v395
    %v428 = vunpack.c.l.b16 %v396
    %v429 = vunpack.c.l.b16 %v397
    %v430 = vunpack.c.l.b16 %v398
    %v431 = vunpack.c.l.b16 %v399
    %v432 = vunpack.c.l.b16 %v400
    %v433 = vpack.c.b16 %v418, %v417
    %v434 = vpack.c.b16 %v420, %v419
    %v435 = vpack.c.b16 %v422, %v421
    %v436 = vpack.c.b16 %v424, %v423
    %v437 = vpack.c.b16 %v426, %v425
    %v438 = vpack.c.b16 %v428, %v427
    %v439 = vpack.c.b16 %v430, %v429
    %v440 = vpack.c.b16 %v432, %v431
    %449 = vmatprep.subr.bf16.mxu0 0
    %450 = vmatpush1.bf16.msra.mxu0 %v312
    %451 = vmatprep.subr.bf16.mxu0 0
    %452 = vmatpush1.bf16.msra.mxu0 %v311
    %453 = vmatprep.subr.bf16.mxu0 0
    %454 = vmatpush1.bf16.msra.mxu0 %v310
    %455 = vmatprep.subr.bf16.mxu0 0
    %456 = vmatpush1.bf16.msra.mxu0 %v309
    %457 = vmatprep.subr.bf16.mxu0 0
    %458 = vmatpush1.bf16.msra.mxu0 %v308
    %459 = vmatprep.subr.bf16.mxu0 0
    %460 = vmatpush1.bf16.msra.mxu0 %v307
    %461 = vmatprep.subr.bf16.mxu0 0
    %462 = vmatpush1.bf16.msra.mxu0 %v306
    %463 = vmatprep.subr.bf16.mxu0 0
    %464 = vmatpush1.bf16.msra.mxu0 %v305
    %465 = vmatprep.subr.bf16.mxu0 0
    %466 = vmatpush2.bf16.msra.mxu0 0
    %467 = vmatprep.subr.bf16.mxu0 0
    %468 = vmatpush2.bf16.msra.mxu0 0
    %469 = vmatprep.subr.bf16.mxu0 0
    %470 = vmatpush2.bf16.msra.mxu0 0
    %471 = vmatprep.subr.bf16.mxu0 0
    %472 = vmatpush2.bf16.msra.mxu0 0
    %473 = vmatprep.subr.bf16.mxu0 0
    %474 = vmatpush2.bf16.msra.mxu0 0
    %475 = vmatprep.subr.bf16.mxu0 0
    %476 = vmatpush2.bf16.msra.mxu0 0
    %477 = vmatprep.subr.bf16.mxu0 0
    %478 = vmatpush2.bf16.msra.mxu0 0
    %479 = vmatprep.subr.bf16.mxu0 0
    %480 = vmatpush2.bf16.msra.mxu0 0
    %481 = vmatprep.mubr.bf16.mxu0 0
    %482 = vmatmul.mubr.bf16.gmra.mxu0 %v433
    %v483 = vpop.f32.mrf.mxu0
    %v484 = vadd.f32 0.0, %v483
    %v485 = vpop.f32.mrf.mxu0
    %v486 = vpop.f32.mrf.mxu0
    %v487 = vadd.f32 0.0, %v486
    %v488 = vpop.f32.mrf.mxu0
    %489 = vmatprep.mubr.bf16.mxu0 0
    %490 = vmatmul.mubr.bf16.gmra.mxu0 %v434
    %v491 = vpop.f32.mrf.mxu0
    %v492 = vadd.f32 0.0, %v491
    %v493 = vpop.f32.mrf.mxu0
    %v494 = vpop.f32.mrf.mxu0
    %v495 = vadd.f32 0.0, %v494
    %v496 = vpop.f32.mrf.mxu0
    %497 = vmatprep.mubr.bf16.mxu0 0
    %498 = vmatmul.mubr.bf16.gmra.mxu0 %v435
    %v499 = vpop.f32.mrf.mxu0
    %v500 = vadd.f32 0.0, %v499
    %v501 = vpop.f32.mrf.mxu0
    %v502 = vpop.f32.mrf.mxu0
    %v503 = vadd.f32 0.0, %v502
    %v504 = vpop.f32.mrf.mxu0
    %505 = vmatprep.mubr.bf16.mxu0 0
    %506 = vmatmul.mubr.bf16.gmra.mxu0 %v436
    %v507 = vpop.f32.mrf.mxu0
    %v508 = vadd.f32 0.0, %v507
    %v509 = vpop.f32.mrf.mxu0
    %v510 = vpop.f32.mrf.mxu0
    %v511 = vadd.f32 0.0, %v510
    %v512 = vpop.f32.mrf.mxu0
    %513 = vmatprep.mubr.bf16.mxu0 0
    %514 = vmatmul.mubr.bf16.gmra.mxu0 %v437
    %v515 = vpop.f32.mrf.mxu0
    %v516 = vadd.f32 0.0, %v515
    %v517 = vpop.f32.mrf.mxu0
    %v518 = vpop.f32.mrf.mxu0
    %v519 = vadd.f32 0.0, %v518
    %v520 = vpop.f32.mrf.mxu0
    %521 = vmatprep.mubr.bf16.mxu0 0
    %522 = vmatmul.mubr.bf16.gmra.mxu0 %v438
    %v523 = vpop.f32.mrf.mxu0
    %v524 = vadd.f32 0.0, %v523
    %v525 = vpop.f32.mrf.mxu0
    %v526 = vpop.f32.mrf.mxu0
    %v527 = vadd.f32 0.0, %v526
    %v528 = vpop.f32.mrf.mxu0
    %529 = vmatprep.mubr.bf16.mxu0 0
    %530 = vmatmul.mubr.bf16.gmra.mxu0 %v439
    %v531 = vpop.f32.mrf.mxu0
    %v532 = vadd.f32 0.0, %v531
    %v533 = vpop.f32.mrf.mxu0
    %v534 = vpop.f32.mrf.mxu0
    %v535 = vadd.f32 0.0, %v534
    %v536 = vpop.f32.mrf.mxu0
    %537 = vmatprep.mubr.bf16.mxu0 0
    %538 = vmatmul.mubr.bf16.gmra.mxu0 %v440
    %v539 = vpop.f32.mrf.mxu0
    %v540 = vadd.f32 0.0, %v539
    %v541 = vpop.f32.mrf.mxu0
    %v542 = vpop.f32.mrf.mxu0
    %v543 = vadd.f32 0.0, %v542
    %v544 = vpop.f32.mrf.mxu0
    %545 = vdwg.mxu0
    %v546 = vsub.f32 %v484, %v64
    %v547 = vsub.f32 %v487, %v65
    %v548 = vsub.f32 %v492, %v66
    %v549 = vsub.f32 %v495, %v67
    %v550 = vsub.f32 %v500, %v68
    %v551 = vsub.f32 %v503, %v69
    %v552 = vsub.f32 %v508, %v70
    %v553 = vsub.f32 %v511, %v71
    %v554 = vsub.f32 %v516, %v72
    %v555 = vsub.f32 %v519, %v73
    %v556 = vsub.f32 %v524, %v74
    %v557 = vsub.f32 %v527, %v75
    %v558 = vsub.f32 %v532, %v76
    %v559 = vsub.f32 %v535, %v77
    %v560 = vsub.f32 %v540, %v78
    %v561 = vsub.f32 %v543, %v79
    %v562 = vpack.c.bf16 %v547, %v546
    %v563 = vpack.c.bf16 %v549, %v548
    %v564 = vpack.c.bf16 %v551, %v550
    %v565 = vpack.c.bf16 %v553, %v552
    %v566 = vpack.c.bf16 %v555, %v554
    %v567 = vpack.c.bf16 %v557, %v556
    %v568 = vpack.c.bf16 %v559, %v558
    %v569 = vpack.c.bf16 %v561, %v560
    %v578 = vunpack.c.l.b16 %v562
    %v579 = vunpack.c.h.b16 %v562
    %v580 = vunpack.c.l.b16 %v563
    %v581 = vunpack.c.h.b16 %v563
    %v582 = vunpack.c.l.b16 %v564
    %v583 = vunpack.c.h.b16 %v564
    %v584 = vunpack.c.l.b16 %v565
    %v585 = vunpack.c.h.b16 %v565
    %v586 = vunpack.c.l.b16 %v566
    %v587 = vunpack.c.h.b16 %v566
    %v588 = vunpack.c.l.b16 %v567
    %v589 = vunpack.c.h.b16 %v567
    %v590 = vunpack.c.l.b16 %v568
    %v591 = vunpack.c.h.b16 %v568
    %v592 = vunpack.c.l.b16 %v569
    %v593 = vunpack.c.h.b16 %v569
    %v594 = vpack.c.b16 %v578, %v578
    %v595 = vpack.c.b16 %v579, %v579
    %v596 = vpack.c.b16 %v580, %v580
    %v597 = vpack.c.b16 %v581, %v581
    %v598 = vpack.c.b16 %v582, %v582
    %v599 = vpack.c.b16 %v583, %v583
    %v600 = vpack.c.b16 %v584, %v584
    %v601 = vpack.c.b16 %v585, %v585
    %v602 = vpack.c.b16 %v586, %v586
    %v603 = vpack.c.b16 %v587, %v587
    %v604 = vpack.c.b16 %v588, %v588
    %v605 = vpack.c.b16 %v589, %v589
    %v606 = vpack.c.b16 %v590, %v590
    %v607 = vpack.c.b16 %v591, %v591
    %v608 = vpack.c.b16 %v592, %v592
    %v609 = vpack.c.b16 %v593, %v593
    %626 = vst [vmem:[#allocation2 + $0x8] sm:$0xf] %v594
    %627 = vst [vmem:[#allocation2 + $0x14] sm:$0xf] %v595
    %628 = vst [vmem:[#allocation2 + $0x20] sm:$0xf] %v596
    %629 = vst [vmem:[#allocation2 + $0x2c] sm:$0xf] %v597
    %630 = vst [vmem:[#allocation2 + $0x38] sm:$0xf] %v598
    %631 = vst [vmem:[#allocation2 + $0x44] sm:$0xf] %v599
    %632 = vst [vmem:[#allocation2 + $0x50] sm:$0xf] %v600
    %633 = vst [vmem:[#allocation2 + $0x5c] sm:$0xf] %v601
    %634 = vst [vmem:[#allocation2 + $0x68] sm:$0xf] %v602
    %635 = vst [vmem:[#allocation2 + $0x74] sm:$0xf] %v603
    %636 = vst [vmem:[#allocation2 + $0x80] sm:$0xf] %v604
    %637 = vst [vmem:[#allocation2 + $0x8c] sm:$0xf] %v605
    %638 = vst [vmem:[#allocation2 + $0x98] sm:$0xf] %v606
    %639 = vst [vmem:[#allocation2 + $0xa4] sm:$0xf] %v607
    %640 = vst [vmem:[#allocation2 + $0xb0] sm:$0xf] %v608
    %641 = vst [vmem:[#allocation2 + $0xbc] sm:$0xf] %v609
    %v642 = vld [vmem:[#allocation2] sm:$0xff]
    %v643 = vld [vmem:[#allocation2 + $0x8] sm:$0xf]
    %v644 = vld [vmem:[#allocation2 + $0xc] sm:$0xff]
    %v645 = vld [vmem:[#allocation2 + $0x14] sm:$0xf]
    %v646 = vld [vmem:[#allocation2 + $0x18] sm:$0xff]
    %v647 = vld [vmem:[#allocation2 + $0x20] sm:$0xf]
    %v648 = vld [vmem:[#allocation2 + $0x24] sm:$0xff]
    %v649 = vld [vmem:[#allocation2 + $0x2c] sm:$0xf]
    %v650 = vld [vmem:[#allocation2 + $0x30] sm:$0xff]
    %v651 = vld [vmem:[#allocation2 + $0x38] sm:$0xf]
    %v652 = vld [vmem:[#allocation2 + $0x3c] sm:$0xff]
    %v653 = vld [vmem:[#allocation2 + $0x44] sm:$0xf]
    %v654 = vld [vmem:[#allocation2 + $0x48] sm:$0xff]
    %v655 = vld [vmem:[#allocation2 + $0x50] sm:$0xf]
    %v656 = vld [vmem:[#allocation2 + $0x54] sm:$0xff]
    %v657 = vld [vmem:[#allocation2 + $0x5c] sm:$0xf]
    %v658 = vld [vmem:[#allocation2 + $0x60] sm:$0xff]
    %v659 = vld [vmem:[#allocation2 + $0x68] sm:$0xf]
    %v660 = vld [vmem:[#allocation2 + $0x6c] sm:$0xff]
    %v661 = vld [vmem:[#allocation2 + $0x74] sm:$0xf]
    %v662 = vld [vmem:[#allocation2 + $0x78] sm:$0xff]
    %v663 = vld [vmem:[#allocation2 + $0x80] sm:$0xf]
    %v664 = vld [vmem:[#allocation2 + $0x84] sm:$0xff]
    %v665 = vld [vmem:[#allocation2 + $0x8c] sm:$0xf]
    %v666 = vld [vmem:[#allocation2 + $0x90] sm:$0xff]
    %v667 = vld [vmem:[#allocation2 + $0x98] sm:$0xf]
    %v668 = vld [vmem:[#allocation2 + $0x9c] sm:$0xff]
    %v669 = vld [vmem:[#allocation2 + $0xa4] sm:$0xf]
    %v670 = vld [vmem:[#allocation2 + $0xa8] sm:$0xff]
    %v671 = vld [vmem:[#allocation2 + $0xb0] sm:$0xf]
    %v672 = vld [vmem:[#allocation2 + $0xb4] sm:$0xff]
    %v673 = vld [vmem:[#allocation2 + $0xbc] sm:$0xf]
    %v674 = vld [vmem:[#allocation3] sm:$0xf]
    %v675 = vld [vmem:[#allocation3 + $0x4] sm:$0xf]
    %v676 = vld [vmem:[#allocation3 + $0x8] sm:$0xf]
    %v677 = vld [vmem:[#allocation3 + $0xc] sm:$0xf]
    %v678 = vld [vmem:[#allocation3 + $0x10] sm:$0xf]
    %v679 = vld [vmem:[#allocation3 + $0x14] sm:$0xf]
    %v680 = vld [vmem:[#allocation3 + $0x18] sm:$0xf]
    %v681 = vld [vmem:[#allocation3 + $0x1c] sm:$0xf]
    %v682 = vld [vmem:[#allocation3 + $0x20] sm:$0xf]
    %v683 = vld [vmem:[#allocation3 + $0x24] sm:$0xf]
    %v684 = vld [vmem:[#allocation3 + $0x28] sm:$0xf]
    %v685 = vld [vmem:[#allocation3 + $0x2c] sm:$0xf]
    %v686 = vld [vmem:[#allocation3 + $0x30] sm:$0xf]
    %v687 = vld [vmem:[#allocation3 + $0x34] sm:$0xf]
    %v688 = vld [vmem:[#allocation3 + $0x38] sm:$0xf]
    %v689 = vld [vmem:[#allocation3 + $0x3c] sm:$0xf]
    %v690 = vld [vmem:[#allocation3 + $0x40] sm:$0xf]
    %v691 = vld [vmem:[#allocation3 + $0x44] sm:$0xf]
    %v692 = vld [vmem:[#allocation3 + $0x48] sm:$0xf]
    %v693 = vld [vmem:[#allocation3 + $0x4c] sm:$0xf]
    %v694 = vld [vmem:[#allocation3 + $0x50] sm:$0xf]
    %v695 = vld [vmem:[#allocation3 + $0x54] sm:$0xf]
    %v696 = vld [vmem:[#allocation3 + $0x58] sm:$0xf]
    %v697 = vld [vmem:[#allocation3 + $0x5c] sm:$0xf]
    %v698 = vld [vmem:[#allocation3 + $0x60] sm:$0xf]
    %v699 = vld [vmem:[#allocation3 + $0x64] sm:$0xf]
    %v700 = vld [vmem:[#allocation3 + $0x68] sm:$0xf]
    %v701 = vld [vmem:[#allocation3 + $0x6c] sm:$0xf]
    %v702 = vld [vmem:[#allocation3 + $0x70] sm:$0xf]
    %v703 = vld [vmem:[#allocation3 + $0x74] sm:$0xf]
    %v704 = vld [vmem:[#allocation3 + $0x78] sm:$0xf]
    %v705 = vld [vmem:[#allocation3 + $0x7c] sm:$0xf]
    %v706 = vld [vmem:[#allocation3 + $0x80] sm:$0xf]
    %v707 = vld [vmem:[#allocation3 + $0x84] sm:$0xf]
    %v708 = vld [vmem:[#allocation3 + $0x88] sm:$0xf]
    %v709 = vld [vmem:[#allocation3 + $0x8c] sm:$0xf]
    %v710 = vld [vmem:[#allocation3 + $0x90] sm:$0xf]
    %v711 = vld [vmem:[#allocation3 + $0x94] sm:$0xf]
    %v712 = vld [vmem:[#allocation3 + $0x98] sm:$0xf]
    %v713 = vld [vmem:[#allocation3 + $0x9c] sm:$0xf]
    %v714 = vld [vmem:[#allocation3 + $0xa0] sm:$0xf]
    %v715 = vld [vmem:[#allocation3 + $0xa4] sm:$0xf]
    %v716 = vld [vmem:[#allocation3 + $0xa8] sm:$0xf]
    %v717 = vld [vmem:[#allocation3 + $0xac] sm:$0xf]
    %v718 = vld [vmem:[#allocation3 + $0xb0] sm:$0xf]
    %v719 = vld [vmem:[#allocation3 + $0xb4] sm:$0xf]
    %v720 = vld [vmem:[#allocation3 + $0xb8] sm:$0xf]
    %v721 = vld [vmem:[#allocation3 + $0xbc] sm:$0xf]
    %v722 = vld [vmem:[%s3] sm:$0x1]
    %v724 = vlaneseq
    %v725 = vshrl.u32 %v724, 7
    %v726 = vsub.s32 0, %v725
    %v727 = vrot.slane %v722, %v726
    %v761 = vunpack.c.l.b16 %v642
    %v762 = vunpack.c.h.b16 %v642
    %v763 = vunpack.c.l.b16 %v643
    %v764 = vunpack.c.l.b16 %v644
    %v765 = vunpack.c.h.b16 %v644
    %v766 = vunpack.c.l.b16 %v645
    %v767 = vunpack.c.l.b16 %v646
    %v768 = vunpack.c.h.b16 %v646
    %v769 = vunpack.c.l.b16 %v647
    %v770 = vunpack.c.l.b16 %v648
    %v771 = vunpack.c.h.b16 %v648
    %v772 = vunpack.c.l.b16 %v649
    %v773 = vunpack.c.l.b16 %v650
    %v774 = vunpack.c.h.b16 %v650
    %v775 = vunpack.c.l.b16 %v651
    %v776 = vunpack.c.l.b16 %v652
    %v777 = vunpack.c.h.b16 %v652
    %v778 = vunpack.c.l.b16 %v653
    %v779 = vunpack.c.l.b16 %v654
    %v780 = vunpack.c.h.b16 %v654
    %v781 = vunpack.c.l.b16 %v655
    %v782 = vunpack.c.l.b16 %v656
    %v783 = vunpack.c.h.b16 %v656
    %v784 = vunpack.c.l.b16 %v657
    %v785 = vunpack.c.l.b16 %v658
    %v786 = vunpack.c.h.b16 %v658
    %v787 = vunpack.c.l.b16 %v659
    %v788 = vunpack.c.l.b16 %v660
    %v789 = vunpack.c.h.b16 %v660
    %v790 = vunpack.c.l.b16 %v661
    %v791 = vunpack.c.l.b16 %v662
    %v792 = vunpack.c.h.b16 %v662
    %v793 = vunpack.c.l.b16 %v663
    %v794 = vunpack.c.l.b16 %v664
    %v795 = vunpack.c.h.b16 %v664
    %v796 = vunpack.c.l.b16 %v665
    %v797 = vunpack.c.l.b16 %v666
    %v798 = vunpack.c.h.b16 %v666
    %v799 = vunpack.c.l.b16 %v667
    %v800 = vunpack.c.l.b16 %v668
    %v801 = vunpack.c.h.b16 %v668
    %v802 = vunpack.c.l.b16 %v669
    %v803 = vunpack.c.l.b16 %v670
    %v804 = vunpack.c.h.b16 %v670
    %v805 = vunpack.c.l.b16 %v671
    %v806 = vunpack.c.l.b16 %v672
    %v807 = vunpack.c.h.b16 %v672
    %v808 = vunpack.c.l.b16 %v673
    %v809 = vpack.c.b16 %v764, %v761
    %v810 = vpack.c.b16 %v765, %v762
    %v811 = vpack.c.b16 %v766, %v763
    %v812 = vpack.c.b16 %v770, %v767
    %v813 = vpack.c.b16 %v771, %v768
    %v814 = vpack.c.b16 %v772, %v769
    %v815 = vpack.c.b16 %v776, %v773
    %v816 = vpack.c.b16 %v777, %v774
    %v817 = vpack.c.b16 %v778, %v775
    %v818 = vpack.c.b16 %v782, %v779
    %v819 = vpack.c.b16 %v783, %v780
    %v820 = vpack.c.b16 %v784, %v781
    %v821 = vpack.c.b16 %v788, %v785
    %v822 = vpack.c.b16 %v789, %v786
    %v823 = vpack.c.b16 %v790, %v787
    %v824 = vpack.c.b16 %v794, %v791
    %v825 = vpack.c.b16 %v795, %v792
    %v826 = vpack.c.b16 %v796, %v793
    %v827 = vpack.c.b16 %v800, %v797
    %v828 = vpack.c.b16 %v801, %v798
    %v829 = vpack.c.b16 %v802, %v799
    %v830 = vpack.c.b16 %v806, %v803
    %v831 = vpack.c.b16 %v807, %v804
    %v832 = vpack.c.b16 %v808, %v805
    %v905 = vunpack.c.l.b16 %v674
    %v906 = vunpack.c.l.b16 %v675
    %v907 = vunpack.c.l.b16 %v676
    %v908 = vunpack.c.l.b16 %v677
    %v909 = vunpack.c.l.b16 %v678
    %v910 = vunpack.c.l.b16 %v679
    %v911 = vunpack.c.l.b16 %v680
    %v912 = vunpack.c.l.b16 %v681
    %v913 = vunpack.c.l.b16 %v682
    %v914 = vunpack.c.l.b16 %v683
    %v915 = vunpack.c.l.b16 %v684
    %v916 = vunpack.c.l.b16 %v685
    %v917 = vunpack.c.l.b16 %v686
    %v918 = vunpack.c.l.b16 %v687
    %v919 = vunpack.c.l.b16 %v688
    %v920 = vunpack.c.l.b16 %v689
    %v921 = vunpack.c.l.b16 %v690
    %v922 = vunpack.c.l.b16 %v691
    %v923 = vunpack.c.l.b16 %v692
    %v924 = vunpack.c.l.b16 %v693
    %v925 = vunpack.c.l.b16 %v694
    %v926 = vunpack.c.l.b16 %v695
    %v927 = vunpack.c.l.b16 %v696
    %v928 = vunpack.c.l.b16 %v697
    %v929 = vunpack.c.l.b16 %v698
    %v930 = vunpack.c.l.b16 %v699
    %v931 = vunpack.c.l.b16 %v700
    %v932 = vunpack.c.l.b16 %v701
    %v933 = vunpack.c.l.b16 %v702
    %v934 = vunpack.c.l.b16 %v703
    %v935 = vunpack.c.l.b16 %v704
    %v936 = vunpack.c.l.b16 %v705
    %v937 = vunpack.c.l.b16 %v706
    %v938 = vunpack.c.l.b16 %v707
    %v939 = vunpack.c.l.b16 %v708
    %v940 = vunpack.c.l.b16 %v709
    %v941 = vunpack.c.l.b16 %v710
    %v942 = vunpack.c.l.b16 %v711
    %v943 = vunpack.c.l.b16 %v712
    %v944 = vunpack.c.l.b16 %v713
    %v945 = vunpack.c.l.b16 %v714
    %v946 = vunpack.c.l.b16 %v715
    %v947 = vunpack.c.l.b16 %v716
    %v948 = vunpack.c.l.b16 %v717
    %v949 = vunpack.c.l.b16 %v718
    %v950 = vunpack.c.l.b16 %v719
    %v951 = vunpack.c.l.b16 %v720
    %v952 = vunpack.c.l.b16 %v721
    %v953 = vpack.c.b16 %v906, %v905
    %v954 = vpack.c.b16 %v908, %v907
    %v955 = vpack.c.b16 %v910, %v909
    %v956 = vpack.c.b16 %v912, %v911
    %v957 = vpack.c.b16 %v914, %v913
    %v958 = vpack.c.b16 %v916, %v915
    %v959 = vpack.c.b16 %v918, %v917
    %v960 = vpack.c.b16 %v920, %v919
    %v961 = vpack.c.b16 %v922, %v921
    %v962 = vpack.c.b16 %v924, %v923
    %v963 = vpack.c.b16 %v926, %v925
    %v964 = vpack.c.b16 %v928, %v927
    %v965 = vpack.c.b16 %v930, %v929
    %v966 = vpack.c.b16 %v932, %v931
    %v967 = vpack.c.b16 %v934, %v933
    %v968 = vpack.c.b16 %v936, %v935
    %v969 = vpack.c.b16 %v938, %v937
    %v970 = vpack.c.b16 %v940, %v939
    %v971 = vpack.c.b16 %v942, %v941
    %v972 = vpack.c.b16 %v944, %v943
    %v973 = vpack.c.b16 %v946, %v945
    %v974 = vpack.c.b16 %v948, %v947
    %v975 = vpack.c.b16 %v950, %v949
    %v976 = vpack.c.b16 %v952, %v951
    %1001 = vmatprep.subr.bf16.mxu0 0
    %1002 = vmatpush1.bf16.msra.mxu0 %v960
    %1003 = vmatprep.subr.bf16.mxu0 0
    %1004 = vmatpush1.bf16.msra.mxu0 %v959
    %1005 = vmatprep.subr.bf16.mxu0 0
    %1006 = vmatpush1.bf16.msra.mxu0 %v958
    %1007 = vmatprep.subr.bf16.mxu0 0
    %1008 = vmatpush1.bf16.msra.mxu0 %v957
    %1009 = vmatprep.subr.bf16.mxu0 0
    %1010 = vmatpush1.bf16.msra.mxu0 %v956
    %1011 = vmatprep.subr.bf16.mxu0 0
    %1012 = vmatpush1.bf16.msra.mxu0 %v955
    %1013 = vmatprep.subr.bf16.mxu0 0
    %1014 = vmatpush1.bf16.msra.mxu0 %v954
    %1015 = vmatprep.subr.bf16.mxu0 0
    %1016 = vmatpush1.bf16.msra.mxu0 %v953
    %1017 = vmatprep.subr.bf16.mxu0 0
    %1018 = vmatpush2.bf16.msra.mxu0 %v968
    %1019 = vmatprep.subr.bf16.mxu0 0
    %1020 = vmatpush2.bf16.msra.mxu0 %v967
    %1021 = vmatprep.subr.bf16.mxu0 0
    %1022 = vmatpush2.bf16.msra.mxu0 %v966
    %1023 = vmatprep.subr.bf16.mxu0 0
    %1024 = vmatpush2.bf16.msra.mxu0 %v965
    %1025 = vmatprep.subr.bf16.mxu0 0
    %1026 = vmatpush2.bf16.msra.mxu0 %v964
    %1027 = vmatprep.subr.bf16.mxu0 0
    %1028 = vmatpush2.bf16.msra.mxu0 %v963
    %1029 = vmatprep.subr.bf16.mxu0 0
    %1030 = vmatpush2.bf16.msra.mxu0 %v962
    %1031 = vmatprep.subr.bf16.mxu0 0
    %1032 = vmatpush2.bf16.msra.mxu0 %v961
    %1033 = vmatprep.mubr.bf16.mxu0 %v810
    %1034 = vmatmul.mubr.bf16.gmra.mxu0 %v809
    %v1035 = vpop.f32.mrf.mxu0
    %v1036 = vadd.f32 %v727, %v1035
    %v1037 = vpop.f32.mrf.mxu0
    %v1038 = vpop.f32.mrf.mxu0
    %v1039 = vadd.f32 %v727, %v1038
    %v1040 = vpop.f32.mrf.mxu0
    %1041 = vmatprep.mubr.bf16.mxu0 %v813
    %1042 = vmatmul.mubr.bf16.gmra.mxu0 %v812
    %v1043 = vpop.f32.mrf.mxu0
    %v1044 = vadd.f32 %v727, %v1043
    %v1045 = vpop.f32.mrf.mxu0
    %v1046 = vpop.f32.mrf.mxu0
    %v1047 = vadd.f32 %v727, %v1046
    %v1048 = vpop.f32.mrf.mxu0
    %1049 = vmatprep.mubr.bf16.mxu0 %v816
    %1050 = vmatmul.mubr.bf16.gmra.mxu0 %v815
    %v1051 = vpop.f32.mrf.mxu0
    %v1052 = vadd.f32 %v727, %v1051
    %v1053 = vpop.f32.mrf.mxu0
    %v1054 = vpop.f32.mrf.mxu0
    %v1055 = vadd.f32 %v727, %v1054
    %v1056 = vpop.f32.mrf.mxu0
    %1057 = vmatprep.mubr.bf16.mxu0 %v819
    %1058 = vmatmul.mubr.bf16.gmra.mxu0 %v818
    %v1059 = vpop.f32.mrf.mxu0
    %v1060 = vadd.f32 %v727, %v1059
    %v1061 = vpop.f32.mrf.mxu0
    %v1062 = vpop.f32.mrf.mxu0
    %v1063 = vadd.f32 %v727, %v1062
    %v1064 = vpop.f32.mrf.mxu0
    %1065 = vmatprep.mubr.bf16.mxu0 %v822
    %1066 = vmatmul.mubr.bf16.gmra.mxu0 %v821
    %v1067 = vpop.f32.mrf.mxu0
    %v1068 = vadd.f32 %v727, %v1067
    %v1069 = vpop.f32.mrf.mxu0
    %v1070 = vpop.f32.mrf.mxu0
    %v1071 = vadd.f32 %v727, %v1070
    %v1072 = vpop.f32.mrf.mxu0
    %1073 = vmatprep.mubr.bf16.mxu0 %v825
    %1074 = vmatmul.mubr.bf16.gmra.mxu0 %v824
    %v1075 = vpop.f32.mrf.mxu0
    %v1076 = vadd.f32 %v727, %v1075
    %v1077 = vpop.f32.mrf.mxu0
    %v1078 = vpop.f32.mrf.mxu0
    %v1079 = vadd.f32 %v727, %v1078
    %v1080 = vpop.f32.mrf.mxu0
    %1081 = vmatprep.mubr.bf16.mxu0 %v828
    %1082 = vmatmul.mubr.bf16.gmra.mxu0 %v827
    %v1083 = vpop.f32.mrf.mxu0
    %v1084 = vadd.f32 %v727, %v1083
    %v1085 = vpop.f32.mrf.mxu0
    %v1086 = vpop.f32.mrf.mxu0
    %v1087 = vadd.f32 %v727, %v1086
    %v1088 = vpop.f32.mrf.mxu0
    %1089 = vmatprep.mubr.bf16.mxu0 %v831
    %1090 = vmatmul.mubr.bf16.gmra.mxu0 %v830
    %v1091 = vpop.f32.mrf.mxu0
    %v1092 = vadd.f32 %v727, %v1091
    %v1093 = vpop.f32.mrf.mxu0
    %v1094 = vpop.f32.mrf.mxu0
    %v1095 = vadd.f32 %v727, %v1094
    %v1096 = vpop.f32.mrf.mxu0
    %1097 = vdwg.mxu0
    %1098 = vmatprep.subr.bf16.mxu0 0
    %1099 = vmatpush1.bf16.msra.mxu0 %v976
    %1100 = vmatprep.subr.bf16.mxu0 0
    %1101 = vmatpush1.bf16.msra.mxu0 %v975
    %1102 = vmatprep.subr.bf16.mxu0 0
    %1103 = vmatpush1.bf16.msra.mxu0 %v974
    %1104 = vmatprep.subr.bf16.mxu0 0
    %1105 = vmatpush1.bf16.msra.mxu0 %v973
    %1106 = vmatprep.subr.bf16.mxu0 0
    %1107 = vmatpush1.bf16.msra.mxu0 %v972
    %1108 = vmatprep.subr.bf16.mxu0 0
    %1109 = vmatpush1.bf16.msra.mxu0 %v971
    %1110 = vmatprep.subr.bf16.mxu0 0
    %1111 = vmatpush1.bf16.msra.mxu0 %v970
    %1112 = vmatprep.subr.bf16.mxu0 0
    %1113 = vmatpush1.bf16.msra.mxu0 %v969
    %1114 = vmatprep.subr.bf16.mxu0 0
    %1115 = vmatpush2.bf16.msra.mxu0 0
    %1116 = vmatprep.subr.bf16.mxu0 0
    %1117 = vmatpush2.bf16.msra.mxu0 0
    %1118 = vmatprep.subr.bf16.mxu0 0
    %1119 = vmatpush2.bf16.msra.mxu0 0
    %1120 = vmatprep.subr.bf16.mxu0 0
    %1121 = vmatpush2.bf16.msra.mxu0 0
    %1122 = vmatprep.subr.bf16.mxu0 0
    %1123 = vmatpush2.bf16.msra.mxu0 0
    %1124 = vmatprep.subr.bf16.mxu0 0
    %1125 = vmatpush2.bf16.msra.mxu0 0
    %1126 = vmatprep.subr.bf16.mxu0 0
    %1127 = vmatpush2.bf16.msra.mxu0 0
    %1128 = vmatprep.subr.bf16.mxu0 0
    %1129 = vmatpush2.bf16.msra.mxu0 0
    %1130 = vmatprep.mubr.bf16.mxu0 0
    %1131 = vmatmul.mubr.bf16.gmra.mxu0 %v811
    %v1132 = vpop.f32.mrf.mxu0
    %v1133 = vadd.f32 %v1036, %v1132
    %v1134 = vpop.f32.mrf.mxu0
    %v1135 = vpop.f32.mrf.mxu0
    %v1136 = vadd.f32 %v1039, %v1135
    %v1137 = vpop.f32.mrf.mxu0
    %1138 = vmatprep.mubr.bf16.mxu0 0
    %1139 = vmatmul.mubr.bf16.gmra.mxu0 %v814
    %v1140 = vpop.f32.mrf.mxu0
    %v1141 = vadd.f32 %v1044, %v1140
    %v1142 = vpop.f32.mrf.mxu0
    %v1143 = vpop.f32.mrf.mxu0
    %v1144 = vadd.f32 %v1047, %v1143
    %v1145 = vpop.f32.mrf.mxu0
    %1146 = vmatprep.mubr.bf16.mxu0 0
    %1147 = vmatmul.mubr.bf16.gmra.mxu0 %v817
    %v1148 = vpop.f32.mrf.mxu0
    %v1149 = vadd.f32 %v1052, %v1148
    %v1150 = vpop.f32.mrf.mxu0
    %v1151 = vpop.f32.mrf.mxu0
    %v1152 = vadd.f32 %v1055, %v1151
    %v1153 = vpop.f32.mrf.mxu0
    %1154 = vmatprep.mubr.bf16.mxu0 0
    %1155 = vmatmul.mubr.bf16.gmra.mxu0 %v820
    %v1156 = vpop.f32.mrf.mxu0
    %v1157 = vadd.f32 %v1060, %v1156
    %v1158 = vpop.f32.mrf.mxu0
    %v1159 = vpop.f32.mrf.mxu0
    %v1160 = vadd.f32 %v1063, %v1159
    %v1161 = vpop.f32.mrf.mxu0
    %1162 = vmatprep.mubr.bf16.mxu0 0
    %1163 = vmatmul.mubr.bf16.gmra.mxu0 %v823
    %v1164 = vpop.f32.mrf.mxu0
    %v1165 = vadd.f32 %v1068, %v1164
    %v1166 = vpop.f32.mrf.mxu0
    %v1167 = vpop.f32.mrf.mxu0
    %v1168 = vadd.f32 %v1071, %v1167
    %v1169 = vpop.f32.mrf.mxu0
    %1170 = vmatprep.mubr.bf16.mxu0 0
    %1171 = vmatmul.mubr.bf16.gmra.mxu0 %v826
    %v1172 = vpop.f32.mrf.mxu0
    %v1173 = vadd.f32 %v1076, %v1172
    %v1174 = vpop.f32.mrf.mxu0
    %v1175 = vpop.f32.mrf.mxu0
    %v1176 = vadd.f32 %v1079, %v1175
    %v1177 = vpop.f32.mrf.mxu0
    %1178 = vmatprep.mubr.bf16.mxu0 0
    %1179 = vmatmul.mubr.bf16.gmra.mxu0 %v829
    %v1180 = vpop.f32.mrf.mxu0
    %v1181 = vadd.f32 %v1084, %v1180
    %v1182 = vpop.f32.mrf.mxu0
    %v1183 = vpop.f32.mrf.mxu0
    %v1184 = vadd.f32 %v1087, %v1183
    %v1185 = vpop.f32.mrf.mxu0
    %1186 = vmatprep.mubr.bf16.mxu0 0
    %1187 = vmatmul.mubr.bf16.gmra.mxu0 %v832
    %v1188 = vpop.f32.mrf.mxu0
    %v1189 = vadd.f32 %v1092, %v1188
    %v1190 = vpop.f32.mrf.mxu0
    %v1191 = vpop.f32.mrf.mxu0
    %v1192 = vadd.f32 %v1095, %v1191
    %v1193 = vpop.f32.mrf.mxu0
    %1194 = vdwg.mxu0
    %v1195 = vmax.f32 %v1133, 0.0
    %v1196 = vmax.f32 %v1136, 0.0
    %v1197 = vmax.f32 %v1141, 0.0
    %v1198 = vmax.f32 %v1144, 0.0
    %v1199 = vmax.f32 %v1149, 0.0
    %v1200 = vmax.f32 %v1152, 0.0
    %v1201 = vmax.f32 %v1157, 0.0
    %v1202 = vmax.f32 %v1160, 0.0
    %v1203 = vmax.f32 %v1165, 0.0
    %v1204 = vmax.f32 %v1168, 0.0
    %v1205 = vmax.f32 %v1173, 0.0
    %v1206 = vmax.f32 %v1176, 0.0
    %v1207 = vmax.f32 %v1181, 0.0
    %v1208 = vmax.f32 %v1184, 0.0
    %v1209 = vmax.f32 %v1189, 0.0
    %v1210 = vmax.f32 %v1192, 0.0
    %v1211 = vpack.c.bf16 %v1196, %v1195
    %v1212 = vpack.c.bf16 %v1198, %v1197
    %v1213 = vpack.c.bf16 %v1200, %v1199
    %v1214 = vpack.c.bf16 %v1202, %v1201
    %v1215 = vpack.c.bf16 %v1204, %v1203
    %v1216 = vpack.c.bf16 %v1206, %v1205
    %v1217 = vpack.c.bf16 %v1208, %v1207
    %v1218 = vpack.c.bf16 %v1210, %v1209
    %v1227 = vunpack.c.l.b16 %v1211
    %v1228 = vunpack.c.h.b16 %v1211
    %v1229 = vunpack.c.l.b16 %v1212
    %v1230 = vunpack.c.h.b16 %v1212
    %v1231 = vunpack.c.l.b16 %v1213
    %v1232 = vunpack.c.h.b16 %v1213
    %v1233 = vunpack.c.l.b16 %v1214
    %v1234 = vunpack.c.h.b16 %v1214
    %v1235 = vunpack.c.l.b16 %v1215
    %v1236 = vunpack.c.h.b16 %v1215
    %v1237 = vunpack.c.l.b16 %v1216
    %v1238 = vunpack.c.h.b16 %v1216
    %v1239 = vunpack.c.l.b16 %v1217
    %v1240 = vunpack.c.h.b16 %v1217
    %v1241 = vunpack.c.l.b16 %v1218
    %v1242 = vunpack.c.h.b16 %v1218
    %v1243 = vpack.c.b16 %v1227, %v1227
    %v1244 = vpack.c.b16 %v1228, %v1228
    %v1245 = vpack.c.b16 %v1229, %v1229
    %v1246 = vpack.c.b16 %v1230, %v1230
    %v1247 = vpack.c.b16 %v1231, %v1231
    %v1248 = vpack.c.b16 %v1232, %v1232
    %v1249 = vpack.c.b16 %v1233, %v1233
    %v1250 = vpack.c.b16 %v1234, %v1234
    %v1251 = vpack.c.b16 %v1235, %v1235
    %v1252 = vpack.c.b16 %v1236, %v1236
    %v1253 = vpack.c.b16 %v1237, %v1237
    %v1254 = vpack.c.b16 %v1238, %v1238
    %v1255 = vpack.c.b16 %v1239, %v1239
    %v1256 = vpack.c.b16 %v1240, %v1240
    %v1257 = vpack.c.b16 %v1241, %v1241
    %v1258 = vpack.c.b16 %v1242, %v1242
    %1275 = vst [vmem:[#allocation2] sm:$0xf] %v1243
    %1276 = vst [vmem:[#allocation2 + $0xc] sm:$0xf] %v1244
    %1277 = vst [vmem:[#allocation2 + $0x18] sm:$0xf] %v1245
    %1278 = vst [vmem:[#allocation2 + $0x24] sm:$0xf] %v1246
    %1279 = vst [vmem:[#allocation2 + $0x30] sm:$0xf] %v1247
    %1280 = vst [vmem:[#allocation2 + $0x3c] sm:$0xf] %v1248
    %1281 = vst [vmem:[#allocation2 + $0x48] sm:$0xf] %v1249
    %1282 = vst [vmem:[#allocation2 + $0x54] sm:$0xf] %v1250
    %1283 = vst [vmem:[#allocation2 + $0x60] sm:$0xf] %v1251
    %1284 = vst [vmem:[#allocation2 + $0x6c] sm:$0xf] %v1252
    %1285 = vst [vmem:[#allocation2 + $0x78] sm:$0xf] %v1253
    %1286 = vst [vmem:[#allocation2 + $0x84] sm:$0xf] %v1254
    %1287 = vst [vmem:[#allocation2 + $0x90] sm:$0xf] %v1255
    %1288 = vst [vmem:[#allocation2 + $0x9c] sm:$0xf] %v1256
    %1289 = vst [vmem:[#allocation2 + $0xa8] sm:$0xf] %v1257
    %1290 = vst [vmem:[#allocation2 + $0xb4] sm:$0xf] %v1258
    %v1291 = vunpack.c.l.bf16 %v1211
    %v1292 = vunpack.c.h.bf16 %v1211
    %v1293 = vunpack.c.l.bf16 %v1212
    %v1294 = vunpack.c.h.bf16 %v1212
    %v1295 = vunpack.c.l.bf16 %v1213
    %v1296 = vunpack.c.h.bf16 %v1213
    %v1297 = vunpack.c.l.bf16 %v1214
    %v1298 = vunpack.c.h.bf16 %v1214
    %v1299 = vunpack.c.l.bf16 %v1215
    %v1300 = vunpack.c.h.bf16 %v1215
    %v1301 = vunpack.c.l.bf16 %v1216
    %v1302 = vunpack.c.h.bf16 %v1216
    %v1303 = vunpack.c.l.bf16 %v1217
    %v1304 = vunpack.c.h.bf16 %v1217
    %v1305 = vunpack.c.l.bf16 %v1218
    %v1306 = vunpack.c.h.bf16 %v1218
    %v1307 = vld [vmem:[%s0] sm:$0xf]
    %v1308 = vld [vmem:[%s0 + $0x4] sm:$0xf]
    %v1309 = vld [vmem:[%s0 + $0x8] sm:$0xf]
    %v1310 = vld [vmem:[%s0 + $0xc] sm:$0xf]
    %v1311 = vld [vmem:[%s0 + $0x10] sm:$0xf]
    %v1312 = vld [vmem:[%s0 + $0x14] sm:$0xf]
    %v1313 = vld [vmem:[%s0 + $0x18] sm:$0xf]
    %v1314 = vld [vmem:[%s0 + $0x1c] sm:$0xf]
    %v1315 = vld [vmem:[%s0 + $0x20] sm:$0xf]
    %v1316 = vld [vmem:[%s0 + $0x24] sm:$0xf]
    %v1317 = vld [vmem:[%s0 + $0x28] sm:$0xf]
    %v1318 = vld [vmem:[%s0 + $0x2c] sm:$0xf]
    %v1319 = vld [vmem:[%s0 + $0x30] sm:$0xf]
    %v1320 = vld [vmem:[%s0 + $0x34] sm:$0xf]
    %v1321 = vld [vmem:[%s0 + $0x38] sm:$0xf]
    %v1322 = vld [vmem:[%s0 + $0x3c] sm:$0xf]
    %v1339 = vunpack.c.l.b16 %v1307
    %v1340 = vunpack.c.l.b16 %v1308
    %v1341 = vunpack.c.l.b16 %v1309
    %v1342 = vunpack.c.l.b16 %v1310
    %v1343 = vunpack.c.l.b16 %v1311
    %v1344 = vunpack.c.l.b16 %v1312
    %v1345 = vunpack.c.l.b16 %v1313
    %v1346 = vunpack.c.l.b16 %v1314
    %v1347 = vunpack.c.l.b16 %v1315
    %v1348 = vunpack.c.l.b16 %v1316
    %v1349 = vunpack.c.l.b16 %v1317
    %v1350 = vunpack.c.l.b16 %v1318
    %v1351 = vunpack.c.l.b16 %v1319
    %v1352 = vunpack.c.l.b16 %v1320
    %v1353 = vunpack.c.l.b16 %v1321
    %v1354 = vunpack.c.l.b16 %v1322
    %v1355 = vpack.c.b16 %v1340, %v1339
    %v1356 = vpack.c.b16 %v1342, %v1341
    %v1357 = vpack.c.b16 %v1344, %v1343
    %v1358 = vpack.c.b16 %v1346, %v1345
    %v1359 = vpack.c.b16 %v1348, %v1347
    %v1360 = vpack.c.b16 %v1350, %v1349
    %v1361 = vpack.c.b16 %v1352, %v1351
    %v1362 = vpack.c.b16 %v1354, %v1353
    %1371 = vmatprep.subr.bf16.mxu0 0
    %1372 = vmatpush1.bf16.msra.mxu0 %v1218
    %1373 = vmatprep.subr.bf16.mxu0 0
    %1374 = vmatpush1.bf16.msra.mxu0 %v1217
    %1375 = vmatprep.subr.bf16.mxu0 0
    %1376 = vmatpush1.bf16.msra.mxu0 %v1216
    %1377 = vmatprep.subr.bf16.mxu0 0
    %1378 = vmatpush1.bf16.msra.mxu0 %v1215
    %1379 = vmatprep.subr.bf16.mxu0 0
    %1380 = vmatpush1.bf16.msra.mxu0 %v1214
    %1381 = vmatprep.subr.bf16.mxu0 0
    %1382 = vmatpush1.bf16.msra.mxu0 %v1213
    %1383 = vmatprep.subr.bf16.mxu0 0
    %1384 = vmatpush1.bf16.msra.mxu0 %v1212
    %1385 = vmatprep.subr.bf16.mxu0 0
    %1386 = vmatpush1.bf16.msra.mxu0 %v1211
    %1387 = vmatprep.subr.bf16.mxu0 0
    %1388 = vmatpush2.bf16.msra.mxu0 0
    %1389 = vmatprep.subr.bf16.mxu0 0
    %1390 = vmatpush2.bf16.msra.mxu0 0
    %1391 = vmatprep.subr.bf16.mxu0 0
    %1392 = vmatpush2.bf16.msra.mxu0 0
    %1393 = vmatprep.subr.bf16.mxu0 0
    %1394 = vmatpush2.bf16.msra.mxu0 0
    %1395 = vmatprep.subr.bf16.mxu0 0
    %1396 = vmatpush2.bf16.msra.mxu0 0
    %1397 = vmatprep.subr.bf16.mxu0 0
    %1398 = vmatpush2.bf16.msra.mxu0 0
    %1399 = vmatprep.subr.bf16.mxu0 0
    %1400 = vmatpush2.bf16.msra.mxu0 0
    %1401 = vmatprep.subr.bf16.mxu0 0
    %1402 = vmatpush2.bf16.msra.mxu0 0
    %1403 = vmatprep.mubr.bf16.mxu0 0
    %1404 = vmatmul.mubr.bf16.gmra.mxu0 %v1355
    %v1405 = vpop.f32.mrf.mxu0
    %v1406 = vadd.f32 0.0, %v1405
    %v1407 = vpop.f32.mrf.mxu0
    %v1408 = vpop.f32.mrf.mxu0
    %v1409 = vadd.f32 0.0, %v1408
    %v1410 = vpop.f32.mrf.mxu0
    %1411 = vmatprep.mubr.bf16.mxu0 0
    %1412 = vmatmul.mubr.bf16.gmra.mxu0 %v1356
    %v1413 = vpop.f32.mrf.mxu0
    %v1414 = vadd.f32 0.0, %v1413
    %v1415 = vpop.f32.mrf.mxu0
    %v1416 = vpop.f32.mrf.mxu0
    %v1417 = vadd.f32 0.0, %v1416
    %v1418 = vpop.f32.mrf.mxu0
    %1419 = vmatprep.mubr.bf16.mxu0 0
    %1420 = vmatmul.mubr.bf16.gmra.mxu0 %v1357
    %v1421 = vpop.f32.mrf.mxu0
    %v1422 = vadd.f32 0.0, %v1421
    %v1423 = vpop.f32.mrf.mxu0
    %v1424 = vpop.f32.mrf.mxu0
    %v1425 = vadd.f32 0.0, %v1424
    %v1426 = vpop.f32.mrf.mxu0
    %1427 = vmatprep.mubr.bf16.mxu0 0
    %1428 = vmatmul.mubr.bf16.gmra.mxu0 %v1358
    %v1429 = vpop.f32.mrf.mxu0
    %v1430 = vadd.f32 0.0, %v1429
    %v1431 = vpop.f32.mrf.mxu0
    %v1432 = vpop.f32.mrf.mxu0
    %v1433 = vadd.f32 0.0, %v1432
    %v1434 = vpop.f32.mrf.mxu0
    %1435 = vmatprep.mubr.bf16.mxu0 0
    %1436 = vmatmul.mubr.bf16.gmra.mxu0 %v1359
    %v1437 = vpop.f32.mrf.mxu0
    %v1438 = vadd.f32 0.0, %v1437
    %v1439 = vpop.f32.mrf.mxu0
    %v1440 = vpop.f32.mrf.mxu0
    %v1441 = vadd.f32 0.0, %v1440
    %v1442 = vpop.f32.mrf.mxu0
    %1443 = vmatprep.mubr.bf16.mxu0 0
    %1444 = vmatmul.mubr.bf16.gmra.mxu0 %v1360
    %v1445 = vpop.f32.mrf.mxu0
    %v1446 = vadd.f32 0.0, %v1445
    %v1447 = vpop.f32.mrf.mxu0
    %v1448 = vpop.f32.mrf.mxu0
    %v1449 = vadd.f32 0.0, %v1448
    %v1450 = vpop.f32.mrf.mxu0
    %1451 = vmatprep.mubr.bf16.mxu0 0
    %1452 = vmatmul.mubr.bf16.gmra.mxu0 %v1361
    %v1453 = vpop.f32.mrf.mxu0
    %v1454 = vadd.f32 0.0, %v1453
    %v1455 = vpop.f32.mrf.mxu0
    %v1456 = vpop.f32.mrf.mxu0
    %v1457 = vadd.f32 0.0, %v1456
    %v1458 = vpop.f32.mrf.mxu0
    %1459 = vmatprep.mubr.bf16.mxu0 0
    %1460 = vmatmul.mubr.bf16.gmra.mxu0 %v1362
    %v1461 = vpop.f32.mrf.mxu0
    %v1462 = vadd.f32 0.0, %v1461
    %v1463 = vpop.f32.mrf.mxu0
    %v1464 = vpop.f32.mrf.mxu0
    %v1465 = vadd.f32 0.0, %v1464
    %v1466 = vpop.f32.mrf.mxu0
    %1467 = vdwg.mxu0
    %v1468 = vmul.f32 %v1406, 0.5
    %v1469 = vmul.f32 %v1409, 0.5
    %v1470 = vmul.f32 %v1414, 0.5
    %v1471 = vmul.f32 %v1417, 0.5
    %v1472 = vmul.f32 %v1422, 0.5
    %v1473 = vmul.f32 %v1425, 0.5
    %v1474 = vmul.f32 %v1430, 0.5
    %v1475 = vmul.f32 %v1433, 0.5
    %v1476 = vmul.f32 %v1438, 0.5
    %v1477 = vmul.f32 %v1441, 0.5
    %v1478 = vmul.f32 %v1446, 0.5
    %v1479 = vmul.f32 %v1449, 0.5
    %v1480 = vmul.f32 %v1454, 0.5
    %v1481 = vmul.f32 %v1457, 0.5
    %v1482 = vmul.f32 %v1462, 0.5
    %v1483 = vmul.f32 %v1465, 0.5
    %v1484 = vpack.c.bf16 %v1469, %v1468
    %v1485 = vpack.c.bf16 %v1471, %v1470
    %v1486 = vpack.c.bf16 %v1473, %v1472
    %v1487 = vpack.c.bf16 %v1475, %v1474
    %v1488 = vpack.c.bf16 %v1477, %v1476
    %v1489 = vpack.c.bf16 %v1479, %v1478
    %v1490 = vpack.c.bf16 %v1481, %v1480
    %v1491 = vpack.c.bf16 %v1483, %v1482
    %v1500 = vunpack.c.l.b16 %v1484
    %v1501 = vunpack.c.h.b16 %v1484
    %v1502 = vunpack.c.l.b16 %v1485
    %v1503 = vunpack.c.h.b16 %v1485
    %v1504 = vunpack.c.l.b16 %v1486
    %v1505 = vunpack.c.h.b16 %v1486
    %v1506 = vunpack.c.l.b16 %v1487
    %v1507 = vunpack.c.h.b16 %v1487
    %v1508 = vunpack.c.l.b16 %v1488
    %v1509 = vunpack.c.h.b16 %v1488
    %v1510 = vunpack.c.l.b16 %v1489
    %v1511 = vunpack.c.h.b16 %v1489
    %v1512 = vunpack.c.l.b16 %v1490
    %v1513 = vunpack.c.h.b16 %v1490
    %v1514 = vunpack.c.l.b16 %v1491
    %v1515 = vunpack.c.h.b16 %v1491
    %v1516 = vpack.c.b16 %v1500, %v1500
    %v1517 = vpack.c.b16 %v1501, %v1501
    %v1518 = vpack.c.b16 %v1502, %v1502
    %v1519 = vpack.c.b16 %v1503, %v1503
    %v1520 = vpack.c.b16 %v1504, %v1504
    %v1521 = vpack.c.b16 %v1505, %v1505
    %v1522 = vpack.c.b16 %v1506, %v1506
    %v1523 = vpack.c.b16 %v1507, %v1507
    %v1524 = vpack.c.b16 %v1508, %v1508
    %v1525 = vpack.c.b16 %v1509, %v1509
    %v1526 = vpack.c.b16 %v1510, %v1510
    %v1527 = vpack.c.b16 %v1511, %v1511
    %v1528 = vpack.c.b16 %v1512, %v1512
    %v1529 = vpack.c.b16 %v1513, %v1513
    %v1530 = vpack.c.b16 %v1514, %v1514
    %v1531 = vpack.c.b16 %v1515, %v1515
    %1548 = vst [vmem:[#allocation2 + $0x4] sm:$0xf] %v1516
    %1549 = vst [vmem:[#allocation2 + $0x10] sm:$0xf] %v1517
    %1550 = vst [vmem:[#allocation2 + $0x1c] sm:$0xf] %v1518
    %1551 = vst [vmem:[#allocation2 + $0x28] sm:$0xf] %v1519
    %1552 = vst [vmem:[#allocation2 + $0x34] sm:$0xf] %v1520
    %1553 = vst [vmem:[#allocation2 + $0x40] sm:$0xf] %v1521
    %1554 = vst [vmem:[#allocation2 + $0x4c] sm:$0xf] %v1522
    %1555 = vst [vmem:[#allocation2 + $0x58] sm:$0xf] %v1523
    %1556 = vst [vmem:[#allocation2 + $0x64] sm:$0xf] %v1524
    %1557 = vst [vmem:[#allocation2 + $0x70] sm:$0xf] %v1525
    %1558 = vst [vmem:[#allocation2 + $0x7c] sm:$0xf] %v1526
    %1559 = vst [vmem:[#allocation2 + $0x88] sm:$0xf] %v1527
    %1560 = vst [vmem:[#allocation2 + $0x94] sm:$0xf] %v1528
    %1561 = vst [vmem:[#allocation2 + $0xa0] sm:$0xf] %v1529
    %1562 = vst [vmem:[#allocation2 + $0xac] sm:$0xf] %v1530
    %1563 = vst [vmem:[#allocation2 + $0xb8] sm:$0xf] %v1531
    %v1564 = vld [vmem:[%s0] sm:$0xf]
    %v1565 = vld [vmem:[%s0 + $0x4] sm:$0xf]
    %v1566 = vld [vmem:[%s0 + $0x8] sm:$0xf]
    %v1567 = vld [vmem:[%s0 + $0xc] sm:$0xf]
    %v1568 = vld [vmem:[%s0 + $0x10] sm:$0xf]
    %v1569 = vld [vmem:[%s0 + $0x14] sm:$0xf]
    %v1570 = vld [vmem:[%s0 + $0x18] sm:$0xf]
    %v1571 = vld [vmem:[%s0 + $0x1c] sm:$0xf]
    %v1572 = vld [vmem:[%s0 + $0x20] sm:$0xf]
    %v1573 = vld [vmem:[%s0 + $0x24] sm:$0xf]
    %v1574 = vld [vmem:[%s0 + $0x28] sm:$0xf]
    %v1575 = vld [vmem:[%s0 + $0x2c] sm:$0xf]
    %v1576 = vld [vmem:[%s0 + $0x30] sm:$0xf]
    %v1577 = vld [vmem:[%s0 + $0x34] sm:$0xf]
    %v1578 = vld [vmem:[%s0 + $0x38] sm:$0xf]
    %v1579 = vld [vmem:[%s0 + $0x3c] sm:$0xf]
    %v1596 = vunpack.c.l.b16 %v1564
    %v1597 = vunpack.c.l.b16 %v1565
    %v1598 = vunpack.c.l.b16 %v1566
    %v1599 = vunpack.c.l.b16 %v1567
    %v1600 = vunpack.c.l.b16 %v1568
    %v1601 = vunpack.c.l.b16 %v1569
    %v1602 = vunpack.c.l.b16 %v1570
    %v1603 = vunpack.c.l.b16 %v1571
    %v1604 = vunpack.c.l.b16 %v1572
    %v1605 = vunpack.c.l.b16 %v1573
    %v1606 = vunpack.c.l.b16 %v1574
    %v1607 = vunpack.c.l.b16 %v1575
    %v1608 = vunpack.c.l.b16 %v1576
    %v1609 = vunpack.c.l.b16 %v1577
    %v1610 = vunpack.c.l.b16 %v1578
    %v1611 = vunpack.c.l.b16 %v1579
    %v1612 = vpack.c.b16 %v1597, %v1596
    %v1613 = vpack.c.b16 %v1599, %v1598
    %v1614 = vpack.c.b16 %v1601, %v1600
    %v1615 = vpack.c.b16 %v1603, %v1602
    %v1616 = vpack.c.b16 %v1605, %v1604
    %v1617 = vpack.c.b16 %v1607, %v1606
    %v1618 = vpack.c.b16 %v1609, %v1608
    %v1619 = vpack.c.b16 %v1611, %v1610
    %1628 = vmatprep.subr.bf16.mxu0 0
    %1629 = vmatpush1.bf16.msra.mxu0 %v1491
    %1630 = vmatprep.subr.bf16.mxu0 0
    %1631 = vmatpush1.bf16.msra.mxu0 %v1490
    %1632 = vmatprep.subr.bf16.mxu0 0
    %1633 = vmatpush1.bf16.msra.mxu0 %v1489
    %1634 = vmatprep.subr.bf16.mxu0 0
    %1635 = vmatpush1.bf16.msra.mxu0 %v1488
    %1636 = vmatprep.subr.bf16.mxu0 0
    %1637 = vmatpush1.bf16.msra.mxu0 %v1487
    %1638 = vmatprep.subr.bf16.mxu0 0
    %1639 = vmatpush1.bf16.msra.mxu0 %v1486
    %1640 = vmatprep.subr.bf16.mxu0 0
    %1641 = vmatpush1.bf16.msra.mxu0 %v1485
    %1642 = vmatprep.subr.bf16.mxu0 0
    %1643 = vmatpush1.bf16.msra.mxu0 %v1484
    %1644 = vmatprep.subr.bf16.mxu0 0
    %1645 = vmatpush2.bf16.msra.mxu0 0
    %1646 = vmatprep.subr.bf16.mxu0 0
    %1647 = vmatpush2.bf16.msra.mxu0 0
    %1648 = vmatprep.subr.bf16.mxu0 0
    %1649 = vmatpush2.bf16.msra.mxu0 0
    %1650 = vmatprep.subr.bf16.mxu0 0
    %1651 = vmatpush2.bf16.msra.mxu0 0
    %1652 = vmatprep.subr.bf16.mxu0 0
    %1653 = vmatpush2.bf16.msra.mxu0 0
    %1654 = vmatprep.subr.bf16.mxu0 0
    %1655 = vmatpush2.bf16.msra.mxu0 0
    %1656 = vmatprep.subr.bf16.mxu0 0
    %1657 = vmatpush2.bf16.msra.mxu0 0
    %1658 = vmatprep.subr.bf16.mxu0 0
    %1659 = vmatpush2.bf16.msra.mxu0 0
    %1660 = vmatprep.mubr.bf16.mxu0 0
    %1661 = vmatmul.mubr.bf16.gmra.mxu0 %v1612
    %v1662 = vpop.f32.mrf.mxu0
    %v1663 = vadd.f32 0.0, %v1662
    %v1664 = vpop.f32.mrf.mxu0
    %v1665 = vpop.f32.mrf.mxu0
    %v1666 = vadd.f32 0.0, %v1665
    %v1667 = vpop.f32.mrf.mxu0
    %1668 = vmatprep.mubr.bf16.mxu0 0
    %1669 = vmatmul.mubr.bf16.gmra.mxu0 %v1613
    %v1670 = vpop.f32.mrf.mxu0
    %v1671 = vadd.f32 0.0, %v1670
    %v1672 = vpop.f32.mrf.mxu0
    %v1673 = vpop.f32.mrf.mxu0
    %v1674 = vadd.f32 0.0, %v1673
    %v1675 = vpop.f32.mrf.mxu0
    %1676 = vmatprep.mubr.bf16.mxu0 0
    %1677 = vmatmul.mubr.bf16.gmra.mxu0 %v1614
    %v1678 = vpop.f32.mrf.mxu0
    %v1679 = vadd.f32 0.0, %v1678
    %v1680 = vpop.f32.mrf.mxu0
    %v1681 = vpop.f32.mrf.mxu0
    %v1682 = vadd.f32 0.0, %v1681
    %v1683 = vpop.f32.mrf.mxu0
    %1684 = vmatprep.mubr.bf16.mxu0 0
    %1685 = vmatmul.mubr.bf16.gmra.mxu0 %v1615
    %v1686 = vpop.f32.mrf.mxu0
    %v1687 = vadd.f32 0.0, %v1686
    %v1688 = vpop.f32.mrf.mxu0
    %v1689 = vpop.f32.mrf.mxu0
    %v1690 = vadd.f32 0.0, %v1689
    %v1691 = vpop.f32.mrf.mxu0
    %1692 = vmatprep.mubr.bf16.mxu0 0
    %1693 = vmatmul.mubr.bf16.gmra.mxu0 %v1616
    %v1694 = vpop.f32.mrf.mxu0
    %v1695 = vadd.f32 0.0, %v1694
    %v1696 = vpop.f32.mrf.mxu0
    %v1697 = vpop.f32.mrf.mxu0
    %v1698 = vadd.f32 0.0, %v1697
    %v1699 = vpop.f32.mrf.mxu0
    %1700 = vmatprep.mubr.bf16.mxu0 0
    %1701 = vmatmul.mubr.bf16.gmra.mxu0 %v1617
    %v1702 = vpop.f32.mrf.mxu0
    %v1703 = vadd.f32 0.0, %v1702
    %v1704 = vpop.f32.mrf.mxu0
    %v1705 = vpop.f32.mrf.mxu0
    %v1706 = vadd.f32 0.0, %v1705
    %v1707 = vpop.f32.mrf.mxu0
    %1708 = vmatprep.mubr.bf16.mxu0 0
    %1709 = vmatmul.mubr.bf16.gmra.mxu0 %v1618
    %v1710 = vpop.f32.mrf.mxu0
    %v1711 = vadd.f32 0.0, %v1710
    %v1712 = vpop.f32.mrf.mxu0
    %v1713 = vpop.f32.mrf.mxu0
    %v1714 = vadd.f32 0.0, %v1713
    %v1715 = vpop.f32.mrf.mxu0
    %1716 = vmatprep.mubr.bf16.mxu0 0
    %1717 = vmatmul.mubr.bf16.gmra.mxu0 %v1619
    %v1718 = vpop.f32.mrf.mxu0
    %v1719 = vadd.f32 0.0, %v1718
    %v1720 = vpop.f32.mrf.mxu0
    %v1721 = vpop.f32.mrf.mxu0
    %v1722 = vadd.f32 0.0, %v1721
    %v1723 = vpop.f32.mrf.mxu0
    %1724 = vdwg.mxu0
    %v1725 = vsub.f32 %v1663, %v1291
    %v1726 = vsub.f32 %v1666, %v1292
    %v1727 = vsub.f32 %v1671, %v1293
    %v1728 = vsub.f32 %v1674, %v1294
    %v1729 = vsub.f32 %v1679, %v1295
    %v1730 = vsub.f32 %v1682, %v1296
    %v1731 = vsub.f32 %v1687, %v1297
    %v1732 = vsub.f32 %v1690, %v1298
    %v1733 = vsub.f32 %v1695, %v1299
    %v1734 = vsub.f32 %v1698, %v1300
    %v1735 = vsub.f32 %v1703, %v1301
    %v1736 = vsub.f32 %v1706, %v1302
    %v1737 = vsub.f32 %v1711, %v1303
    %v1738 = vsub.f32 %v1714, %v1304
    %v1739 = vsub.f32 %v1719, %v1305
    %v1740 = vsub.f32 %v1722, %v1306
    %v1741 = vpack.c.bf16 %v1726, %v1725
    %v1742 = vpack.c.bf16 %v1728, %v1727
    %v1743 = vpack.c.bf16 %v1730, %v1729
    %v1744 = vpack.c.bf16 %v1732, %v1731
    %v1745 = vpack.c.bf16 %v1734, %v1733
    %v1746 = vpack.c.bf16 %v1736, %v1735
    %v1747 = vpack.c.bf16 %v1738, %v1737
    %v1748 = vpack.c.bf16 %v1740, %v1739
    %v1757 = vunpack.c.l.b16 %v1741
    %v1758 = vunpack.c.h.b16 %v1741
    %v1759 = vunpack.c.l.b16 %v1742
    %v1760 = vunpack.c.h.b16 %v1742
    %v1761 = vunpack.c.l.b16 %v1743
    %v1762 = vunpack.c.h.b16 %v1743
    %v1763 = vunpack.c.l.b16 %v1744
    %v1764 = vunpack.c.h.b16 %v1744
    %v1765 = vunpack.c.l.b16 %v1745
    %v1766 = vunpack.c.h.b16 %v1745
    %v1767 = vunpack.c.l.b16 %v1746
    %v1768 = vunpack.c.h.b16 %v1746
    %v1769 = vunpack.c.l.b16 %v1747
    %v1770 = vunpack.c.h.b16 %v1747
    %v1771 = vunpack.c.l.b16 %v1748
    %v1772 = vunpack.c.h.b16 %v1748
    %v1773 = vpack.c.b16 %v1757, %v1757
    %v1774 = vpack.c.b16 %v1758, %v1758
    %v1775 = vpack.c.b16 %v1759, %v1759
    %v1776 = vpack.c.b16 %v1760, %v1760
    %v1777 = vpack.c.b16 %v1761, %v1761
    %v1778 = vpack.c.b16 %v1762, %v1762
    %v1779 = vpack.c.b16 %v1763, %v1763
    %v1780 = vpack.c.b16 %v1764, %v1764
    %v1781 = vpack.c.b16 %v1765, %v1765
    %v1782 = vpack.c.b16 %v1766, %v1766
    %v1783 = vpack.c.b16 %v1767, %v1767
    %v1784 = vpack.c.b16 %v1768, %v1768
    %v1785 = vpack.c.b16 %v1769, %v1769
    %v1786 = vpack.c.b16 %v1770, %v1770
    %v1787 = vpack.c.b16 %v1771, %v1771
    %v1788 = vpack.c.b16 %v1772, %v1772
    %1805 = vst [vmem:[#allocation2 + $0x8] sm:$0xf] %v1773
    %1806 = vst [vmem:[#allocation2 + $0x14] sm:$0xf] %v1774
    %1807 = vst [vmem:[#allocation2 + $0x20] sm:$0xf] %v1775
    %1808 = vst [vmem:[#allocation2 + $0x2c] sm:$0xf] %v1776
    %1809 = vst [vmem:[#allocation2 + $0x38] sm:$0xf] %v1777
    %1810 = vst [vmem:[#allocation2 + $0x44] sm:$0xf] %v1778
    %1811 = vst [vmem:[#allocation2 + $0x50] sm:$0xf] %v1779
    %1812 = vst [vmem:[#allocation2 + $0x5c] sm:$0xf] %v1780
    %1813 = vst [vmem:[#allocation2 + $0x68] sm:$0xf] %v1781
    %1814 = vst [vmem:[#allocation2 + $0x74] sm:$0xf] %v1782
    %1815 = vst [vmem:[#allocation2 + $0x80] sm:$0xf] %v1783
    %1816 = vst [vmem:[#allocation2 + $0x8c] sm:$0xf] %v1784
    %1817 = vst [vmem:[#allocation2 + $0x98] sm:$0xf] %v1785
    %1818 = vst [vmem:[#allocation2 + $0xa4] sm:$0xf] %v1786
    %1819 = vst [vmem:[#allocation2 + $0xb0] sm:$0xf] %v1787
    %1820 = vst [vmem:[#allocation2 + $0xbc] sm:$0xf] %v1788
    %v1821 = vld [vmem:[#allocation2] sm:$0xff]
    %v1822 = vld [vmem:[#allocation2 + $0x8] sm:$0xf]
    %v1823 = vld [vmem:[#allocation2 + $0xc] sm:$0xff]
    %v1824 = vld [vmem:[#allocation2 + $0x14] sm:$0xf]
    %v1825 = vld [vmem:[#allocation2 + $0x18] sm:$0xff]
    %v1826 = vld [vmem:[#allocation2 + $0x20] sm:$0xf]
    %v1827 = vld [vmem:[#allocation2 + $0x24] sm:$0xff]
    %v1828 = vld [vmem:[#allocation2 + $0x2c] sm:$0xf]
    %v1829 = vld [vmem:[#allocation2 + $0x30] sm:$0xff]
    %v1830 = vld [vmem:[#allocation2 + $0x38] sm:$0xf]
    %v1831 = vld [vmem:[#allocation2 + $0x3c] sm:$0xff]
    %v1832 = vld [vmem:[#allocation2 + $0x44] sm:$0xf]
    %v1833 = vld [vmem:[#allocation2 + $0x48] sm:$0xff]
    %v1834 = vld [vmem:[#allocation2 + $0x50] sm:$0xf]
    %v1835 = vld [vmem:[#allocation2 + $0x54] sm:$0xff]
    %v1836 = vld [vmem:[#allocation2 + $0x5c] sm:$0xf]
    %v1837 = vld [vmem:[#allocation2 + $0x60] sm:$0xff]
    %v1838 = vld [vmem:[#allocation2 + $0x68] sm:$0xf]
    %v1839 = vld [vmem:[#allocation2 + $0x6c] sm:$0xff]
    %v1840 = vld [vmem:[#allocation2 + $0x74] sm:$0xf]
    %v1841 = vld [vmem:[#allocation2 + $0x78] sm:$0xff]
    %v1842 = vld [vmem:[#allocation2 + $0x80] sm:$0xf]
    %v1843 = vld [vmem:[#allocation2 + $0x84] sm:$0xff]
    %v1844 = vld [vmem:[#allocation2 + $0x8c] sm:$0xf]
    %v1845 = vld [vmem:[#allocation2 + $0x90] sm:$0xff]
    %v1846 = vld [vmem:[#allocation2 + $0x98] sm:$0xf]
    %v1847 = vld [vmem:[#allocation2 + $0x9c] sm:$0xff]
    %v1848 = vld [vmem:[#allocation2 + $0xa4] sm:$0xf]
    %v1849 = vld [vmem:[#allocation2 + $0xa8] sm:$0xff]
    %v1850 = vld [vmem:[#allocation2 + $0xb0] sm:$0xf]
    %v1851 = vld [vmem:[#allocation2 + $0xb4] sm:$0xff]
    %v1852 = vld [vmem:[#allocation2 + $0xbc] sm:$0xf]
    %s1853 = scalar_lea.vmem [#allocation3], 192
    %v1854 = vld [vmem:[%s1853] sm:$0xf]
    %v1855 = vld [vmem:[%s1853 + $0x4] sm:$0xf]
    %v1856 = vld [vmem:[%s1853 + $0x8] sm:$0xf]
    %v1857 = vld [vmem:[%s1853 + $0xc] sm:$0xf]
    %v1858 = vld [vmem:[%s1853 + $0x10] sm:$0xf]
    %v1859 = vld [vmem:[%s1853 + $0x14] sm:$0xf]
    %v1860 = vld [vmem:[%s1853 + $0x18] sm:$0xf]
    %v1861 = vld [vmem:[%s1853 + $0x1c] sm:$0xf]
    %v1862 = vld [vmem:[%s1853 + $0x20] sm:$0xf]
    %v1863 = vld [vmem:[%s1853 + $0x24] sm:$0xf]
    %v1864 = vld [vmem:[%s1853 + $0x28] sm:$0xf]
    %v1865 = vld [vmem:[%s1853 + $0x2c] sm:$0xf]
    %v1866 = vld [vmem:[%s1853 + $0x30] sm:$0xf]
    %v1867 = vld [vmem:[%s1853 + $0x34] sm:$0xf]
    %v1868 = vld [vmem:[%s1853 + $0x38] sm:$0xf]
    %v1869 = vld [vmem:[%s1853 + $0x3c] sm:$0xf]
    %v1870 = vld [vmem:[%s1853 + $0x40] sm:$0xf]
    %v1871 = vld [vmem:[%s1853 + $0x44] sm:$0xf]
    %v1872 = vld [vmem:[%s1853 + $0x48] sm:$0xf]
    %v1873 = vld [vmem:[%s1853 + $0x4c] sm:$0xf]
    %v1874 = vld [vmem:[%s1853 + $0x50] sm:$0xf]
    %v1875 = vld [vmem:[%s1853 + $0x54] sm:$0xf]
    %v1876 = vld [vmem:[%s1853 + $0x58] sm:$0xf]
    %v1877 = vld [vmem:[%s1853 + $0x5c] sm:$0xf]
    %v1878 = vld [vmem:[%s1853 + $0x60] sm:$0xf]
    %v1879 = vld [vmem:[%s1853 + $0x64] sm:$0xf]
    %v1880 = vld [vmem:[%s1853 + $0x68] sm:$0xf]
    %v1881 = vld [vmem:[%s1853 + $0x6c] sm:$0xf]
    %v1882 = vld [vmem:[%s1853 + $0x70] sm:$0xf]
    %v1883 = vld [vmem:[%s1853 + $0x74] sm:$0xf]
    %v1884 = vld [vmem:[%s1853 + $0x78] sm:$0xf]
    %v1885 = vld [vmem:[%s1853 + $0x7c] sm:$0xf]
    %v1886 = vld [vmem:[%s1853 + $0x80] sm:$0xf]
    %v1887 = vld [vmem:[%s1853 + $0x84] sm:$0xf]
    %v1888 = vld [vmem:[%s1853 + $0x88] sm:$0xf]
    %v1889 = vld [vmem:[%s1853 + $0x8c] sm:$0xf]
    %v1890 = vld [vmem:[%s1853 + $0x90] sm:$0xf]
    %v1891 = vld [vmem:[%s1853 + $0x94] sm:$0xf]
    %v1892 = vld [vmem:[%s1853 + $0x98] sm:$0xf]
    %v1893 = vld [vmem:[%s1853 + $0x9c] sm:$0xf]
    %v1894 = vld [vmem:[%s1853 + $0xa0] sm:$0xf]
    %v1895 = vld [vmem:[%s1853 + $0xa4] sm:$0xf]
    %v1896 = vld [vmem:[%s1853 + $0xa8] sm:$0xf]
    %v1897 = vld [vmem:[%s1853 + $0xac] sm:$0xf]
    %v1898 = vld [vmem:[%s1853 + $0xb0] sm:$0xf]
    %v1899 = vld [vmem:[%s1853 + $0xb4] sm:$0xf]
    %v1900 = vld [vmem:[%s1853 + $0xb8] sm:$0xf]
    %v1901 = vld [vmem:[%s1853 + $0xbc] sm:$0xf]
    %s1902 = scalar_lea.vmem %s3, 1
    %v1903 = vld [vmem:[%s1902] sm:$0x1]
    %v1905 = vlaneseq
    %v1906 = vshrl.u32 %v1905, 7
    %v1907 = vsub.s32 0, %v1906
    %v1908 = vrot.slane %v1903, %v1907
    %v1942 = vunpack.c.l.b16 %v1821
    %v1943 = vunpack.c.h.b16 %v1821
    %v1944 = vunpack.c.l.b16 %v1822
    %v1945 = vunpack.c.l.b16 %v1823
    %v1946 = vunpack.c.h.b16 %v1823
    %v1947 = vunpack.c.l.b16 %v1824
    %v1948 = vunpack.c.l.b16 %v1825
    %v1949 = vunpack.c.h.b16 %v1825
    %v1950 = vunpack.c.l.b16 %v1826
    %v1951 = vunpack.c.l.b16 %v1827
    %v1952 = vunpack.c.h.b16 %v1827
    %v1953 = vunpack.c.l.b16 %v1828
    %v1954 = vunpack.c.l.b16 %v1829
    %v1955 = vunpack.c.h.b16 %v1829
    %v1956 = vunpack.c.l.b16 %v1830
    %v1957 = vunpack.c.l.b16 %v1831
    %v1958 = vunpack.c.h.b16 %v1831
    %v1959 = vunpack.c.l.b16 %v1832
    %v1960 = vunpack.c.l.b16 %v1833
    %v1961 = vunpack.c.h.b16 %v1833
    %v1962 = vunpack.c.l.b16 %v1834
    %v1963 = vunpack.c.l.b16 %v1835
    %v1964 = vunpack.c.h.b16 %v1835
    %v1965 = vunpack.c.l.b16 %v1836
    %v1966 = vunpack.c.l.b16 %v1837
    %v1967 = vunpack.c.h.b16 %v1837
    %v1968 = vunpack.c.l.b16 %v1838
    %v1969 = vunpack.c.l.b16 %v1839
    %v1970 = vunpack.c.h.b16 %v1839
    %v1971 = vunpack.c.l.b16 %v1840
    %v1972 = vunpack.c.l.b16 %v1841
    %v1973 = vunpack.c.h.b16 %v1841
    %v1974 = vunpack.c.l.b16 %v1842
    %v1975 = vunpack.c.l.b16 %v1843
    %v1976 = vunpack.c.h.b16 %v1843
    %v1977 = vunpack.c.l.b16 %v1844
    %v1978 = vunpack.c.l.b16 %v1845
    %v1979 = vunpack.c.h.b16 %v1845
    %v1980 = vunpack.c.l.b16 %v1846
    %v1981 = vunpack.c.l.b16 %v1847
    %v1982 = vunpack.c.h.b16 %v1847
    %v1983 = vunpack.c.l.b16 %v1848
    %v1984 = vunpack.c.l.b16 %v1849
    %v1985 = vunpack.c.h.b16 %v1849
    %v1986 = vunpack.c.l.b16 %v1850
    %v1987 = vunpack.c.l.b16 %v1851
    %v1988 = vunpack.c.h.b16 %v1851
    %v1989 = vunpack.c.l.b16 %v1852
    %v1990 = vpack.c.b16 %v1945, %v1942
    %v1991 = vpack.c.b16 %v1946, %v1943
    %v1992 = vpack.c.b16 %v1947, %v1944
    %v1993 = vpack.c.b16 %v1951, %v1948
    %v1994 = vpack.c.b16 %v1952, %v1949
    %v1995 = vpack.c.b16 %v1953, %v1950
    %v1996 = vpack.c.b16 %v1957, %v1954
    %v1997 = vpack.c.b16 %v1958, %v1955
    %v1998 = vpack.c.b16 %v1959, %v1956
    %v1999 = vpack.c.b16 %v1963, %v1960
    %v2000 = vpack.c.b16 %v1964, %v1961
    %v2001 = vpack.c.b16 %v1965, %v1962
    %v2002 = vpack.c.b16 %v1969, %v1966
    %v2003 = vpack.c.b16 %v1970, %v1967
    %v2004 = vpack.c.b16 %v1971, %v1968
    %v2005 = vpack.c.b16 %v1975, %v1972
    %v2006 = vpack.c.b16 %v1976, %v1973
    %v2007 = vpack.c.b16 %v1977, %v1974
    %v2008 = vpack.c.b16 %v1981, %v1978
    %v2009 = vpack.c.b16 %v1982, %v1979
    %v2010 = vpack.c.b16 %v1983, %v1980
    %v2011 = vpack.c.b16 %v1987, %v1984
    %v2012 = vpack.c.b16 %v1988, %v1985
    %v2013 = vpack.c.b16 %v1989, %v1986
    %v2086 = vunpack.c.l.b16 %v1854
    %v2087 = vunpack.c.l.b16 %v1855
    %v2088 = vunpack.c.l.b16 %v1856
    %v2089 = vunpack.c.l.b16 %v1857
    %v2090 = vunpack.c.l.b16 %v1858
    %v2091 = vunpack.c.l.b16 %v1859
    %v2092 = vunpack.c.l.b16 %v1860
    %v2093 = vunpack.c.l.b16 %v1861
    %v2094 = vunpack.c.l.b16 %v1862
    %v2095 = vunpack.c.l.b16 %v1863
    %v2096 = vunpack.c.l.b16 %v1864
    %v2097 = vunpack.c.l.b16 %v1865
    %v2098 = vunpack.c.l.b16 %v1866
    %v2099 = vunpack.c.l.b16 %v1867
    %v2100 = vunpack.c.l.b16 %v1868
    %v2101 = vunpack.c.l.b16 %v1869
    %v2102 = vunpack.c.l.b16 %v1870
    %v2103 = vunpack.c.l.b16 %v1871
    %v2104 = vunpack.c.l.b16 %v1872
    %v2105 = vunpack.c.l.b16 %v1873
    %v2106 = vunpack.c.l.b16 %v1874
    %v2107 = vunpack.c.l.b16 %v1875
    %v2108 = vunpack.c.l.b16 %v1876
    %v2109 = vunpack.c.l.b16 %v1877
    %v2110 = vunpack.c.l.b16 %v1878
    %v2111 = vunpack.c.l.b16 %v1879
    %v2112 = vunpack.c.l.b16 %v1880
    %v2113 = vunpack.c.l.b16 %v1881
    %v2114 = vunpack.c.l.b16 %v1882
    %v2115 = vunpack.c.l.b16 %v1883
    %v2116 = vunpack.c.l.b16 %v1884
    %v2117 = vunpack.c.l.b16 %v1885
    %v2118 = vunpack.c.l.b16 %v1886
    %v2119 = vunpack.c.l.b16 %v1887
    %v2120 = vunpack.c.l.b16 %v1888
    %v2121 = vunpack.c.l.b16 %v1889
    %v2122 = vunpack.c.l.b16 %v1890
    %v2123 = vunpack.c.l.b16 %v1891
    %v2124 = vunpack.c.l.b16 %v1892
    %v2125 = vunpack.c.l.b16 %v1893
    %v2126 = vunpack.c.l.b16 %v1894
    %v2127 = vunpack.c.l.b16 %v1895
    %v2128 = vunpack.c.l.b16 %v1896
    %v2129 = vunpack.c.l.b16 %v1897
    %v2130 = vunpack.c.l.b16 %v1898
    %v2131 = vunpack.c.l.b16 %v1899
    %v2132 = vunpack.c.l.b16 %v1900
    %v2133 = vunpack.c.l.b16 %v1901
    %v2134 = vpack.c.b16 %v2087, %v2086
    %v2135 = vpack.c.b16 %v2089, %v2088
    %v2136 = vpack.c.b16 %v2091, %v2090
    %v2137 = vpack.c.b16 %v2093, %v2092
    %v2138 = vpack.c.b16 %v2095, %v2094
    %v2139 = vpack.c.b16 %v2097, %v2096
    %v2140 = vpack.c.b16 %v2099, %v2098
    %v2141 = vpack.c.b16 %v2101, %v2100
    %v2142 = vpack.c.b16 %v2103, %v2102
    %v2143 = vpack.c.b16 %v2105, %v2104
    %v2144 = vpack.c.b16 %v2107, %v2106
    %v2145 = vpack.c.b16 %v2109, %v2108
    %v2146 = vpack.c.b16 %v2111, %v2110
    %v2147 = vpack.c.b16 %v2113, %v2112
    %v2148 = vpack.c.b16 %v2115, %v2114
    %v2149 = vpack.c.b16 %v2117, %v2116
    %v2150 = vpack.c.b16 %v2119, %v2118
    %v2151 = vpack.c.b16 %v2121, %v2120
    %v2152 = vpack.c.b16 %v2123, %v2122
    %v2153 = vpack.c.b16 %v2125, %v2124
    %v2154 = vpack.c.b16 %v2127, %v2126
    %v2155 = vpack.c.b16 %v2129, %v2128
    %v2156 = vpack.c.b16 %v2131, %v2130
    %v2157 = vpack.c.b16 %v2133, %v2132
    %2182 = vmatprep.subr.bf16.mxu0 0
    %2183 = vmatpush1.bf16.msra.mxu0 %v2141
    %2184 = vmatprep.subr.bf16.mxu0 0
    %2185 = vmatpush1.bf16.msra.mxu0 %v2140
    %2186 = vmatprep.subr.bf16.mxu0 0
    %2187 = vmatpush1.bf16.msra.mxu0 %v2139
    %2188 = vmatprep.subr.bf16.mxu0 0
    %2189 = vmatpush1.bf16.msra.mxu0 %v2138
    %2190 = vmatprep.subr.bf16.mxu0 0
    %2191 = vmatpush1.bf16.msra.mxu0 %v2137
    %2192 = vmatprep.subr.bf16.mxu0 0
    %2193 = vmatpush1.bf16.msra.mxu0 %v2136
    %2194 = vmatprep.subr.bf16.mxu0 0
    %2195 = vmatpush1.bf16.msra.mxu0 %v2135
    %2196 = vmatprep.subr.bf16.mxu0 0
    %2197 = vmatpush1.bf16.msra.mxu0 %v2134
    %2198 = vmatprep.subr.bf16.mxu0 0
    %2199 = vmatpush2.bf16.msra.mxu0 %v2149
    %2200 = vmatprep.subr.bf16.mxu0 0
    %2201 = vmatpush2.bf16.msra.mxu0 %v2148
    %2202 = vmatprep.subr.bf16.mxu0 0
    %2203 = vmatpush2.bf16.msra.mxu0 %v2147
    %2204 = vmatprep.subr.bf16.mxu0 0
    %2205 = vmatpush2.bf16.msra.mxu0 %v2146
    %2206 = vmatprep.subr.bf16.mxu0 0
    %2207 = vmatpush2.bf16.msra.mxu0 %v2145
    %2208 = vmatprep.subr.bf16.mxu0 0
    %2209 = vmatpush2.bf16.msra.mxu0 %v2144
    %2210 = vmatprep.subr.bf16.mxu0 0
    %2211 = vmatpush2.bf16.msra.mxu0 %v2143
    %2212 = vmatprep.subr.bf16.mxu0 0
    %2213 = vmatpush2.bf16.msra.mxu0 %v2142
    %2214 = vmatprep.mubr.bf16.mxu0 %v1991
    %2215 = vmatmul.mubr.bf16.gmra.mxu0 %v1990
    %v2216 = vpop.f32.mrf.mxu0
    %v2217 = vadd.f32 %v1908, %v2216
    %v2218 = vpop.f32.mrf.mxu0
    %v2219 = vpop.f32.mrf.mxu0
    %v2220 = vadd.f32 %v1908, %v2219
    %v2221 = vpop.f32.mrf.mxu0
    %2222 = vmatprep.mubr.bf16.mxu0 %v1994
    %2223 = vmatmul.mubr.bf16.gmra.mxu0 %v1993
    %v2224 = vpop.f32.mrf.mxu0
    %v2225 = vadd.f32 %v1908, %v2224
    %v2226 = vpop.f32.mrf.mxu0
    %v2227 = vpop.f32.mrf.mxu0
    %v2228 = vadd.f32 %v1908, %v2227
    %v2229 = vpop.f32.mrf.mxu0
    %2230 = vmatprep.mubr.bf16.mxu0 %v1997
    %2231 = vmatmul.mubr.bf16.gmra.mxu0 %v1996
    %v2232 = vpop.f32.mrf.mxu0
    %v2233 = vadd.f32 %v1908, %v2232
    %v2234 = vpop.f32.mrf.mxu0
    %v2235 = vpop.f32.mrf.mxu0
    %v2236 = vadd.f32 %v1908, %v2235
    %v2237 = vpop.f32.mrf.mxu0
    %2238 = vmatprep.mubr.bf16.mxu0 %v2000
    %2239 = vmatmul.mubr.bf16.gmra.mxu0 %v1999
    %v2240 = vpop.f32.mrf.mxu0
    %v2241 = vadd.f32 %v1908, %v2240
    %v2242 = vpop.f32.mrf.mxu0
    %v2243 = vpop.f32.mrf.mxu0
    %v2244 = vadd.f32 %v1908, %v2243
    %v2245 = vpop.f32.mrf.mxu0
    %2246 = vmatprep.mubr.bf16.mxu0 %v2003
    %2247 = vmatmul.mubr.bf16.gmra.mxu0 %v2002
    %v2248 = vpop.f32.mrf.mxu0
    %v2249 = vadd.f32 %v1908, %v2248
    %v2250 = vpop.f32.mrf.mxu0
    %v2251 = vpop.f32.mrf.mxu0
    %v2252 = vadd.f32 %v1908, %v2251
    %v2253 = vpop.f32.mrf.mxu0
    %2254 = vmatprep.mubr.bf16.mxu0 %v2006
    %2255 = vmatmul.mubr.bf16.gmra.mxu0 %v2005
    %v2256 = vpop.f32.mrf.mxu0
    %v2257 = vadd.f32 %v1908, %v2256
    %v2258 = vpop.f32.mrf.mxu0
    %v2259 = vpop.f32.mrf.mxu0
    %v2260 = vadd.f32 %v1908, %v2259
    %v2261 = vpop.f32.mrf.mxu0
    %2262 = vmatprep.mubr.bf16.mxu0 %v2009
    %2263 = vmatmul.mubr.bf16.gmra.mxu0 %v2008
    %v2264 = vpop.f32.mrf.mxu0
    %v2265 = vadd.f32 %v1908, %v2264
    %v2266 = vpop.f32.mrf.mxu0
    %v2267 = vpop.f32.mrf.mxu0
    %v2268 = vadd.f32 %v1908, %v2267
    %v2269 = vpop.f32.mrf.mxu0
    %2270 = vmatprep.mubr.bf16.mxu0 %v2012
    %2271 = vmatmul.mubr.bf16.gmra.mxu0 %v2011
    %v2272 = vpop.f32.mrf.mxu0
    %v2273 = vadd.f32 %v1908, %v2272
    %v2274 = vpop.f32.mrf.mxu0
    %v2275 = vpop.f32.mrf.mxu0
    %v2276 = vadd.f32 %v1908, %v2275
    %v2277 = vpop.f32.mrf.mxu0
    %2278 = vdwg.mxu0
    %2279 = vmatprep.subr.bf16.mxu0 0
    %2280 = vmatpush1.bf16.msra.mxu0 %v2157
    %2281 = vmatprep.subr.bf16.mxu0 0
    %2282 = vmatpush1.bf16.msra.mxu0 %v2156
    %2283 = vmatprep.subr.bf16.mxu0 0
    %2284 = vmatpush1.bf16.msra.mxu0 %v2155
    %2285 = vmatprep.subr.bf16.mxu0 0
    %2286 = vmatpush1.bf16.msra.mxu0 %v2154
    %2287 = vmatprep.subr.bf16.mxu0 0
    %2288 = vmatpush1.bf16.msra.mxu0 %v2153
    %2289 = vmatprep.subr.bf16.mxu0 0
    %2290 = vmatpush1.bf16.msra.mxu0 %v2152
    %2291 = vmatprep.subr.bf16.mxu0 0
    %2292 = vmatpush1.bf16.msra.mxu0 %v2151
    %2293 = vmatprep.subr.bf16.mxu0 0
    %2294 = vmatpush1.bf16.msra.mxu0 %v2150
    %2295 = vmatprep.subr.bf16.mxu0 0
    %2296 = vmatpush2.bf16.msra.mxu0 0
    %2297 = vmatprep.subr.bf16.mxu0 0
    %2298 = vmatpush2.bf16.msra.mxu0 0
    %2299 = vmatprep.subr.bf16.mxu0 0
    %2300 = vmatpush2.bf16.msra.mxu0 0
    %2301 = vmatprep.subr.bf16.mxu0 0
    %2302 = vmatpush2.bf16.msra.mxu0 0
    %2303 = vmatprep.subr.bf16.mxu0 0
    %2304 = vmatpush2.bf16.msra.mxu0 0
    %2305 = vmatprep.subr.bf16.mxu0 0
    %2306 = vmatpush2.bf16.msra.mxu0 0
    %2307 = vmatprep.subr.bf16.mxu0 0
    %2308 = vmatpush2.bf16.msra.mxu0 0
    %2309 = vmatprep.subr.bf16.mxu0 0
    %2310 = vmatpush2.bf16.msra.mxu0 0
    %2311 = vmatprep.mubr.bf16.mxu0 0
    %2312 = vmatmul.mubr.bf16.gmra.mxu0 %v1992
    %v2313 = vpop.f32.mrf.mxu0
    %v2314 = vadd.f32 %v2217, %v2313
    %v2315 = vpop.f32.mrf.mxu0
    %v2316 = vpop.f32.mrf.mxu0
    %v2317 = vadd.f32 %v2220, %v2316
    %v2318 = vpop.f32.mrf.mxu0
    %2319 = vmatprep.mubr.bf16.mxu0 0
    %2320 = vmatmul.mubr.bf16.gmra.mxu0 %v1995
    %v2321 = vpop.f32.mrf.mxu0
    %v2322 = vadd.f32 %v2225, %v2321
    %v2323 = vpop.f32.mrf.mxu0
    %v2324 = vpop.f32.mrf.mxu0
    %v2325 = vadd.f32 %v2228, %v2324
    %v2326 = vpop.f32.mrf.mxu0
    %2327 = vmatprep.mubr.bf16.mxu0 0
    %2328 = vmatmul.mubr.bf16.gmra.mxu0 %v1998
    %v2329 = vpop.f32.mrf.mxu0
    %v2330 = vadd.f32 %v2233, %v2329
    %v2331 = vpop.f32.mrf.mxu0
    %v2332 = vpop.f32.mrf.mxu0
    %v2333 = vadd.f32 %v2236, %v2332
    %v2334 = vpop.f32.mrf.mxu0
    %2335 = vmatprep.mubr.bf16.mxu0 0
    %2336 = vmatmul.mubr.bf16.gmra.mxu0 %v2001
    %v2337 = vpop.f32.mrf.mxu0
    %v2338 = vadd.f32 %v2241, %v2337
    %v2339 = vpop.f32.mrf.mxu0
    %v2340 = vpop.f32.mrf.mxu0
    %v2341 = vadd.f32 %v2244, %v2340
    %v2342 = vpop.f32.mrf.mxu0
    %2343 = vmatprep.mubr.bf16.mxu0 0
    %2344 = vmatmul.mubr.bf16.gmra.mxu0 %v2004
    %v2345 = vpop.f32.mrf.mxu0
    %v2346 = vadd.f32 %v2249, %v2345
    %v2347 = vpop.f32.mrf.mxu0
    %v2348 = vpop.f32.mrf.mxu0
    %v2349 = vadd.f32 %v2252, %v2348
    %v2350 = vpop.f32.mrf.mxu0
    %2351 = vmatprep.mubr.bf16.mxu0 0
    %2352 = vmatmul.mubr.bf16.gmra.mxu0 %v2007
    %v2353 = vpop.f32.mrf.mxu0
    %v2354 = vadd.f32 %v2257, %v2353
    %v2355 = vpop.f32.mrf.mxu0
    %v2356 = vpop.f32.mrf.mxu0
    %v2357 = vadd.f32 %v2260, %v2356
    %v2358 = vpop.f32.mrf.mxu0
    %2359 = vmatprep.mubr.bf16.mxu0 0
    %2360 = vmatmul.mubr.bf16.gmra.mxu0 %v2010
    %v2361 = vpop.f32.mrf.mxu0
    %v2362 = vadd.f32 %v2265, %v2361
    %v2363 = vpop.f32.mrf.mxu0
    %v2364 = vpop.f32.mrf.mxu0
    %v2365 = vadd.f32 %v2268, %v2364
    %v2366 = vpop.f32.mrf.mxu0
    %2367 = vmatprep.mubr.bf16.mxu0 0
    %2368 = vmatmul.mubr.bf16.gmra.mxu0 %v2013
    %v2369 = vpop.f32.mrf.mxu0
    %v2370 = vadd.f32 %v2273, %v2369
    %v2371 = vpop.f32.mrf.mxu0
    %v2372 = vpop.f32.mrf.mxu0
    %v2373 = vadd.f32 %v2276, %v2372
    %v2374 = vpop.f32.mrf.mxu0
    %2375 = vdwg.mxu0
    %v2376 = vmax.f32 %v2314, 0.0
    %v2377 = vmax.f32 %v2317, 0.0
    %v2378 = vmax.f32 %v2322, 0.0
    %v2379 = vmax.f32 %v2325, 0.0
    %v2380 = vmax.f32 %v2330, 0.0
    %v2381 = vmax.f32 %v2333, 0.0
    %v2382 = vmax.f32 %v2338, 0.0
    %v2383 = vmax.f32 %v2341, 0.0
    %v2384 = vmax.f32 %v2346, 0.0
    %v2385 = vmax.f32 %v2349, 0.0
    %v2386 = vmax.f32 %v2354, 0.0
    %v2387 = vmax.f32 %v2357, 0.0
    %v2388 = vmax.f32 %v2362, 0.0
    %v2389 = vmax.f32 %v2365, 0.0
    %v2390 = vmax.f32 %v2370, 0.0
    %v2391 = vmax.f32 %v2373, 0.0
    %v2392 = vpack.c.bf16 %v2377, %v2376
    %v2393 = vpack.c.bf16 %v2379, %v2378
    %v2394 = vpack.c.bf16 %v2381, %v2380
    %v2395 = vpack.c.bf16 %v2383, %v2382
    %v2396 = vpack.c.bf16 %v2385, %v2384
    %v2397 = vpack.c.bf16 %v2387, %v2386
    %v2398 = vpack.c.bf16 %v2389, %v2388
    %v2399 = vpack.c.bf16 %v2391, %v2390
    %v2408 = vunpack.c.l.b16 %v2392
    %v2409 = vunpack.c.h.b16 %v2392
    %v2410 = vunpack.c.l.b16 %v2393
    %v2411 = vunpack.c.h.b16 %v2393
    %v2412 = vunpack.c.l.b16 %v2394
    %v2413 = vunpack.c.h.b16 %v2394
    %v2414 = vunpack.c.l.b16 %v2395
    %v2415 = vunpack.c.h.b16 %v2395
    %v2416 = vunpack.c.l.b16 %v2396
    %v2417 = vunpack.c.h.b16 %v2396
    %v2418 = vunpack.c.l.b16 %v2397
    %v2419 = vunpack.c.h.b16 %v2397
    %v2420 = vunpack.c.l.b16 %v2398
    %v2421 = vunpack.c.h.b16 %v2398
    %v2422 = vunpack.c.l.b16 %v2399
    %v2423 = vunpack.c.h.b16 %v2399
    %v2424 = vpack.c.b16 %v2408, %v2408
    %v2425 = vpack.c.b16 %v2409, %v2409
    %v2426 = vpack.c.b16 %v2410, %v2410
    %v2427 = vpack.c.b16 %v2411, %v2411
    %v2428 = vpack.c.b16 %v2412, %v2412
    %v2429 = vpack.c.b16 %v2413, %v2413
    %v2430 = vpack.c.b16 %v2414, %v2414
    %v2431 = vpack.c.b16 %v2415, %v2415
    %v2432 = vpack.c.b16 %v2416, %v2416
    %v2433 = vpack.c.b16 %v2417, %v2417
    %v2434 = vpack.c.b16 %v2418, %v2418
    %v2435 = vpack.c.b16 %v2419, %v2419
    %v2436 = vpack.c.b16 %v2420, %v2420
    %v2437 = vpack.c.b16 %v2421, %v2421
    %v2438 = vpack.c.b16 %v2422, %v2422
    %v2439 = vpack.c.b16 %v2423, %v2423
    %2456 = vst [vmem:[#allocation2] sm:$0xf] %v2424
    %2457 = vst [vmem:[#allocation2 + $0xc] sm:$0xf] %v2425
    %2458 = vst [vmem:[#allocation2 + $0x18] sm:$0xf] %v2426
    %2459 = vst [vmem:[#allocation2 + $0x24] sm:$0xf] %v2427
    %2460 = vst [vmem:[#allocation2 + $0x30] sm:$0xf] %v2428
    %2461 = vst [vmem:[#allocation2 + $0x3c] sm:$0xf] %v2429
    %2462 = vst [vmem:[#allocation2 + $0x48] sm:$0xf] %v2430
    %2463 = vst [vmem:[#allocation2 + $0x54] sm:$0xf] %v2431
    %2464 = vst [vmem:[#allocation2 + $0x60] sm:$0xf] %v2432
    %2465 = vst [vmem:[#allocation2 + $0x6c] sm:$0xf] %v2433
    %2466 = vst [vmem:[#allocation2 + $0x78] sm:$0xf] %v2434
    %2467 = vst [vmem:[#allocation2 + $0x84] sm:$0xf] %v2435
    %2468 = vst [vmem:[#allocation2 + $0x90] sm:$0xf] %v2436
    %2469 = vst [vmem:[#allocation2 + $0x9c] sm:$0xf] %v2437
    %2470 = vst [vmem:[#allocation2 + $0xa8] sm:$0xf] %v2438
    %2471 = vst [vmem:[#allocation2 + $0xb4] sm:$0xf] %v2439
    %v2472 = vunpack.c.l.bf16 %v2392
    %v2473 = vunpack.c.h.bf16 %v2392
    %v2474 = vunpack.c.l.bf16 %v2393
    %v2475 = vunpack.c.h.bf16 %v2393
    %v2476 = vunpack.c.l.bf16 %v2394
    %v2477 = vunpack.c.h.bf16 %v2394
    %v2478 = vunpack.c.l.bf16 %v2395
    %v2479 = vunpack.c.h.bf16 %v2395
    %v2480 = vunpack.c.l.bf16 %v2396
    %v2481 = vunpack.c.h.bf16 %v2396
    %v2482 = vunpack.c.l.bf16 %v2397
    %v2483 = vunpack.c.h.bf16 %v2397
    %v2484 = vunpack.c.l.bf16 %v2398
    %v2485 = vunpack.c.h.bf16 %v2398
    %v2486 = vunpack.c.l.bf16 %v2399
    %v2487 = vunpack.c.h.bf16 %v2399
    %v2488 = vld [vmem:[%s0] sm:$0xf]
    %v2489 = vld [vmem:[%s0 + $0x4] sm:$0xf]
    %v2490 = vld [vmem:[%s0 + $0x8] sm:$0xf]
    %v2491 = vld [vmem:[%s0 + $0xc] sm:$0xf]
    %v2492 = vld [vmem:[%s0 + $0x10] sm:$0xf]
    %v2493 = vld [vmem:[%s0 + $0x14] sm:$0xf]
    %v2494 = vld [vmem:[%s0 + $0x18] sm:$0xf]
    %v2495 = vld [vmem:[%s0 + $0x1c] sm:$0xf]
    %v2496 = vld [vmem:[%s0 + $0x20] sm:$0xf]
    %v2497 = vld [vmem:[%s0 + $0x24] sm:$0xf]
    %v2498 = vld [vmem:[%s0 + $0x28] sm:$0xf]
    %v2499 = vld [vmem:[%s0 + $0x2c] sm:$0xf]
    %v2500 = vld [vmem:[%s0 + $0x30] sm:$0xf]
    %v2501 = vld [vmem:[%s0 + $0x34] sm:$0xf]
    %v2502 = vld [vmem:[%s0 + $0x38] sm:$0xf]
    %v2503 = vld [vmem:[%s0 + $0x3c] sm:$0xf]
    %v2520 = vunpack.c.l.b16 %v2488
    %v2521 = vunpack.c.l.b16 %v2489
    %v2522 = vunpack.c.l.b16 %v2490
    %v2523 = vunpack.c.l.b16 %v2491
    %v2524 = vunpack.c.l.b16 %v2492
    %v2525 = vunpack.c.l.b16 %v2493
    %v2526 = vunpack.c.l.b16 %v2494
    %v2527 = vunpack.c.l.b16 %v2495
    %v2528 = vunpack.c.l.b16 %v2496
    %v2529 = vunpack.c.l.b16 %v2497
    %v2530 = vunpack.c.l.b16 %v2498
    %v2531 = vunpack.c.l.b16 %v2499
    %v2532 = vunpack.c.l.b16 %v2500
    %v2533 = vunpack.c.l.b16 %v2501
    %v2534 = vunpack.c.l.b16 %v2502
    %v2535 = vunpack.c.l.b16 %v2503
    %v2536 = vpack.c.b16 %v2521, %v2520
    %v2537 = vpack.c.b16 %v2523, %v2522
    %v2538 = vpack.c.b16 %v2525, %v2524
    %v2539 = vpack.c.b16 %v2527, %v2526
    %v2540 = vpack.c.b16 %v2529, %v2528
    %v2541 = vpack.c.b16 %v2531, %v2530
    %v2542 = vpack.c.b16 %v2533, %v2532
    %v2543 = vpack.c.b16 %v2535, %v2534
    %2552 = vmatprep.subr.bf16.mxu0 0
    %2553 = vmatpush1.bf16.msra.mxu0 %v2399
    %2554 = vmatprep.subr.bf16.mxu0 0
    %2555 = vmatpush1.bf16.msra.mxu0 %v2398
    %2556 = vmatprep.subr.bf16.mxu0 0
    %2557 = vmatpush1.bf16.msra.mxu0 %v2397
    %2558 = vmatprep.subr.bf16.mxu0 0
    %2559 = vmatpush1.bf16.msra.mxu0 %v2396
    %2560 = vmatprep.subr.bf16.mxu0 0
    %2561 = vmatpush1.bf16.msra.mxu0 %v2395
    %2562 = vmatprep.subr.bf16.mxu0 0
    %2563 = vmatpush1.bf16.msra.mxu0 %v2394
    %2564 = vmatprep.subr.bf16.mxu0 0
    %2565 = vmatpush1.bf16.msra.mxu0 %v2393
    %2566 = vmatprep.subr.bf16.mxu0 0
    %2567 = vmatpush1.bf16.msra.mxu0 %v2392
    %2568 = vmatprep.subr.bf16.mxu0 0
    %2569 = vmatpush2.bf16.msra.mxu0 0
    %2570 = vmatprep.subr.bf16.mxu0 0
    %2571 = vmatpush2.bf16.msra.mxu0 0
    %2572 = vmatprep.subr.bf16.mxu0 0
    %2573 = vmatpush2.bf16.msra.mxu0 0
    %2574 = vmatprep.subr.bf16.mxu0 0
    %2575 = vmatpush2.bf16.msra.mxu0 0
    %2576 = vmatprep.subr.bf16.mxu0 0
    %2577 = vmatpush2.bf16.msra.mxu0 0
    %2578 = vmatprep.subr.bf16.mxu0 0
    %2579 = vmatpush2.bf16.msra.mxu0 0
    %2580 = vmatprep.subr.bf16.mxu0 0
    %2581 = vmatpush2.bf16.msra.mxu0 0
    %2582 = vmatprep.subr.bf16.mxu0 0
    %2583 = vmatpush2.bf16.msra.mxu0 0
    %2584 = vmatprep.mubr.bf16.mxu0 0
    %2585 = vmatmul.mubr.bf16.gmra.mxu0 %v2536
    %v2586 = vpop.f32.mrf.mxu0
    %v2587 = vadd.f32 0.0, %v2586
    %v2588 = vpop.f32.mrf.mxu0
    %v2589 = vpop.f32.mrf.mxu0
    %v2590 = vadd.f32 0.0, %v2589
    %v2591 = vpop.f32.mrf.mxu0
    %2592 = vmatprep.mubr.bf16.mxu0 0
    %2593 = vmatmul.mubr.bf16.gmra.mxu0 %v2537
    %v2594 = vpop.f32.mrf.mxu0
    %v2595 = vadd.f32 0.0, %v2594
    %v2596 = vpop.f32.mrf.mxu0
    %v2597 = vpop.f32.mrf.mxu0
    %v2598 = vadd.f32 0.0, %v2597
    %v2599 = vpop.f32.mrf.mxu0
    %2600 = vmatprep.mubr.bf16.mxu0 0
    %2601 = vmatmul.mubr.bf16.gmra.mxu0 %v2538
    %v2602 = vpop.f32.mrf.mxu0
    %v2603 = vadd.f32 0.0, %v2602
    %v2604 = vpop.f32.mrf.mxu0
    %v2605 = vpop.f32.mrf.mxu0
    %v2606 = vadd.f32 0.0, %v2605
    %v2607 = vpop.f32.mrf.mxu0
    %2608 = vmatprep.mubr.bf16.mxu0 0
    %2609 = vmatmul.mubr.bf16.gmra.mxu0 %v2539
    %v2610 = vpop.f32.mrf.mxu0
    %v2611 = vadd.f32 0.0, %v2610
    %v2612 = vpop.f32.mrf.mxu0
    %v2613 = vpop.f32.mrf.mxu0
    %v2614 = vadd.f32 0.0, %v2613
    %v2615 = vpop.f32.mrf.mxu0
    %2616 = vmatprep.mubr.bf16.mxu0 0
    %2617 = vmatmul.mubr.bf16.gmra.mxu0 %v2540
    %v2618 = vpop.f32.mrf.mxu0
    %v2619 = vadd.f32 0.0, %v2618
    %v2620 = vpop.f32.mrf.mxu0
    %v2621 = vpop.f32.mrf.mxu0
    %v2622 = vadd.f32 0.0, %v2621
    %v2623 = vpop.f32.mrf.mxu0
    %2624 = vmatprep.mubr.bf16.mxu0 0
    %2625 = vmatmul.mubr.bf16.gmra.mxu0 %v2541
    %v2626 = vpop.f32.mrf.mxu0
    %v2627 = vadd.f32 0.0, %v2626
    %v2628 = vpop.f32.mrf.mxu0
    %v2629 = vpop.f32.mrf.mxu0
    %v2630 = vadd.f32 0.0, %v2629
    %v2631 = vpop.f32.mrf.mxu0
    %2632 = vmatprep.mubr.bf16.mxu0 0
    %2633 = vmatmul.mubr.bf16.gmra.mxu0 %v2542
    %v2634 = vpop.f32.mrf.mxu0
    %v2635 = vadd.f32 0.0, %v2634
    %v2636 = vpop.f32.mrf.mxu0
    %v2637 = vpop.f32.mrf.mxu0
    %v2638 = vadd.f32 0.0, %v2637
    %v2639 = vpop.f32.mrf.mxu0
    %2640 = vmatprep.mubr.bf16.mxu0 0
    %2641 = vmatmul.mubr.bf16.gmra.mxu0 %v2543
    %v2642 = vpop.f32.mrf.mxu0
    %v2643 = vadd.f32 0.0, %v2642
    %v2644 = vpop.f32.mrf.mxu0
    %v2645 = vpop.f32.mrf.mxu0
    %v2646 = vadd.f32 0.0, %v2645
    %v2647 = vpop.f32.mrf.mxu0
    %2648 = vdwg.mxu0
    %v2649 = vmul.f32 %v2587, 0.5
    %v2650 = vmul.f32 %v2590, 0.5
    %v2651 = vmul.f32 %v2595, 0.5
    %v2652 = vmul.f32 %v2598, 0.5
    %v2653 = vmul.f32 %v2603, 0.5
    %v2654 = vmul.f32 %v2606, 0.5
    %v2655 = vmul.f32 %v2611, 0.5
    %v2656 = vmul.f32 %v2614, 0.5
    %v2657 = vmul.f32 %v2619, 0.5
    %v2658 = vmul.f32 %v2622, 0.5
    %v2659 = vmul.f32 %v2627, 0.5
    %v2660 = vmul.f32 %v2630, 0.5
    %v2661 = vmul.f32 %v2635, 0.5
    %v2662 = vmul.f32 %v2638, 0.5
    %v2663 = vmul.f32 %v2643, 0.5
    %v2664 = vmul.f32 %v2646, 0.5
    %v2665 = vpack.c.bf16 %v2650, %v2649
    %v2666 = vpack.c.bf16 %v2652, %v2651
    %v2667 = vpack.c.bf16 %v2654, %v2653
    %v2668 = vpack.c.bf16 %v2656, %v2655
    %v2669 = vpack.c.bf16 %v2658, %v2657
    %v2670 = vpack.c.bf16 %v2660, %v2659
    %v2671 = vpack.c.bf16 %v2662, %v2661
    %v2672 = vpack.c.bf16 %v2664, %v2663
    %v2681 = vunpack.c.l.b16 %v2665
    %v2682 = vunpack.c.h.b16 %v2665
    %v2683 = vunpack.c.l.b16 %v2666
    %v2684 = vunpack.c.h.b16 %v2666
    %v2685 = vunpack.c.l.b16 %v2667
    %v2686 = vunpack.c.h.b16 %v2667
    %v2687 = vunpack.c.l.b16 %v2668
    %v2688 = vunpack.c.h.b16 %v2668
    %v2689 = vunpack.c.l.b16 %v2669
    %v2690 = vunpack.c.h.b16 %v2669
    %v2691 = vunpack.c.l.b16 %v2670
    %v2692 = vunpack.c.h.b16 %v2670
    %v2693 = vunpack.c.l.b16 %v2671
    %v2694 = vunpack.c.h.b16 %v2671
    %v2695 = vunpack.c.l.b16 %v2672
    %v2696 = vunpack.c.h.b16 %v2672
    %v2697 = vpack.c.b16 %v2681, %v2681
    %v2698 = vpack.c.b16 %v2682, %v2682
    %v2699 = vpack.c.b16 %v2683, %v2683
    %v2700 = vpack.c.b16 %v2684, %v2684
    %v2701 = vpack.c.b16 %v2685, %v2685
    %v2702 = vpack.c.b16 %v2686, %v2686
    %v2703 = vpack.c.b16 %v2687, %v2687
    %v2704 = vpack.c.b16 %v2688, %v2688
    %v2705 = vpack.c.b16 %v2689, %v2689
    %v2706 = vpack.c.b16 %v2690, %v2690
    %v2707 = vpack.c.b16 %v2691, %v2691
    %v2708 = vpack.c.b16 %v2692, %v2692
    %v2709 = vpack.c.b16 %v2693, %v2693
    %v2710 = vpack.c.b16 %v2694, %v2694
    %v2711 = vpack.c.b16 %v2695, %v2695
    %v2712 = vpack.c.b16 %v2696, %v2696
    %2729 = vst [vmem:[#allocation2 + $0x4] sm:$0xf] %v2697
    %2730 = vst [vmem:[#allocation2 + $0x10] sm:$0xf] %v2698
    %2731 = vst [vmem:[#allocation2 + $0x1c] sm:$0xf] %v2699
    %2732 = vst [vmem:[#allocation2 + $0x28] sm:$0xf] %v2700
    %2733 = vst [vmem:[#allocation2 + $0x34] sm:$0xf] %v2701
    %2734 = vst [vmem:[#allocation2 + $0x40] sm:$0xf] %v2702
    %2735 = vst [vmem:[#allocation2 + $0x4c] sm:$0xf] %v2703
    %2736 = vst [vmem:[#allocation2 + $0x58] sm:$0xf] %v2704
    %2737 = vst [vmem:[#allocation2 + $0x64] sm:$0xf] %v2705
    %2738 = vst [vmem:[#allocation2 + $0x70] sm:$0xf] %v2706
    %2739 = vst [vmem:[#allocation2 + $0x7c] sm:$0xf] %v2707
    %2740 = vst [vmem:[#allocation2 + $0x88] sm:$0xf] %v2708
    %2741 = vst [vmem:[#allocation2 + $0x94] sm:$0xf] %v2709
    %2742 = vst [vmem:[#allocation2 + $0xa0] sm:$0xf] %v2710
    %2743 = vst [vmem:[#allocation2 + $0xac] sm:$0xf] %v2711
    %2744 = vst [vmem:[#allocation2 + $0xb8] sm:$0xf] %v2712
    %v2745 = vld [vmem:[%s0] sm:$0xf]
    %v2746 = vld [vmem:[%s0 + $0x4] sm:$0xf]
    %v2747 = vld [vmem:[%s0 + $0x8] sm:$0xf]
    %v2748 = vld [vmem:[%s0 + $0xc] sm:$0xf]
    %v2749 = vld [vmem:[%s0 + $0x10] sm:$0xf]
    %v2750 = vld [vmem:[%s0 + $0x14] sm:$0xf]
    %v2751 = vld [vmem:[%s0 + $0x18] sm:$0xf]
    %v2752 = vld [vmem:[%s0 + $0x1c] sm:$0xf]
    %v2753 = vld [vmem:[%s0 + $0x20] sm:$0xf]
    %v2754 = vld [vmem:[%s0 + $0x24] sm:$0xf]
    %v2755 = vld [vmem:[%s0 + $0x28] sm:$0xf]
    %v2756 = vld [vmem:[%s0 + $0x2c] sm:$0xf]
    %v2757 = vld [vmem:[%s0 + $0x30] sm:$0xf]
    %v2758 = vld [vmem:[%s0 + $0x34] sm:$0xf]
    %v2759 = vld [vmem:[%s0 + $0x38] sm:$0xf]
    %v2760 = vld [vmem:[%s0 + $0x3c] sm:$0xf]
    %v2777 = vunpack.c.l.b16 %v2745
    %v2778 = vunpack.c.l.b16 %v2746
    %v2779 = vunpack.c.l.b16 %v2747
    %v2780 = vunpack.c.l.b16 %v2748
    %v2781 = vunpack.c.l.b16 %v2749
    %v2782 = vunpack.c.l.b16 %v2750
    %v2783 = vunpack.c.l.b16 %v2751
    %v2784 = vunpack.c.l.b16 %v2752
    %v2785 = vunpack.c.l.b16 %v2753
    %v2786 = vunpack.c.l.b16 %v2754
    %v2787 = vunpack.c.l.b16 %v2755
    %v2788 = vunpack.c.l.b16 %v2756
    %v2789 = vunpack.c.l.b16 %v2757
    %v2790 = vunpack.c.l.b16 %v2758
    %v2791 = vunpack.c.l.b16 %v2759
    %v2792 = vunpack.c.l.b16 %v2760
    %v2793 = vpack.c.b16 %v2778, %v2777
    %v2794 = vpack.c.b16 %v2780, %v2779
    %v2795 = vpack.c.b16 %v2782, %v2781
    %v2796 = vpack.c.b16 %v2784, %v2783
    %v2797 = vpack.c.b16 %v2786, %v2785
    %v2798 = vpack.c.b16 %v2788, %v2787
    %v2799 = vpack.c.b16 %v2790, %v2789
    %v2800 = vpack.c.b16 %v2792, %v2791
    %2809 = vmatprep.subr.bf16.mxu0 0
    %2810 = vmatpush1.bf16.msra.mxu0 %v2672
    %2811 = vmatprep.subr.bf16.mxu0 0
    %2812 = vmatpush1.bf16.msra.mxu0 %v2671
    %2813 = vmatprep.subr.bf16.mxu0 0
    %2814 = vmatpush1.bf16.msra.mxu0 %v2670
    %2815 = vmatprep.subr.bf16.mxu0 0
    %2816 = vmatpush1.bf16.msra.mxu0 %v2669
    %2817 = vmatprep.subr.bf16.mxu0 0
    %2818 = vmatpush1.bf16.msra.mxu0 %v2668
    %2819 = vmatprep.subr.bf16.mxu0 0
    %2820 = vmatpush1.bf16.msra.mxu0 %v2667
    %2821 = vmatprep.subr.bf16.mxu0 0
    %2822 = vmatpush1.bf16.msra.mxu0 %v2666
    %2823 = vmatprep.subr.bf16.mxu0 0
    %2824 = vmatpush1.bf16.msra.mxu0 %v2665
    %2825 = vmatprep.subr.bf16.mxu0 0
    %2826 = vmatpush2.bf16.msra.mxu0 0
    %2827 = vmatprep.subr.bf16.mxu0 0
    %2828 = vmatpush2.bf16.msra.mxu0 0
    %2829 = vmatprep.subr.bf16.mxu0 0
    %2830 = vmatpush2.bf16.msra.mxu0 0
    %2831 = vmatprep.subr.bf16.mxu0 0
    %2832 = vmatpush2.bf16.msra.mxu0 0
    %2833 = vmatprep.subr.bf16.mxu0 0
    %2834 = vmatpush2.bf16.msra.mxu0 0
    %2835 = vmatprep.subr.bf16.mxu0 0
    %2836 = vmatpush2.bf16.msra.mxu0 0
    %2837 = vmatprep.subr.bf16.mxu0 0
    %2838 = vmatpush2.bf16.msra.mxu0 0
    %2839 = vmatprep.subr.bf16.mxu0 0
    %2840 = vmatpush2.bf16.msra.mxu0 0
    %2841 = vmatprep.mubr.bf16.mxu0 0
    %2842 = vmatmul.mubr.bf16.gmra.mxu0 %v2793
    %v2843 = vpop.f32.mrf.mxu0
    %v2844 = vadd.f32 0.0, %v2843
    %v2845 = vpop.f32.mrf.mxu0
    %v2846 = vpop.f32.mrf.mxu0
    %v2847 = vadd.f32 0.0, %v2846
    %v2848 = vpop.f32.mrf.mxu0
    %2849 = vmatprep.mubr.bf16.mxu0 0
    %2850 = vmatmul.mubr.bf16.gmra.mxu0 %v2794
    %v2851 = vpop.f32.mrf.mxu0
    %v2852 = vadd.f32 0.0, %v2851
    %v2853 = vpop.f32.mrf.mxu0
    %v2854 = vpop.f32.mrf.mxu0
    %v2855 = vadd.f32 0.0, %v2854
    %v2856 = vpop.f32.mrf.mxu0
    %2857 = vmatprep.mubr.bf16.mxu0 0
    %2858 = vmatmul.mubr.bf16.gmra.mxu0 %v2795
    %v2859 = vpop.f32.mrf.mxu0
    %v2860 = vadd.f32 0.0, %v2859
    %v2861 = vpop.f32.mrf.mxu0
    %v2862 = vpop.f32.mrf.mxu0
    %v2863 = vadd.f32 0.0, %v2862
    %v2864 = vpop.f32.mrf.mxu0
    %2865 = vmatprep.mubr.bf16.mxu0 0
    %2866 = vmatmul.mubr.bf16.gmra.mxu0 %v2796
    %v2867 = vpop.f32.mrf.mxu0
    %v2868 = vadd.f32 0.0, %v2867
    %v2869 = vpop.f32.mrf.mxu0
    %v2870 = vpop.f32.mrf.mxu0
    %v2871 = vadd.f32 0.0, %v2870
    %v2872 = vpop.f32.mrf.mxu0
    %2873 = vmatprep.mubr.bf16.mxu0 0
    %2874 = vmatmul.mubr.bf16.gmra.mxu0 %v2797
    %v2875 = vpop.f32.mrf.mxu0
    %v2876 = vadd.f32 0.0, %v2875
    %v2877 = vpop.f32.mrf.mxu0
    %v2878 = vpop.f32.mrf.mxu0
    %v2879 = vadd.f32 0.0, %v2878
    %v2880 = vpop.f32.mrf.mxu0
    %2881 = vmatprep.mubr.bf16.mxu0 0
    %2882 = vmatmul.mubr.bf16.gmra.mxu0 %v2798
    %v2883 = vpop.f32.mrf.mxu0
    %v2884 = vadd.f32 0.0, %v2883
    %v2885 = vpop.f32.mrf.mxu0
    %v2886 = vpop.f32.mrf.mxu0
    %v2887 = vadd.f32 0.0, %v2886
    %v2888 = vpop.f32.mrf.mxu0
    %2889 = vmatprep.mubr.bf16.mxu0 0
    %2890 = vmatmul.mubr.bf16.gmra.mxu0 %v2799
    %v2891 = vpop.f32.mrf.mxu0
    %v2892 = vadd.f32 0.0, %v2891
    %v2893 = vpop.f32.mrf.mxu0
    %v2894 = vpop.f32.mrf.mxu0
    %v2895 = vadd.f32 0.0, %v2894
    %v2896 = vpop.f32.mrf.mxu0
    %2897 = vmatprep.mubr.bf16.mxu0 0
    %2898 = vmatmul.mubr.bf16.gmra.mxu0 %v2800
    %v2899 = vpop.f32.mrf.mxu0
    %v2900 = vadd.f32 0.0, %v2899
    %v2901 = vpop.f32.mrf.mxu0
    %v2902 = vpop.f32.mrf.mxu0
    %v2903 = vadd.f32 0.0, %v2902
    %v2904 = vpop.f32.mrf.mxu0
    %2905 = vdwg.mxu0
    %v2906 = vsub.f32 %v2844, %v2472
    %v2907 = vsub.f32 %v2847, %v2473
    %v2908 = vsub.f32 %v2852, %v2474
    %v2909 = vsub.f32 %v2855, %v2475
    %v2910 = vsub.f32 %v2860, %v2476
    %v2911 = vsub.f32 %v2863, %v2477
    %v2912 = vsub.f32 %v2868, %v2478
    %v2913 = vsub.f32 %v2871, %v2479
    %v2914 = vsub.f32 %v2876, %v2480
    %v2915 = vsub.f32 %v2879, %v2481
    %v2916 = vsub.f32 %v2884, %v2482
    %v2917 = vsub.f32 %v2887, %v2483
    %v2918 = vsub.f32 %v2892, %v2484
    %v2919 = vsub.f32 %v2895, %v2485
    %v2920 = vsub.f32 %v2900, %v2486
    %v2921 = vsub.f32 %v2903, %v2487
    %v2922 = vpack.c.bf16 %v2907, %v2906
    %v2923 = vpack.c.bf16 %v2909, %v2908
    %v2924 = vpack.c.bf16 %v2911, %v2910
    %v2925 = vpack.c.bf16 %v2913, %v2912
    %v2926 = vpack.c.bf16 %v2915, %v2914
    %v2927 = vpack.c.bf16 %v2917, %v2916
    %v2928 = vpack.c.bf16 %v2919, %v2918
    %v2929 = vpack.c.bf16 %v2921, %v2920
    %v2938 = vunpack.c.l.b16 %v2922
    %v2939 = vunpack.c.h.b16 %v2922
    %v2940 = vunpack.c.l.b16 %v2923
    %v2941 = vunpack.c.h.b16 %v2923
    %v2942 = vunpack.c.l.b16 %v2924
    %v2943 = vunpack.c.h.b16 %v2924
    %v2944 = vunpack.c.l.b16 %v2925
    %v2945 = vunpack.c.h.b16 %v2925
    %v2946 = vunpack.c.l.b16 %v2926
    %v2947 = vunpack.c.h.b16 %v2926
    %v2948 = vunpack.c.l.b16 %v2927
    %v2949 = vunpack.c.h.b16 %v2927
    %v2950 = vunpack.c.l.b16 %v2928
    %v2951 = vunpack.c.h.b16 %v2928
    %v2952 = vunpack.c.l.b16 %v2929
    %v2953 = vunpack.c.h.b16 %v2929
    %v2954 = vpack.c.b16 %v2938, %v2938
    %v2955 = vpack.c.b16 %v2939, %v2939
    %v2956 = vpack.c.b16 %v2940, %v2940
    %v2957 = vpack.c.b16 %v2941, %v2941
    %v2958 = vpack.c.b16 %v2942, %v2942
    %v2959 = vpack.c.b16 %v2943, %v2943
    %v2960 = vpack.c.b16 %v2944, %v2944
    %v2961 = vpack.c.b16 %v2945, %v2945
    %v2962 = vpack.c.b16 %v2946, %v2946
    %v2963 = vpack.c.b16 %v2947, %v2947
    %v2964 = vpack.c.b16 %v2948, %v2948
    %v2965 = vpack.c.b16 %v2949, %v2949
    %v2966 = vpack.c.b16 %v2950, %v2950
    %v2967 = vpack.c.b16 %v2951, %v2951
    %v2968 = vpack.c.b16 %v2952, %v2952
    %v2969 = vpack.c.b16 %v2953, %v2953
    %2986 = vst [vmem:[#allocation2 + $0x8] sm:$0xf] %v2954
    %2987 = vst [vmem:[#allocation2 + $0x14] sm:$0xf] %v2955
    %2988 = vst [vmem:[#allocation2 + $0x20] sm:$0xf] %v2956
    %2989 = vst [vmem:[#allocation2 + $0x2c] sm:$0xf] %v2957
    %2990 = vst [vmem:[#allocation2 + $0x38] sm:$0xf] %v2958
    %2991 = vst [vmem:[#allocation2 + $0x44] sm:$0xf] %v2959
    %2992 = vst [vmem:[#allocation2 + $0x50] sm:$0xf] %v2960
    %2993 = vst [vmem:[#allocation2 + $0x5c] sm:$0xf] %v2961
    %2994 = vst [vmem:[#allocation2 + $0x68] sm:$0xf] %v2962
    %2995 = vst [vmem:[#allocation2 + $0x74] sm:$0xf] %v2963
    %2996 = vst [vmem:[#allocation2 + $0x80] sm:$0xf] %v2964
    %2997 = vst [vmem:[#allocation2 + $0x8c] sm:$0xf] %v2965
    %2998 = vst [vmem:[#allocation2 + $0x98] sm:$0xf] %v2966
    %2999 = vst [vmem:[#allocation2 + $0xa4] sm:$0xf] %v2967
    %3000 = vst [vmem:[#allocation2 + $0xb0] sm:$0xf] %v2968
    %3001 = vst [vmem:[#allocation2 + $0xbc] sm:$0xf] %v2969
    %v3002 = vld [vmem:[#allocation2] sm:$0xff]
    %v3003 = vld [vmem:[#allocation2 + $0x8] sm:$0xf]
    %v3004 = vld [vmem:[#allocation2 + $0xc] sm:$0xff]
    %v3005 = vld [vmem:[#allocation2 + $0x14] sm:$0xf]
    %v3006 = vld [vmem:[#allocation2 + $0x18] sm:$0xff]
    %v3007 = vld [vmem:[#allocation2 + $0x20] sm:$0xf]
    %v3008 = vld [vmem:[#allocation2 + $0x24] sm:$0xff]
    %v3009 = vld [vmem:[#allocation2 + $0x2c] sm:$0xf]
    %v3010 = vld [vmem:[#allocation2 + $0x30] sm:$0xff]
    %v3011 = vld [vmem:[#allocation2 + $0x38] sm:$0xf]
    %v3012 = vld [vmem:[#allocation2 + $0x3c] sm:$0xff]
    %v3013 = vld [vmem:[#allocation2 + $0x44] sm:$0xf]
    %v3014 = vld [vmem:[#allocation2 + $0x48] sm:$0xff]
    %v3015 = vld [vmem:[#allocation2 + $0x50] sm:$0xf]
    %v3016 = vld [vmem:[#allocation2 + $0x54] sm:$0xff]
    %v3017 = vld [vmem:[#allocation2 + $0x5c] sm:$0xf]
    %v3018 = vld [vmem:[#allocation2 + $0x60] sm:$0xff]
    %v3019 = vld [vmem:[#allocation2 + $0x68] sm:$0xf]
    %v3020 = vld [vmem:[#allocation2 + $0x6c] sm:$0xff]
    %v3021 = vld [vmem:[#allocation2 + $0x74] sm:$0xf]
    %v3022 = vld [vmem:[#allocation2 + $0x78] sm:$0xff]
    %v3023 = vld [vmem:[#allocation2 + $0x80] sm:$0xf]
    %v3024 = vld [vmem:[#allocation2 + $0x84] sm:$0xff]
    %v3025 = vld [vmem:[#allocation2 + $0x8c] sm:$0xf]
    %v3026 = vld [vmem:[#allocation2 + $0x90] sm:$0xff]
    %v3027 = vld [vmem:[#allocation2 + $0x98] sm:$0xf]
    %v3028 = vld [vmem:[#allocation2 + $0x9c] sm:$0xff]
    %v3029 = vld [vmem:[#allocation2 + $0xa4] sm:$0xf]
    %v3030 = vld [vmem:[#allocation2 + $0xa8] sm:$0xff]
    %v3031 = vld [vmem:[#allocation2 + $0xb0] sm:$0xf]
    %v3032 = vld [vmem:[#allocation2 + $0xb4] sm:$0xff]
    %v3033 = vld [vmem:[#allocation2 + $0xbc] sm:$0xf]
    %s3034 = scalar_lea.vmem [#allocation3], 384
    %v3035 = vld [vmem:[%s3034] sm:$0xf]
    %v3036 = vld [vmem:[%s3034 + $0x4] sm:$0xf]
    %v3037 = vld [vmem:[%s3034 + $0x8] sm:$0xf]
    %v3038 = vld [vmem:[%s3034 + $0xc] sm:$0xf]
    %v3039 = vld [vmem:[%s3034 + $0x10] sm:$0xf]
    %v3040 = vld [vmem:[%s3034 + $0x14] sm:$0xf]
    %v3041 = vld [vmem:[%s3034 + $0x18] sm:$0xf]
    %v3042 = vld [vmem:[%s3034 + $0x1c] sm:$0xf]
    %v3043 = vld [vmem:[%s3034 + $0x20] sm:$0xf]
    %v3044 = vld [vmem:[%s3034 + $0x24] sm:$0xf]
    %v3045 = vld [vmem:[%s3034 + $0x28] sm:$0xf]
    %v3046 = vld [vmem:[%s3034 + $0x2c] sm:$0xf]
    %v3047 = vld [vmem:[%s3034 + $0x30] sm:$0xf]
    %v3048 = vld [vmem:[%s3034 + $0x34] sm:$0xf]
    %v3049 = vld [vmem:[%s3034 + $0x38] sm:$0xf]
    %v3050 = vld [vmem:[%s3034 + $0x3c] sm:$0xf]
    %v3051 = vld [vmem:[%s3034 + $0x40] sm:$0xf]
    %v3052 = vld [vmem:[%s3034 + $0x44] sm:$0xf]
    %v3053 = vld [vmem:[%s3034 + $0x48] sm:$0xf]
    %v3054 = vld [vmem:[%s3034 + $0x4c] sm:$0xf]
    %v3055 = vld [vmem:[%s3034 + $0x50] sm:$0xf]
    %v3056 = vld [vmem:[%s3034 + $0x54] sm:$0xf]
    %v3057 = vld [vmem:[%s3034 + $0x58] sm:$0xf]
    %v3058 = vld [vmem:[%s3034 + $0x5c] sm:$0xf]
    %v3059 = vld [vmem:[%s3034 + $0x60] sm:$0xf]
    %v3060 = vld [vmem:[%s3034 + $0x64] sm:$0xf]
    %v3061 = vld [vmem:[%s3034 + $0x68] sm:$0xf]
    %v3062 = vld [vmem:[%s3034 + $0x6c] sm:$0xf]
    %v3063 = vld [vmem:[%s3034 + $0x70] sm:$0xf]
    %v3064 = vld [vmem:[%s3034 + $0x74] sm:$0xf]
    %v3065 = vld [vmem:[%s3034 + $0x78] sm:$0xf]
    %v3066 = vld [vmem:[%s3034 + $0x7c] sm:$0xf]
    %v3067 = vld [vmem:[%s3034 + $0x80] sm:$0xf]
    %v3068 = vld [vmem:[%s3034 + $0x84] sm:$0xf]
    %v3069 = vld [vmem:[%s3034 + $0x88] sm:$0xf]
    %v3070 = vld [vmem:[%s3034 + $0x8c] sm:$0xf]
    %v3071 = vld [vmem:[%s3034 + $0x90] sm:$0xf]
    %v3072 = vld [vmem:[%s3034 + $0x94] sm:$0xf]
    %v3073 = vld [vmem:[%s3034 + $0x98] sm:$0xf]
    %v3074 = vld [vmem:[%s3034 + $0x9c] sm:$0xf]
    %v3075 = vld [vmem:[%s3034 + $0xa0] sm:$0xf]
    %v3076 = vld [vmem:[%s3034 + $0xa4] sm:$0xf]
    %v3077 = vld [vmem:[%s3034 + $0xa8] sm:$0xf]
    %v3078 = vld [vmem:[%s3034 + $0xac] sm:$0xf]
    %v3079 = vld [vmem:[%s3034 + $0xb0] sm:$0xf]
    %v3080 = vld [vmem:[%s3034 + $0xb4] sm:$0xf]
    %v3081 = vld [vmem:[%s3034 + $0xb8] sm:$0xf]
    %v3082 = vld [vmem:[%s3034 + $0xbc] sm:$0xf]
    %s3083 = scalar_lea.vmem %s3, 2
    %v3084 = vld [vmem:[%s3083] sm:$0x1]
    %v3086 = vlaneseq
    %v3087 = vshrl.u32 %v3086, 7
    %v3088 = vsub.s32 0, %v3087
    %v3089 = vrot.slane %v3084, %v3088
    %v3123 = vunpack.c.l.b16 %v3002
    %v3124 = vunpack.c.h.b16 %v3002
    %v3125 = vunpack.c.l.b16 %v3003
    %v3126 = vunpack.c.l.b16 %v3004
    %v3127 = vunpack.c.h.b16 %v3004
    %v3128 = vunpack.c.l.b16 %v3005
    %v3129 = vunpack.c.l.b16 %v3006
    %v3130 = vunpack.c.h.b16 %v3006
    %v3131 = vunpack.c.l.b16 %v3007
    %v3132 = vunpack.c.l.b16 %v3008
    %v3133 = vunpack.c.h.b16 %v3008
    %v3134 = vunpack.c.l.b16 %v3009
    %v3135 = vunpack.c.l.b16 %v3010
    %v3136 = vunpack.c.h.b16 %v3010
    %v3137 = vunpack.c.l.b16 %v3011
    %v3138 = vunpack.c.l.b16 %v3012
    %v3139 = vunpack.c.h.b16 %v3012
    %v3140 = vunpack.c.l.b16 %v3013
    %v3141 = vunpack.c.l.b16 %v3014
    %v3142 = vunpack.c.h.b16 %v3014
    %v3143 = vunpack.c.l.b16 %v3015
    %v3144 = vunpack.c.l.b16 %v3016
    %v3145 = vunpack.c.h.b16 %v3016
    %v3146 = vunpack.c.l.b16 %v3017
    %v3147 = vunpack.c.l.b16 %v3018
    %v3148 = vunpack.c.h.b16 %v3018
    %v3149 = vunpack.c.l.b16 %v3019
    %v3150 = vunpack.c.l.b16 %v3020
    %v3151 = vunpack.c.h.b16 %v3020
    %v3152 = vunpack.c.l.b16 %v3021
    %v3153 = vunpack.c.l.b16 %v3022
    %v3154 = vunpack.c.h.b16 %v3022
    %v3155 = vunpack.c.l.b16 %v3023
    %v3156 = vunpack.c.l.b16 %v3024
    %v3157 = vunpack.c.h.b16 %v3024
    %v3158 = vunpack.c.l.b16 %v3025
    %v3159 = vunpack.c.l.b16 %v3026
    %v3160 = vunpack.c.h.b16 %v3026
    %v3161 = vunpack.c.l.b16 %v3027
    %v3162 = vunpack.c.l.b16 %v3028
    %v3163 = vunpack.c.h.b16 %v3028
    %v3164 = vunpack.c.l.b16 %v3029
    %v3165 = vunpack.c.l.b16 %v3030
    %v3166 = vunpack.c.h.b16 %v3030
    %v3167 = vunpack.c.l.b16 %v3031
    %v3168 = vunpack.c.l.b16 %v3032
    %v3169 = vunpack.c.h.b16 %v3032
    %v3170 = vunpack.c.l.b16 %v3033
    %v3171 = vpack.c.b16 %v3126, %v3123
    %v3172 = vpack.c.b16 %v3127, %v3124
    %v3173 = vpack.c.b16 %v3128, %v3125
    %v3174 = vpack.c.b16 %v3132, %v3129
    %v3175 = vpack.c.b16 %v3133, %v3130
    %v3176 = vpack.c.b16 %v3134, %v3131
    %v3177 = vpack.c.b16 %v3138, %v3135
    %v3178 = vpack.c.b16 %v3139, %v3136
    %v3179 = vpack.c.b16 %v3140, %v3137
    %v3180 = vpack.c.b16 %v3144, %v3141
    %v3181 = vpack.c.b16 %v3145, %v3142
    %v3182 = vpack.c.b16 %v3146, %v3143
    %v3183 = vpack.c.b16 %v3150, %v3147
    %v3184 = vpack.c.b16 %v3151, %v3148
    %v3185 = vpack.c.b16 %v3152, %v3149
    %v3186 = vpack.c.b16 %v3156, %v3153
    %v3187 = vpack.c.b16 %v3157, %v3154
    %v3188 = vpack.c.b16 %v3158, %v3155
    %v3189 = vpack.c.b16 %v3162, %v3159
    %v3190 = vpack.c.b16 %v3163, %v3160
    %v3191 = vpack.c.b16 %v3164, %v3161
    %v3192 = vpack.c.b16 %v3168, %v3165
    %v3193 = vpack.c.b16 %v3169, %v3166
    %v3194 = vpack.c.b16 %v3170, %v3167
    %v3267 = vunpack.c.l.b16 %v3035
    %v3268 = vunpack.c.l.b16 %v3036
    %v3269 = vunpack.c.l.b16 %v3037
    %v3270 = vunpack.c.l.b16 %v3038
    %v3271 = vunpack.c.l.b16 %v3039
    %v3272 = vunpack.c.l.b16 %v3040
    %v3273 = vunpack.c.l.b16 %v3041
    %v3274 = vunpack.c.l.b16 %v3042
    %v3275 = vunpack.c.l.b16 %v3043
    %v3276 = vunpack.c.l.b16 %v3044
    %v3277 = vunpack.c.l.b16 %v3045
    %v3278 = vunpack.c.l.b16 %v3046
    %v3279 = vunpack.c.l.b16 %v3047
    %v3280 = vunpack.c.l.b16 %v3048
    %v3281 = vunpack.c.l.b16 %v3049
    %v3282 = vunpack.c.l.b16 %v3050
    %v3283 = vunpack.c.l.b16 %v3051
    %v3284 = vunpack.c.l.b16 %v3052
    %v3285 = vunpack.c.l.b16 %v3053
    %v3286 = vunpack.c.l.b16 %v3054
    %v3287 = vunpack.c.l.b16 %v3055
    %v3288 = vunpack.c.l.b16 %v3056
    %v3289 = vunpack.c.l.b16 %v3057
    %v3290 = vunpack.c.l.b16 %v3058
    %v3291 = vunpack.c.l.b16 %v3059
    %v3292 = vunpack.c.l.b16 %v3060
    %v3293 = vunpack.c.l.b16 %v3061
    %v3294 = vunpack.c.l.b16 %v3062
    %v3295 = vunpack.c.l.b16 %v3063
    %v3296 = vunpack.c.l.b16 %v3064
    %v3297 = vunpack.c.l.b16 %v3065
    %v3298 = vunpack.c.l.b16 %v3066
    %v3299 = vunpack.c.l.b16 %v3067
    %v3300 = vunpack.c.l.b16 %v3068
    %v3301 = vunpack.c.l.b16 %v3069
    %v3302 = vunpack.c.l.b16 %v3070
    %v3303 = vunpack.c.l.b16 %v3071
    %v3304 = vunpack.c.l.b16 %v3072
    %v3305 = vunpack.c.l.b16 %v3073
    %v3306 = vunpack.c.l.b16 %v3074
    %v3307 = vunpack.c.l.b16 %v3075
    %v3308 = vunpack.c.l.b16 %v3076
    %v3309 = vunpack.c.l.b16 %v3077
    %v3310 = vunpack.c.l.b16 %v3078
    %v3311 = vunpack.c.l.b16 %v3079
    %v3312 = vunpack.c.l.b16 %v3080
    %v3313 = vunpack.c.l.b16 %v3081
    %v3314 = vunpack.c.l.b16 %v3082
    %v3315 = vpack.c.b16 %v3268, %v3267
    %v3316 = vpack.c.b16 %v3270, %v3269
    %v3317 = vpack.c.b16 %v3272, %v3271
    %v3318 = vpack.c.b16 %v3274, %v3273
    %v3319 = vpack.c.b16 %v3276, %v3275
    %v3320 = vpack.c.b16 %v3278, %v3277
    %v3321 = vpack.c.b16 %v3280, %v3279
    %v3322 = vpack.c.b16 %v3282, %v3281
    %v3323 = vpack.c.b16 %v3284, %v3283
    %v3324 = vpack.c.b16 %v3286, %v3285
    %v3325 = vpack.c.b16 %v3288, %v3287
    %v3326 = vpack.c.b16 %v3290, %v3289
    %v3327 = vpack.c.b16 %v3292, %v3291
    %v3328 = vpack.c.b16 %v3294, %v3293
    %v3329 = vpack.c.b16 %v3296, %v3295
    %v3330 = vpack.c.b16 %v3298, %v3297
    %v3331 = vpack.c.b16 %v3300, %v3299
    %v3332 = vpack.c.b16 %v3302, %v3301
    %v3333 = vpack.c.b16 %v3304, %v3303
    %v3334 = vpack.c.b16 %v3306, %v3305
    %v3335 = vpack.c.b16 %v3308, %v3307
    %v3336 = vpack.c.b16 %v3310, %v3309
    %v3337 = vpack.c.b16 %v3312, %v3311
    %v3338 = vpack.c.b16 %v3314, %v3313
    %3363 = vmatprep.subr.bf16.mxu0 0
    %3364 = vmatpush1.bf16.msra.mxu0 %v3322
    %3365 = vmatprep.subr.bf16.mxu0 0
    %3366 = vmatpush1.bf16.msra.mxu0 %v3321
    %3367 = vmatprep.subr.bf16.mxu0 0
    %3368 = vmatpush1.bf16.msra.mxu0 %v3320
    %3369 = vmatprep.subr.bf16.mxu0 0
    %3370 = vmatpush1.bf16.msra.mxu0 %v3319
    %3371 = vmatprep.subr.bf16.mxu0 0
    %3372 = vmatpush1.bf16.msra.mxu0 %v3318
    %3373 = vmatprep.subr.bf16.mxu0 0
    %3374 = vmatpush1.bf16.msra.mxu0 %v3317
    %3375 = vmatprep.subr.bf16.mxu0 0
    %3376 = vmatpush1.bf16.msra.mxu0 %v3316
    %3377 = vmatprep.subr.bf16.mxu0 0
    %3378 = vmatpush1.bf16.msra.mxu0 %v3315
    %3379 = vmatprep.subr.bf16.mxu0 0
    %3380 = vmatpush2.bf16.msra.mxu0 %v3330
    %3381 = vmatprep.subr.bf16.mxu0 0
    %3382 = vmatpush2.bf16.msra.mxu0 %v3329
    %3383 = vmatprep.subr.bf16.mxu0 0
    %3384 = vmatpush2.bf16.msra.mxu0 %v3328
    %3385 = vmatprep.subr.bf16.mxu0 0
    %3386 = vmatpush2.bf16.msra.mxu0 %v3327
    %3387 = vmatprep.subr.bf16.mxu0 0
    %3388 = vmatpush2.bf16.msra.mxu0 %v3326
    %3389 = vmatprep.subr.bf16.mxu0 0
    %3390 = vmatpush2.bf16.msra.mxu0 %v3325
    %3391 = vmatprep.subr.bf16.mxu0 0
    %3392 = vmatpush2.bf16.msra.mxu0 %v3324
    %3393 = vmatprep.subr.bf16.mxu0 0
    %3394 = vmatpush2.bf16.msra.mxu0 %v3323
    %3395 = vmatprep.mubr.bf16.mxu0 %v3172
    %3396 = vmatmul.mubr.bf16.gmra.mxu0 %v3171
    %v3397 = vpop.f32.mrf.mxu0
    %v3398 = vadd.f32 %v3089, %v3397
    %v3399 = vpop.f32.mrf.mxu0
    %v3400 = vpop.f32.mrf.mxu0
    %v3401 = vadd.f32 %v3089, %v3400
    %v3402 = vpop.f32.mrf.mxu0
    %3403 = vmatprep.mubr.bf16.mxu0 %v3175
    %3404 = vmatmul.mubr.bf16.gmra.mxu0 %v3174
    %v3405 = vpop.f32.mrf.mxu0
    %v3406 = vadd.f32 %v3089, %v3405
    %v3407 = vpop.f32.mrf.mxu0
    %v3408 = vpop.f32.mrf.mxu0
    %v3409 = vadd.f32 %v3089, %v3408
    %v3410 = vpop.f32.mrf.mxu0
    %3411 = vmatprep.mubr.bf16.mxu0 %v3178
    %3412 = vmatmul.mubr.bf16.gmra.mxu0 %v3177
    %v3413 = vpop.f32.mrf.mxu0
    %v3414 = vadd.f32 %v3089, %v3413
    %v3415 = vpop.f32.mrf.mxu0
    %v3416 = vpop.f32.mrf.mxu0
    %v3417 = vadd.f32 %v3089, %v3416
    %v3418 = vpop.f32.mrf.mxu0
    %3419 = vmatprep.mubr.bf16.mxu0 %v3181
    %3420 = vmatmul.mubr.bf16.gmra.mxu0 %v3180
    %v3421 = vpop.f32.mrf.mxu0
    %v3422 = vadd.f32 %v3089, %v3421
    %v3423 = vpop.f32.mrf.mxu0
    %v3424 = vpop.f32.mrf.mxu0
    %v3425 = vadd.f32 %v3089, %v3424
    %v3426 = vpop.f32.mrf.mxu0
    %3427 = vmatprep.mubr.bf16.mxu0 %v3184
    %3428 = vmatmul.mubr.bf16.gmra.mxu0 %v3183
    %v3429 = vpop.f32.mrf.mxu0
    %v3430 = vadd.f32 %v3089, %v3429
    %v3431 = vpop.f32.mrf.mxu0
    %v3432 = vpop.f32.mrf.mxu0
    %v3433 = vadd.f32 %v3089, %v3432
    %v3434 = vpop.f32.mrf.mxu0
    %3435 = vmatprep.mubr.bf16.mxu0 %v3187
    %3436 = vmatmul.mubr.bf16.gmra.mxu0 %v3186
    %v3437 = vpop.f32.mrf.mxu0
    %v3438 = vadd.f32 %v3089, %v3437
    %v3439 = vpop.f32.mrf.mxu0
    %v3440 = vpop.f32.mrf.mxu0
    %v3441 = vadd.f32 %v3089, %v3440
    %v3442 = vpop.f32.mrf.mxu0
    %3443 = vmatprep.mubr.bf16.mxu0 %v3190
    %3444 = vmatmul.mubr.bf16.gmra.mxu0 %v3189
    %v3445 = vpop.f32.mrf.mxu0
    %v3446 = vadd.f32 %v3089, %v3445
    %v3447 = vpop.f32.mrf.mxu0
    %v3448 = vpop.f32.mrf.mxu0
    %v3449 = vadd.f32 %v3089, %v3448
    %v3450 = vpop.f32.mrf.mxu0
    %3451 = vmatprep.mubr.bf16.mxu0 %v3193
    %3452 = vmatmul.mubr.bf16.gmra.mxu0 %v3192
    %v3453 = vpop.f32.mrf.mxu0
    %v3454 = vadd.f32 %v3089, %v3453
    %v3455 = vpop.f32.mrf.mxu0
    %v3456 = vpop.f32.mrf.mxu0
    %v3457 = vadd.f32 %v3089, %v3456
    %v3458 = vpop.f32.mrf.mxu0
    %3459 = vdwg.mxu0
    %3460 = vmatprep.subr.bf16.mxu0 0
    %3461 = vmatpush1.bf16.msra.mxu0 %v3338
    %3462 = vmatprep.subr.bf16.mxu0 0
    %3463 = vmatpush1.bf16.msra.mxu0 %v3337
    %3464 = vmatprep.subr.bf16.mxu0 0
    %3465 = vmatpush1.bf16.msra.mxu0 %v3336
    %3466 = vmatprep.subr.bf16.mxu0 0
    %3467 = vmatpush1.bf16.msra.mxu0 %v3335
    %3468 = vmatprep.subr.bf16.mxu0 0
    %3469 = vmatpush1.bf16.msra.mxu0 %v3334
    %3470 = vmatprep.subr.bf16.mxu0 0
    %3471 = vmatpush1.bf16.msra.mxu0 %v3333
    %3472 = vmatprep.subr.bf16.mxu0 0
    %3473 = vmatpush1.bf16.msra.mxu0 %v3332
    %3474 = vmatprep.subr.bf16.mxu0 0
    %3475 = vmatpush1.bf16.msra.mxu0 %v3331
    %3476 = vmatprep.subr.bf16.mxu0 0
    %3477 = vmatpush2.bf16.msra.mxu0 0
    %3478 = vmatprep.subr.bf16.mxu0 0
    %3479 = vmatpush2.bf16.msra.mxu0 0
    %3480 = vmatprep.subr.bf16.mxu0 0
    %3481 = vmatpush2.bf16.msra.mxu0 0
    %3482 = vmatprep.subr.bf16.mxu0 0
    %3483 = vmatpush2.bf16.msra.mxu0 0
    %3484 = vmatprep.subr.bf16.mxu0 0
    %3485 = vmatpush2.bf16.msra.mxu0 0
    %3486 = vmatprep.subr.bf16.mxu0 0
    %3487 = vmatpush2.bf16.msra.mxu0 0
    %3488 = vmatprep.subr.bf16.mxu0 0
    %3489 = vmatpush2.bf16.msra.mxu0 0
    %3490 = vmatprep.subr.bf16.mxu0 0
    %3491 = vmatpush2.bf16.msra.mxu0 0
    %3492 = vmatprep.mubr.bf16.mxu0 0
    %3493 = vmatmul.mubr.bf16.gmra.mxu0 %v3173
    %v3494 = vpop.f32.mrf.mxu0
    %v3495 = vadd.f32 %v3398, %v3494
    %v3496 = vpop.f32.mrf.mxu0
    %v3497 = vpop.f32.mrf.mxu0
    %v3498 = vadd.f32 %v3401, %v3497
    %v3499 = vpop.f32.mrf.mxu0
    %3500 = vmatprep.mubr.bf16.mxu0 0
    %3501 = vmatmul.mubr.bf16.gmra.mxu0 %v3176
    %v3502 = vpop.f32.mrf.mxu0
    %v3503 = vadd.f32 %v3406, %v3502
    %v3504 = vpop.f32.mrf.mxu0
    %v3505 = vpop.f32.mrf.mxu0
    %v3506 = vadd.f32 %v3409, %v3505
    %v3507 = vpop.f32.mrf.mxu0
    %3508 = vmatprep.mubr.bf16.mxu0 0
    %3509 = vmatmul.mubr.bf16.gmra.mxu0 %v3179
    %v3510 = vpop.f32.mrf.mxu0
    %v3511 = vadd.f32 %v3414, %v3510
    %v3512 = vpop.f32.mrf.mxu0
    %v3513 = vpop.f32.mrf.mxu0
    %v3514 = vadd.f32 %v3417, %v3513
    %v3515 = vpop.f32.mrf.mxu0
    %3516 = vmatprep.mubr.bf16.mxu0 0
    %3517 = vmatmul.mubr.bf16.gmra.mxu0 %v3182
    %v3518 = vpop.f32.mrf.mxu0
    %v3519 = vadd.f32 %v3422, %v3518
    %v3520 = vpop.f32.mrf.mxu0
    %v3521 = vpop.f32.mrf.mxu0
    %v3522 = vadd.f32 %v3425, %v3521
    %v3523 = vpop.f32.mrf.mxu0
    %3524 = vmatprep.mubr.bf16.mxu0 0
    %3525 = vmatmul.mubr.bf16.gmra.mxu0 %v3185
    %v3526 = vpop.f32.mrf.mxu0
    %v3527 = vadd.f32 %v3430, %v3526
    %v3528 = vpop.f32.mrf.mxu0
    %v3529 = vpop.f32.mrf.mxu0
    %v3530 = vadd.f32 %v3433, %v3529
    %v3531 = vpop.f32.mrf.mxu0
    %3532 = vmatprep.mubr.bf16.mxu0 0
    %3533 = vmatmul.mubr.bf16.gmra.mxu0 %v3188
    %v3534 = vpop.f32.mrf.mxu0
    %v3535 = vadd.f32 %v3438, %v3534
    %v3536 = vpop.f32.mrf.mxu0
    %v3537 = vpop.f32.mrf.mxu0
    %v3538 = vadd.f32 %v3441, %v3537
    %v3539 = vpop.f32.mrf.mxu0
    %3540 = vmatprep.mubr.bf16.mxu0 0
    %3541 = vmatmul.mubr.bf16.gmra.mxu0 %v3191
    %v3542 = vpop.f32.mrf.mxu0
    %v3543 = vadd.f32 %v3446, %v3542
    %v3544 = vpop.f32.mrf.mxu0
    %v3545 = vpop.f32.mrf.mxu0
    %v3546 = vadd.f32 %v3449, %v3545
    %v3547 = vpop.f32.mrf.mxu0
    %3548 = vmatprep.mubr.bf16.mxu0 0
    %3549 = vmatmul.mubr.bf16.gmra.mxu0 %v3194
    %v3550 = vpop.f32.mrf.mxu0
    %v3551 = vadd.f32 %v3454, %v3550
    %v3552 = vpop.f32.mrf.mxu0
    %v3553 = vpop.f32.mrf.mxu0
    %v3554 = vadd.f32 %v3457, %v3553
    %v3555 = vpop.f32.mrf.mxu0
    %3556 = vdwg.mxu0
    %v3557 = vmax.f32 %v3495, 0.0
    %v3558 = vmax.f32 %v3498, 0.0
    %v3559 = vmax.f32 %v3503, 0.0
    %v3560 = vmax.f32 %v3506, 0.0
    %v3561 = vmax.f32 %v3511, 0.0
    %v3562 = vmax.f32 %v3514, 0.0
    %v3563 = vmax.f32 %v3519, 0.0
    %v3564 = vmax.f32 %v3522, 0.0
    %v3565 = vmax.f32 %v3527, 0.0
    %v3566 = vmax.f32 %v3530, 0.0
    %v3567 = vmax.f32 %v3535, 0.0
    %v3568 = vmax.f32 %v3538, 0.0
    %v3569 = vmax.f32 %v3543, 0.0
    %v3570 = vmax.f32 %v3546, 0.0
    %v3571 = vmax.f32 %v3551, 0.0
    %v3572 = vmax.f32 %v3554, 0.0
    %3573 = vst [vmem:[%s4] sm:$0xff] %v3557
    %3574 = vst [vmem:[%s4 + $0x8] sm:$0xff] %v3558
    %3575 = vst [vmem:[%s4 + $0x10] sm:$0xff] %v3559
    %3576 = vst [vmem:[%s4 + $0x18] sm:$0xff] %v3560
    %3577 = vst [vmem:[%s4 + $0x20] sm:$0xff] %v3561
    %3578 = vst [vmem:[%s4 + $0x28] sm:$0xff] %v3562
    %3579 = vst [vmem:[%s4 + $0x30] sm:$0xff] %v3563
    %3580 = vst [vmem:[%s4 + $0x38] sm:$0xff] %v3564
    %3581 = vst [vmem:[%s4 + $0x40] sm:$0xff] %v3565
    %3582 = vst [vmem:[%s4 + $0x48] sm:$0xff] %v3566
    %3583 = vst [vmem:[%s4 + $0x50] sm:$0xff] %v3567
    %3584 = vst [vmem:[%s4 + $0x58] sm:$0xff] %v3568
    %3585 = vst [vmem:[%s4 + $0x60] sm:$0xff] %v3569
    %3586 = vst [vmem:[%s4 + $0x68] sm:$0xff] %v3570
    %3587 = vst [vmem:[%s4 + $0x70] sm:$0xff] %v3571
    %3588 = vst [vmem:[%s4 + $0x78] sm:$0xff] %v3572
    // Predicated region
    $region22: #{chebnet_forward.1} parent=1 // pred_check
      _
    $region23: #{chebnet_forward.1} parent=1 // pred_check_branch
      %3590 = sbr.rel (0) target = $region25
    $region24: #{chebnet_forward.1} parent=1 // pred_region
      _
    $region25: #{chebnet_forward.1} parent=1 // pred_fallthru
      _
    // Predicated region
    $region26: #{chebnet_forward.1} parent=1 // pred_check
      _
    $region27: #{chebnet_forward.1} parent=1 // pred_check_branch
      %3592 = sbr.rel (0) target = $region29
    $region28: #{chebnet_forward.1} parent=1 // pred_region
      _
    $region29: #{chebnet_forward.1} parent=1 // pred_fallthru
      _
    %3593 = vsyncpa [#allocation4], 1

</llo_original>
